<compile_context>
chip_gen: v6e
topology: v6e:2x2x1
jax: 0.10.0
libtpu: 0.0.40
codegen_flags: <defaults>
</compile_context>

<pallas_src>
import functools
import math

import jax
import jax.numpy as jnp
from jax.experimental import pallas as pl
from jax.experimental.pallas import tpu as pltpu  # noqa: F401  (TPU-specific params if scaled up)

# ----------------------------- config (small, synthetic) --------------------
HIDDEN     = 32      # bert.config.hidden_size (scaled down from 768)
N_HEADS    = 4
HEAD_DIM   = HIDDEN // N_HEADS
FFN_DIM    = 64
N_LAYERS   = 2
VOCAB      = 100
MAX_POS    = 64
FC1, FC2, N_CLS = 512, 128, 3
PADDED_CLS = 128     # lane-dense classifier output; wrapper slices [:, :N_CLS]
LN_EPS     = 1e-5
NEG_INF    = -1e9

N_LAYER_REFS = 12    # refs per encoder layer
N_HEAD_REFS  = 12    # pooler + classifier head refs


# ----------------------------- in-kernel helpers -----------------------------
def _layernorm(x, gamma, beta, eps=LN_EPS):
    mu = jnp.mean(x, axis=-1, keepdims=True)
    var = jnp.mean((x - mu) ** 2, axis=-1, keepdims=True)
    return (x - mu) * jax.lax.rsqrt(var + eps) * gamma + beta


def _encoder_layer(x, mask, refs, *, batch, seq, scale):
    """One transformer encoder layer on VMEM-resident activations.

    x:    (B*S, H) f32 value
    mask: (B, S)   f32 additive mask (-1e9 on pad keys)
    refs: 12 weight/bias/LN refs (weights bf16, biases/LN f32).
    """
    (wqkv_ref, bqkv_ref, wo_ref, bo_ref,
     ln1_g_ref, ln1_b_ref,
     w1_ref, b1_ref, w2_ref, b2_ref,
     ln2_g_ref, ln2_b_ref) = refs
    f32, bf16 = jnp.float32, jnp.bfloat16
    H = HIDDEN

    # --- packed QKV projection: one MXU pass instead of three ---------------
    qkv = jnp.dot(x.astype(bf16), wqkv_ref[...],
                  preferred_element_type=f32) + bqkv_ref[...]   # (B*S, 3H)

    # --- multi-head self-attention, static unroll over (batch, head) --------
    # 2-D per-(b,h) matmuls only: no in-kernel 4-D transposes; everything
    # stays in vregs/VMEM (B=2, S=8, Dh=8 -> tiny, fully unrolled).
    rows = []
    for b in range(batch):
        r0 = b * seq
        m_b = mask[b:b + 1, :]                                  # (1, S) adds along keys
        ctxs = []
        for h in range(N_HEADS):
            c0 = h * HEAD_DIM
            qh = qkv[r0:r0 + seq, c0:c0 + HEAD_DIM]             # (S, Dh)
            kh = qkv[r0:r0 + seq, H + c0:H + c0 + HEAD_DIM]     # (S, Dh)
            vh = qkv[r0:r0 + seq, 2 * H + c0:2 * H + c0 + HEAD_DIM]
            s = jax.lax.dot_general(                            # q @ k^T
                qh.astype(bf16), kh.astype(bf16),
                (((1,), (1,)), ((), ())),
                preferred_element_type=f32) * scale             # (S, S)
            s = s + m_b
            s = s - jnp.max(s, axis=-1, keepdims=True)
            p = jnp.exp(s)
            p = p * pl.reciprocal(jnp.sum(p, axis=-1, keepdims=True), approx=True)
            ctxs.append(jnp.dot(p.astype(bf16), vh.astype(bf16),
                                preferred_element_type=f32))    # (S, Dh)
        rows.append(jnp.concatenate(ctxs, axis=-1))             # (S, H)
    attn = jnp.concatenate(rows, axis=0)                        # (B*S, H)
    # TODO(synk): for real S (>=256) restructure as flash-style key-tiled
    # online softmax with m/l/acc scratch instead of full (S, S) scores.

    # --- output projection + residual + LN1 ----------------------------------
    attn = jnp.dot(attn.astype(bf16), wo_ref[...],
                   preferred_element_type=f32) + bo_ref[...]
    x1 = _layernorm(x + attn, ln1_g_ref[...], ln1_b_ref[...])

    # --- FFN + residual + LN2 -------------------------------------------------
    hmid = jnp.dot(x1.astype(bf16), w1_ref[...],
                   preferred_element_type=f32) + b1_ref[...]
    hmid = jax.nn.gelu(hmid, approximate=True)
    ffn = jnp.dot(hmid.astype(bf16), w2_ref[...],
                  preferred_element_type=f32) + b2_ref[...]
    return _layernorm(x1 + ffn, ln2_g_ref[...], ln2_b_ref[...])


# ----------------------------- the single fused kernel -----------------------
def fused_forward_kernel(ids_ref, mask_ref, wemb_ref, pemb_ref, temb_ref,
                         emb_g_ref, emb_b_ref, *refs,
                         batch, seq, n_layers, scale):
    """Whole BertClassifier forward in one kernel.

    ids_ref:  (B*S, 1) int32 token ids
    mask_ref: (B, S)   f32 additive attention mask
    wemb/pemb/temb: f32 embedding tables (VOCAB,H) / (S,H) / (1,H)
    refs: n_layers*12 layer refs, 12 pooler/head refs, then the output ref.
    Output: (B, PADDED_CLS) softmax probabilities (pad cols exactly 0).
    """
    o_ref = refs[-1]
    layer_refs = refs[:N_LAYER_REFS * n_layers]
    (pool_w_ref, pool_b_ref,
     fw1_ref, fb1_ref, fg1_ref, fbe1_ref,
     fw2_ref, fb2_ref, fg2_ref, fbe2_ref,
     fw3_ref, fb3_ref) = refs[N_LAYER_REFS * n_layers:-1]

    f32, bf16 = jnp.float32, jnp.bfloat16
    M = batch * seq

    # --- embeddings: gather as one-hot matmul, + position + type, + LN -------
    ids = ids_ref[...]                                                  # (M, 1) int32
    onehot = (ids == jax.lax.broadcasted_iota(jnp.int32, (M, VOCAB), 1)).astype(f32)
    we = jnp.dot(onehot, wemb_ref[...], preferred_element_type=f32)     # (M, H)
    pe = jnp.concatenate([pemb_ref[...]] * batch, axis=0)               # (M, H)
    emb = we + pe + temb_ref[...]
    x = _layernorm(emb, emb_g_ref[...], emb_b_ref[...])

    mask = mask_ref[...]                                                # (B, S)

    # --- encoder stack (activations never leave VMEM) ------------------------
    for l in range(n_layers):
        refs_l = layer_refs[l * N_LAYER_REFS:(l + 1) * N_LAYER_REFS]
        x = _encoder_layer(x, mask, refs_l, batch=batch, seq=seq, scale=scale)

    # --- pooler: tanh(W @ CLS) ------------------------------------------------
    cls = jnp.concatenate([x[b * seq:b * seq + 1, :] for b in range(batch)], axis=0)  # (B, H)
    pooled = jnp.tanh(jnp.dot(cls.astype(bf16), pool_w_ref[...],
                              preferred_element_type=f32) + pool_b_ref[...])

    # nn.Dropout(p=0.3): eval mode => identity.
    # TODO(synk): training-mode stochastic dropout via pltpu.prng_random_bits.

    # --- classifier head: Linear->ReLU->LN -> Linear->ReLU->LN -> Linear -> Softmax
    h = jnp.dot(pooled.astype(bf16), fw1_ref[...], preferred_element_type=f32) + fb1_ref[...]
    h = jnp.maximum(h, 0.0)
    h = _layernorm(h, fg1_ref[...], fbe1_ref[...])
    h = jnp.dot(h.astype(bf16), fw2_ref[...], preferred_element_type=f32) + fb2_ref[...]
    h = jnp.maximum(h, 0.0)
    h = _layernorm(h, fg2_ref[...], fbe2_ref[...])
    # fw3/fb3 are padded to 128 output lanes (pad bias = -1e9) so the store is
    # lane-dense (unmasked vst) and the softmax over 128 columns still gives
    # the exact 3-class distribution (pad columns -> prob 0).
    logits = jnp.dot(h.astype(bf16), fw3_ref[...], preferred_element_type=f32) + fb3_ref[...]
    logits = logits - jnp.max(logits, axis=-1, keepdims=True)           # Softmax(dim=1)
    e = jnp.exp(logits)
    o_ref[...] = e / jnp.sum(e, axis=-1, keepdims=True)                 # rows sum to 1 exactly


# ----------------------------- pallas_call wrapper ---------------------------
def _full_spec(shape):
    return pl.BlockSpec(shape, lambda *_: (0,) * len(shape))


def bert_classifier_forward(params, input_ids, attention_mask):
    B, S = input_ids.shape

    ids = input_ids.reshape(B * S, 1).astype(jnp.int32)
    mask_add = (1.0 - attention_mask.astype(jnp.float32)) * NEG_INF     # (B, S)

    args = [ids, mask_add,
            params["word_emb"], params["pos_emb"][:S], params["type_emb"],
            params["emb_ln_g"], params["emb_ln_b"]]
    for layer in params["layers"]:
        args += [layer[k] for k in ("wqkv", "bqkv", "wo", "bo",
                                    "ln1_g", "ln1_b",
                                    "w1", "b1", "w2", "b2",
                                    "ln2_g", "ln2_b")]
    fc = params["fc"]
    args += [params["pool_w"], params["pool_b"],
             fc["w1"], fc["b1"], fc["g1"], fc["be1"],
             fc["w2"], fc["b2"], fc["g2"], fc["be2"],
             fc["w3p"], fc["b3p"]]

    kernel = functools.partial(fused_forward_kernel, batch=B, seq=S,
                               n_layers=len(params["layers"]),
                               scale=1.0 / math.sqrt(HEAD_DIM))

    # TODO(synk): at phobert-base scale (H=768, FFN=3072, S>=128), split back
    # into per-layer calls with a grid over row tiles of B*S
    # (dimension_semantics=('parallel','arbitrary')), K-tiled matmuls with f32
    # VMEM accumulators, budgeted for v7x's 64 MiB VMEM.
    probs_padded = pl.pallas_call(
        kernel,
        out_shape=jax.ShapeDtypeStruct((B, PADDED_CLS), jnp.float32),
        in_specs=[_full_spec(a.shape) for a in args],
        out_specs=_full_spec((B, PADDED_CLS)),
    )(*args)
    return probs_padded[:, :N_CLS]


# ----------------------------- deterministic parameters ----------------------
def init_params(key):
    ks = iter(jax.random.split(key, 64))
    bf16 = jnp.bfloat16

    def w(shape):
        return jax.random.normal(next(ks), shape, jnp.float32) * 0.02

    params = {
        "word_emb": w((VOCAB, HIDDEN)),
        "pos_emb":  w((MAX_POS, HIDDEN)),
        "type_emb": w((1, HIDDEN)),
        "emb_ln_g": jnp.ones((1, HIDDEN), jnp.float32),
        "emb_ln_b": jnp.zeros((1, HIDDEN), jnp.float32),
        "layers": [],
    }
    for _ in range(N_LAYERS):
        wq, wk, wv = w((HIDDEN, HIDDEN)), w((HIDDEN, HIDDEN)), w((HIDDEN, HIDDEN))
        params["layers"].append(dict(
            wqkv=jnp.concatenate([wq, wk, wv], axis=1).astype(bf16),   # (H, 3H) packed
            bqkv=jnp.zeros((1, 3 * HIDDEN), jnp.float32),
            wo=w((HIDDEN, HIDDEN)).astype(bf16),
            bo=jnp.zeros((1, HIDDEN), jnp.float32),
            ln1_g=jnp.ones((1, HIDDEN), jnp.float32),
            ln1_b=jnp.zeros((1, HIDDEN), jnp.float32),
            w1=w((HIDDEN, FFN_DIM)).astype(bf16),
            b1=jnp.zeros((1, FFN_DIM), jnp.float32),
            w2=w((FFN_DIM, HIDDEN)).astype(bf16),
            b2=jnp.zeros((1, HIDDEN), jnp.float32),
            ln2_g=jnp.ones((1, HIDDEN), jnp.float32),
            ln2_b=jnp.zeros((1, HIDDEN), jnp.float32),
        ))
    params["pool_w"] = w((HIDDEN, HIDDEN)).astype(bf16)
    params["pool_b"] = jnp.zeros((1, HIDDEN), jnp.float32)

    # Classifier head; final layer padded to 128 lanes (zero weights, -1e9 bias
    # on pad columns) for a lane-dense softmax output.
    w3 = w((FC2, N_CLS))
    w3p = jnp.zeros((FC2, PADDED_CLS), jnp.float32).at[:, :N_CLS].set(w3).astype(bf16)
    b3p = jnp.full((1, PADDED_CLS), NEG_INF, jnp.float32).at[:, :N_CLS].set(0.0)
    params["fc"] = dict(
        w1=w((HIDDEN, FC1)).astype(bf16), b1=jnp.zeros((1, FC1), jnp.float32),
        g1=jnp.ones((1, FC1), jnp.float32), be1=jnp.zeros((1, FC1), jnp.float32),
        w2=w((FC1, FC2)).astype(bf16), b2=jnp.zeros((1, FC2), jnp.float32),
        g2=jnp.ones((1, FC2), jnp.float32), be2=jnp.zeros((1, FC2), jnp.float32),
        w3p=w3p, b3p=b3p,
    )
    return params


# ----------------------------- main -------------------------------------------
if __name__ == "__main__":
    B, S = 2, 8
    key = jax.random.PRNGKey(0)
    k_ids, _ = jax.random.split(key)

    input_ids = jax.random.randint(k_ids, (B, S), 0, VOCAB, dtype=jnp.int32)
    lengths = jnp.array([S, 5], dtype=jnp.int32)
    attention_mask = (jnp.arange(S)[None, :] < lengths[:, None]).astype(jnp.int32)

    params = init_params(jax.random.PRNGKey(42))

    fwd = jax.jit(bert_classifier_forward)
    probs = fwd(params, input_ids, attention_mask)
    jax.block_until_ready(probs)

    assert probs.shape == (B, N_CLS)
    assert bool(jnp.all(jnp.isfinite(probs)))
    assert bool(jnp.allclose(jnp.sum(probs, axis=1), 1.0, atol=1e-5))
    print("KERNEL_OK")
</pallas_src>

<mosaic_0001>
module attributes {stable_mosaic.version = 11 : i64} {
  func.func @fused_forward_kernel(%arg0: memref<16x1xi32, #tpu.memory_space<vmem>>, %arg1: memref<2x8xf32, #tpu.memory_space<vmem>>, %arg2: memref<100x32xf32, #tpu.memory_space<vmem>>, %arg3: memref<8x32xf32, #tpu.memory_space<vmem>>, %arg4: memref<1x32xf32, #tpu.memory_space<vmem>>, %arg5: memref<1x32xf32, #tpu.memory_space<vmem>>, %arg6: memref<1x32xf32, #tpu.memory_space<vmem>>, %arg7: memref<32x96xbf16, #tpu.memory_space<vmem>>, %arg8: memref<1x96xf32, #tpu.memory_space<vmem>>, %arg9: memref<32x32xbf16, #tpu.memory_space<vmem>>, %arg10: memref<1x32xf32, #tpu.memory_space<vmem>>, %arg11: memref<1x32xf32, #tpu.memory_space<vmem>>, %arg12: memref<1x32xf32, #tpu.memory_space<vmem>>, %arg13: memref<32x64xbf16, #tpu.memory_space<vmem>>, %arg14: memref<1x64xf32, #tpu.memory_space<vmem>>, %arg15: memref<64x32xbf16, #tpu.memory_space<vmem>>, %arg16: memref<1x32xf32, #tpu.memory_space<vmem>>, %arg17: memref<1x32xf32, #tpu.memory_space<vmem>>, %arg18: memref<1x32xf32, #tpu.memory_space<vmem>>, %arg19: memref<32x96xbf16, #tpu.memory_space<vmem>>, %arg20: memref<1x96xf32, #tpu.memory_space<vmem>>, %arg21: memref<32x32xbf16, #tpu.memory_space<vmem>>, %arg22: memref<1x32xf32, #tpu.memory_space<vmem>>, %arg23: memref<1x32xf32, #tpu.memory_space<vmem>>, %arg24: memref<1x32xf32, #tpu.memory_space<vmem>>, %arg25: memref<32x64xbf16, #tpu.memory_space<vmem>>, %arg26: memref<1x64xf32, #tpu.memory_space<vmem>>, %arg27: memref<64x32xbf16, #tpu.memory_space<vmem>>, %arg28: memref<1x32xf32, #tpu.memory_space<vmem>>, %arg29: memref<1x32xf32, #tpu.memory_space<vmem>>, %arg30: memref<1x32xf32, #tpu.memory_space<vmem>>, %arg31: memref<32x32xbf16, #tpu.memory_space<vmem>>, %arg32: memref<1x32xf32, #tpu.memory_space<vmem>>, %arg33: memref<32x512xbf16, #tpu.memory_space<vmem>>, %arg34: memref<1x512xf32, #tpu.memory_space<vmem>>, %arg35: memref<1x512xf32, #tpu.memory_space<vmem>>, %arg36: memref<1x512xf32, #tpu.memory_space<vmem>>, %arg37: memref<512x128xbf16, #tpu.memory_space<vmem>>, %arg38: memref<1x128xf32, #tpu.memory_space<vmem>>, %arg39: memref<1x128xf32, #tpu.memory_space<vmem>>, %arg40: memref<1x128xf32, #tpu.memory_space<vmem>>, %arg41: memref<128x128xbf16, #tpu.memory_space<vmem>>, %arg42: memref<1x128xf32, #tpu.memory_space<vmem>>, %arg43: memref<2x128xf32, #tpu.memory_space<vmem>>) attributes {dimension_semantics = [], scalar_prefetch = 0 : i64, scratch_operands = 0 : i64, tpu.core_type = #tpu.core_type<tc>} {
    %c0 = arith.constant 0 : index
    %c0_0 = arith.constant 0 : index
    %0 = vector.load %arg0[%c0, %c0_0] : memref<16x1xi32, #tpu.memory_space<vmem>>, vector<16x1xi32>
    %1 = tpu.iota {dimensions = array<i32: 1>} : vector<16x100xi32>
    %2 = vector.broadcast %0 : vector<16x1xi32> to vector<16x100xi32>
    %3 = arith.cmpi eq, %2, %1 : vector<16x100xi32>
    %4 = arith.extui %3 : vector<16x100xi1> to vector<16x100xi32>
    %5 = arith.sitofp %4 : vector<16x100xi32> to vector<16x100xf32>
    %c0_1 = arith.constant 0 : index
    %c0_2 = arith.constant 0 : index
    %6 = vector.load %arg2[%c0_1, %c0_2] : memref<100x32xf32, #tpu.memory_space<vmem>>, vector<100x32xf32>
    %cst = arith.constant dense<0.000000e+00> : vector<16x32xf32>
    %7 = tpu.matmul %5, %6, %cst {dimension_numbers = #tpu.dot_dimension_numbers<[1], [0], [0], [1], [0, 0, 1, 1], [], []>} : vector<16x100xf32>, vector<100x32xf32>, vector<16x32xf32> -> vector<16x32xf32>
    %c0_3 = arith.constant 0 : index
    %c0_4 = arith.constant 0 : index
    %8 = vector.load %arg3[%c0_3, %c0_4] : memref<8x32xf32, #tpu.memory_space<vmem>>, vector<8x32xf32>
    %9 = tpu.concatenate %8, %8 in 0 : vector<8x32xf32>, vector<8x32xf32> -> vector<16x32xf32>
    %10 = arith.addf %7, %9 : vector<16x32xf32>
    %c0_5 = arith.constant 0 : index
    %c0_6 = arith.constant 0 : index
    %11 = vector.load %arg4[%c0_5, %c0_6] : memref<1x32xf32, #tpu.memory_space<vmem>>, vector<1x32xf32>
    %12 = vector.broadcast %11 : vector<1x32xf32> to vector<16x32xf32>
    %13 = arith.addf %10, %12 : vector<16x32xf32>
    %c0_7 = arith.constant 0 : index
    %c0_8 = arith.constant 0 : index
    %14 = vector.load %arg5[%c0_7, %c0_8] : memref<1x32xf32, #tpu.memory_space<vmem>>, vector<1x32xf32>
    %c0_9 = arith.constant 0 : index
    %c0_10 = arith.constant 0 : index
    %15 = vector.load %arg6[%c0_9, %c0_10] : memref<1x32xf32, #tpu.memory_space<vmem>>, vector<1x32xf32>
    %cst_11 = arith.constant dense<0.000000e+00> : vector<16xf32>
    %16 = vector.multi_reduction <add>, %13, %cst_11 [1] : vector<16x32xf32> to vector<16xf32>
    %17 = vector.shape_cast %16 : vector<16xf32> to vector<16x1xf32>
    %cst_12 = arith.constant 3.200000e+01 : f32
    %18 = vector.broadcast %cst_12 : f32 to vector<16x1xf32>
    %19 = arith.divf %17, %18 : vector<16x1xf32>
    %20 = vector.broadcast %19 : vector<16x1xf32> to vector<16x32xf32>
    %21 = arith.subf %13, %20 : vector<16x32xf32>
    %22 = arith.mulf %21, %21 : vector<16x32xf32>
    %cst_13 = arith.constant dense<0.000000e+00> : vector<16xf32>
    %23 = vector.multi_reduction <add>, %22, %cst_13 [1] : vector<16x32xf32> to vector<16xf32>
    %24 = vector.shape_cast %23 : vector<16xf32> to vector<16x1xf32>
    %cst_14 = arith.constant 3.200000e+01 : f32
    %25 = vector.broadcast %cst_14 : f32 to vector<16x1xf32>
    %26 = arith.divf %24, %25 : vector<16x1xf32>
    %27 = vector.broadcast %19 : vector<16x1xf32> to vector<16x32xf32>
    %28 = arith.subf %13, %27 : vector<16x32xf32>
    %cst_15 = arith.constant 9.99999974E-6 : f32
    %29 = vector.broadcast %cst_15 : f32 to vector<16x1xf32>
    %30 = arith.addf %26, %29 : vector<16x1xf32>
    %31 = math.rsqrt %30 : vector<16x1xf32>
    %32 = vector.broadcast %31 : vector<16x1xf32> to vector<16x32xf32>
    %33 = arith.mulf %28, %32 : vector<16x32xf32>
    %34 = vector.broadcast %14 : vector<1x32xf32> to vector<16x32xf32>
    %35 = arith.mulf %33, %34 : vector<16x32xf32>
    %36 = vector.broadcast %15 : vector<1x32xf32> to vector<16x32xf32>
    %37 = arith.addf %35, %36 : vector<16x32xf32>
    %c0_16 = arith.constant 0 : index
    %c0_17 = arith.constant 0 : index
    %38 = vector.load %arg1[%c0_16, %c0_17] : memref<2x8xf32, #tpu.memory_space<vmem>>, vector<2x8xf32>
    %39 = arith.truncf %37 : vector<16x32xf32> to vector<16x32xbf16>
    %c0_18 = arith.constant 0 : index
    %c0_19 = arith.constant 0 : index
    %40 = vector.load %arg7[%c0_18, %c0_19] : memref<32x96xbf16, #tpu.memory_space<vmem>>, vector<32x96xbf16>
    %cst_20 = arith.constant dense<0.000000e+00> : vector<16x96xf32>
    %41 = tpu.matmul %39, %40, %cst_20 {dimension_numbers = #tpu.dot_dimension_numbers<[1], [0], [0], [1], [0, 0, 1, 1], [], []>} : vector<16x32xbf16>, vector<32x96xbf16>, vector<16x96xf32> -> vector<16x96xf32>
    %c0_21 = arith.constant 0 : index
    %c0_22 = arith.constant 0 : index
    %42 = vector.load %arg8[%c0_21, %c0_22] : memref<1x96xf32, #tpu.memory_space<vmem>>, vector<1x96xf32>
    %43 = vector.broadcast %42 : vector<1x96xf32> to vector<16x96xf32>
    %44 = arith.addf %41, %43 : vector<16x96xf32>
    %45 = vector.extract_strided_slice %38 {offsets = [0, 0], sizes = [1, 8], strides = [1, 1]} : vector<2x8xf32> to vector<1x8xf32>
    %46 = vector.extract_strided_slice %44 {offsets = [0, 0], sizes = [8, 8], strides = [1, 1]} : vector<16x96xf32> to vector<8x8xf32>
    %47 = vector.extract_strided_slice %44 {offsets = [0, 32], sizes = [8, 8], strides = [1, 1]} : vector<16x96xf32> to vector<8x8xf32>
    %48 = vector.extract_strided_slice %44 {offsets = [0, 64], sizes = [8, 8], strides = [1, 1]} : vector<16x96xf32> to vector<8x8xf32>
    %49 = arith.truncf %46 : vector<8x8xf32> to vector<8x8xbf16>
    %50 = arith.truncf %47 : vector<8x8xf32> to vector<8x8xbf16>
    %cst_23 = arith.constant dense<0.000000e+00> : vector<8x8xf32>
    %51 = tpu.matmul %49, %50, %cst_23 {dimension_numbers = #tpu.dot_dimension_numbers<[1], [1], [0], [0], [0, 0, 1, 0], [], []>} : vector<8x8xbf16>, vector<8x8xbf16>, vector<8x8xf32> -> vector<8x8xf32>
    %cst_24 = arith.constant 0.353553385 : f32
    %52 = vector.broadcast %cst_24 : f32 to vector<8x8xf32>
    %53 = arith.mulf %51, %52 : vector<8x8xf32>
    %54 = vector.broadcast %45 : vector<1x8xf32> to vector<8x8xf32>
    %55 = arith.addf %53, %54 : vector<8x8xf32>
    %cst_25 = arith.constant dense<0xFF800000> : vector<8xf32>
    %56 = vector.multi_reduction <maximumf>, %55, %cst_25 [1] : vector<8x8xf32> to vector<8xf32>
    %57 = vector.shape_cast %56 : vector<8xf32> to vector<8x1xf32>
    %58 = vector.broadcast %57 : vector<8x1xf32> to vector<8x8xf32>
    %59 = arith.subf %55, %58 : vector<8x8xf32>
    %60 = math.exp %59 : vector<8x8xf32>
    %cst_26 = arith.constant dense<0.000000e+00> : vector<8xf32>
    %61 = vector.multi_reduction <add>, %60, %cst_26 [1] : vector<8x8xf32> to vector<8xf32>
    %62 = vector.shape_cast %61 : vector<8xf32> to vector<8x1xf32>
    %63 = tpu.reciprocal %62 {approx = true} : vector<8x1xf32> -> vector<8x1xf32>
    %64 = vector.broadcast %63 : vector<8x1xf32> to vector<8x8xf32>
    %65 = arith.mulf %60, %64 : vector<8x8xf32>
    %66 = arith.truncf %65 : vector<8x8xf32> to vector<8x8xbf16>
    %67 = arith.truncf %48 : vector<8x8xf32> to vector<8x8xbf16>
    %cst_27 = arith.constant dense<0.000000e+00> : vector<8x8xf32>
    %68 = tpu.matmul %66, %67, %cst_27 {dimension_numbers = #tpu.dot_dimension_numbers<[1], [0], [0], [1], [0, 0, 1, 1], [], []>} : vector<8x8xbf16>, vector<8x8xbf16>, vector<8x8xf32> -> vector<8x8xf32>
    %69 = vector.extract_strided_slice %44 {offsets = [0, 8], sizes = [8, 8], strides = [1, 1]} : vector<16x96xf32> to vector<8x8xf32>
    %70 = vector.extract_strided_slice %44 {offsets = [0, 40], sizes = [8, 8], strides = [1, 1]} : vector<16x96xf32> to vector<8x8xf32>
    %71 = vector.extract_strided_slice %44 {offsets = [0, 72], sizes = [8, 8], strides = [1, 1]} : vector<16x96xf32> to vector<8x8xf32>
    %72 = arith.truncf %69 : vector<8x8xf32> to vector<8x8xbf16>
    %73 = arith.truncf %70 : vector<8x8xf32> to vector<8x8xbf16>
    %cst_28 = arith.constant dense<0.000000e+00> : vector<8x8xf32>
    %74 = tpu.matmul %72, %73, %cst_28 {dimension_numbers = #tpu.dot_dimension_numbers<[1], [1], [0], [0], [0, 0, 1, 0], [], []>} : vector<8x8xbf16>, vector<8x8xbf16>, vector<8x8xf32> -> vector<8x8xf32>
    %cst_29 = arith.constant 0.353553385 : f32
    %75 = vector.broadcast %cst_29 : f32 to vector<8x8xf32>
    %76 = arith.mulf %74, %75 : vector<8x8xf32>
    %77 = vector.broadcast %45 : vector<1x8xf32> to vector<8x8xf32>
    %78 = arith.addf %76, %77 : vector<8x8xf32>
    %cst_30 = arith.constant dense<0xFF800000> : vector<8xf32>
    %79 = vector.multi_reduction <maximumf>, %78, %cst_30 [1] : vector<8x8xf32> to vector<8xf32>
    %80 = vector.shape_cast %79 : vector<8xf32> to vector<8x1xf32>
    %81 = vector.broadcast %80 : vector<8x1xf32> to vector<8x8xf32>
    %82 = arith.subf %78, %81 : vector<8x8xf32>
    %83 = math.exp %82 : vector<8x8xf32>
    %cst_31 = arith.constant dense<0.000000e+00> : vector<8xf32>
    %84 = vector.multi_reduction <add>, %83, %cst_31 [1] : vector<8x8xf32> to vector<8xf32>
    %85 = vector.shape_cast %84 : vector<8xf32> to vector<8x1xf32>
    %86 = tpu.reciprocal %85 {approx = true} : vector<8x1xf32> -> vector<8x1xf32>
    %87 = vector.broadcast %86 : vector<8x1xf32> to vector<8x8xf32>
    %88 = arith.mulf %83, %87 : vector<8x8xf32>
    %89 = arith.truncf %88 : vector<8x8xf32> to vector<8x8xbf16>
    %90 = arith.truncf %71 : vector<8x8xf32> to vector<8x8xbf16>
    %cst_32 = arith.constant dense<0.000000e+00> : vector<8x8xf32>
    %91 = tpu.matmul %89, %90, %cst_32 {dimension_numbers = #tpu.dot_dimension_numbers<[1], [0], [0], [1], [0, 0, 1, 1], [], []>} : vector<8x8xbf16>, vector<8x8xbf16>, vector<8x8xf32> -> vector<8x8xf32>
    %92 = vector.extract_strided_slice %44 {offsets = [0, 16], sizes = [8, 8], strides = [1, 1]} : vector<16x96xf32> to vector<8x8xf32>
    %93 = vector.extract_strided_slice %44 {offsets = [0, 48], sizes = [8, 8], strides = [1, 1]} : vector<16x96xf32> to vector<8x8xf32>
    %94 = vector.extract_strided_slice %44 {offsets = [0, 80], sizes = [8, 8], strides = [1, 1]} : vector<16x96xf32> to vector<8x8xf32>
    %95 = arith.truncf %92 : vector<8x8xf32> to vector<8x8xbf16>
    %96 = arith.truncf %93 : vector<8x8xf32> to vector<8x8xbf16>
    %cst_33 = arith.constant dense<0.000000e+00> : vector<8x8xf32>
    %97 = tpu.matmul %95, %96, %cst_33 {dimension_numbers = #tpu.dot_dimension_numbers<[1], [1], [0], [0], [0, 0, 1, 0], [], []>} : vector<8x8xbf16>, vector<8x8xbf16>, vector<8x8xf32> -> vector<8x8xf32>
    %cst_34 = arith.constant 0.353553385 : f32
    %98 = vector.broadcast %cst_34 : f32 to vector<8x8xf32>
    %99 = arith.mulf %97, %98 : vector<8x8xf32>
    %100 = vector.broadcast %45 : vector<1x8xf32> to vector<8x8xf32>
    %101 = arith.addf %99, %100 : vector<8x8xf32>
    %cst_35 = arith.constant dense<0xFF800000> : vector<8xf32>
    %102 = vector.multi_reduction <maximumf>, %101, %cst_35 [1] : vector<8x8xf32> to vector<8xf32>
    %103 = vector.shape_cast %102 : vector<8xf32> to vector<8x1xf32>
    %104 = vector.broadcast %103 : vector<8x1xf32> to vector<8x8xf32>
    %105 = arith.subf %101, %104 : vector<8x8xf32>
    %106 = math.exp %105 : vector<8x8xf32>
    %cst_36 = arith.constant dense<0.000000e+00> : vector<8xf32>
    %107 = vector.multi_reduction <add>, %106, %cst_36 [1] : vector<8x8xf32> to vector<8xf32>
    %108 = vector.shape_cast %107 : vector<8xf32> to vector<8x1xf32>
    %109 = tpu.reciprocal %108 {approx = true} : vector<8x1xf32> -> vector<8x1xf32>
    %110 = vector.broadcast %109 : vector<8x1xf32> to vector<8x8xf32>
    %111 = arith.mulf %106, %110 : vector<8x8xf32>
    %112 = arith.truncf %111 : vector<8x8xf32> to vector<8x8xbf16>
    %113 = arith.truncf %94 : vector<8x8xf32> to vector<8x8xbf16>
    %cst_37 = arith.constant dense<0.000000e+00> : vector<8x8xf32>
    %114 = tpu.matmul %112, %113, %cst_37 {dimension_numbers = #tpu.dot_dimension_numbers<[1], [0], [0], [1], [0, 0, 1, 1], [], []>} : vector<8x8xbf16>, vector<8x8xbf16>, vector<8x8xf32> -> vector<8x8xf32>
    %115 = vector.extract_strided_slice %44 {offsets = [0, 24], sizes = [8, 8], strides = [1, 1]} : vector<16x96xf32> to vector<8x8xf32>
    %116 = vector.extract_strided_slice %44 {offsets = [0, 56], sizes = [8, 8], strides = [1, 1]} : vector<16x96xf32> to vector<8x8xf32>
    %117 = vector.extract_strided_slice %44 {offsets = [0, 88], sizes = [8, 8], strides = [1, 1]} : vector<16x96xf32> to vector<8x8xf32>
    %118 = arith.truncf %115 : vector<8x8xf32> to vector<8x8xbf16>
    %119 = arith.truncf %116 : vector<8x8xf32> to vector<8x8xbf16>
    %cst_38 = arith.constant dense<0.000000e+00> : vector<8x8xf32>
    %120 = tpu.matmul %118, %119, %cst_38 {dimension_numbers = #tpu.dot_dimension_numbers<[1], [1], [0], [0], [0, 0, 1, 0], [], []>} : vector<8x8xbf16>, vector<8x8xbf16>, vector<8x8xf32> -> vector<8x8xf32>
    %cst_39 = arith.constant 0.353553385 : f32
    %121 = vector.broadcast %cst_39 : f32 to vector<8x8xf32>
    %122 = arith.mulf %120, %121 : vector<8x8xf32>
    %123 = vector.broadcast %45 : vector<1x8xf32> to vector<8x8xf32>
    %124 = arith.addf %122, %123 : vector<8x8xf32>
    %cst_40 = arith.constant dense<0xFF800000> : vector<8xf32>
    %125 = vector.multi_reduction <maximumf>, %124, %cst_40 [1] : vector<8x8xf32> to vector<8xf32>
    %126 = vector.shape_cast %125 : vector<8xf32> to vector<8x1xf32>
    %127 = vector.broadcast %126 : vector<8x1xf32> to vector<8x8xf32>
    %128 = arith.subf %124, %127 : vector<8x8xf32>
    %129 = math.exp %128 : vector<8x8xf32>
    %cst_41 = arith.constant dense<0.000000e+00> : vector<8xf32>
    %130 = vector.multi_reduction <add>, %129, %cst_41 [1] : vector<8x8xf32> to vector<8xf32>
    %131 = vector.shape_cast %130 : vector<8xf32> to vector<8x1xf32>
    %132 = tpu.reciprocal %131 {approx = true} : vector<8x1xf32> -> vector<8x1xf32>
    %133 = vector.broadcast %132 : vector<8x1xf32> to vector<8x8xf32>
    %134 = arith.mulf %129, %133 : vector<8x8xf32>
    %135 = arith.truncf %134 : vector<8x8xf32> to vector<8x8xbf16>
    %136 = arith.truncf %117 : vector<8x8xf32> to vector<8x8xbf16>
    %cst_42 = arith.constant dense<0.000000e+00> : vector<8x8xf32>
    %137 = tpu.matmul %135, %136, %cst_42 {dimension_numbers = #tpu.dot_dimension_numbers<[1], [0], [0], [1], [0, 0, 1, 1], [], []>} : vector<8x8xbf16>, vector<8x8xbf16>, vector<8x8xf32> -> vector<8x8xf32>
    %138 = tpu.concatenate %68, %91, %114, %137 in 1 : vector<8x8xf32>, vector<8x8xf32>, vector<8x8xf32>, vector<8x8xf32> -> vector<8x32xf32>
    %139 = vector.extract_strided_slice %38 {offsets = [1, 0], sizes = [1, 8], strides = [1, 1]} : vector<2x8xf32> to vector<1x8xf32>
    %140 = vector.extract_strided_slice %44 {offsets = [8, 0], sizes = [8, 8], strides = [1, 1]} : vector<16x96xf32> to vector<8x8xf32>
    %141 = vector.extract_strided_slice %44 {offsets = [8, 32], sizes = [8, 8], strides = [1, 1]} : vector<16x96xf32> to vector<8x8xf32>
    %142 = vector.extract_strided_slice %44 {offsets = [8, 64], sizes = [8, 8], strides = [1, 1]} : vector<16x96xf32> to vector<8x8xf32>
    %143 = arith.truncf %140 : vector<8x8xf32> to vector<8x8xbf16>
    %144 = arith.truncf %141 : vector<8x8xf32> to vector<8x8xbf16>
    %cst_43 = arith.constant dense<0.000000e+00> : vector<8x8xf32>
    %145 = tpu.matmul %143, %144, %cst_43 {dimension_numbers = #tpu.dot_dimension_numbers<[1], [1], [0], [0], [0, 0, 1, 0], [], []>} : vector<8x8xbf16>, vector<8x8xbf16>, vector<8x8xf32> -> vector<8x8xf32>
    %cst_44 = arith.constant 0.353553385 : f32
    %146 = vector.broadcast %cst_44 : f32 to vector<8x8xf32>
    %147 = arith.mulf %145, %146 : vector<8x8xf32>
    %148 = vector.broadcast %139 : vector<1x8xf32> to vector<8x8xf32>
    %149 = arith.addf %147, %148 : vector<8x8xf32>
    %cst_45 = arith.constant dense<0xFF800000> : vector<8xf32>
    %150 = vector.multi_reduction <maximumf>, %149, %cst_45 [1] : vector<8x8xf32> to vector<8xf32>
    %151 = vector.shape_cast %150 : vector<8xf32> to vector<8x1xf32>
    %152 = vector.broadcast %151 : vector<8x1xf32> to vector<8x8xf32>
    %153 = arith.subf %149, %152 : vector<8x8xf32>
    %154 = math.exp %153 : vector<8x8xf32>
    %cst_46 = arith.constant dense<0.000000e+00> : vector<8xf32>
    %155 = vector.multi_reduction <add>, %154, %cst_46 [1] : vector<8x8xf32> to vector<8xf32>
    %156 = vector.shape_cast %155 : vector<8xf32> to vector<8x1xf32>
    %157 = tpu.reciprocal %156 {approx = true} : vector<8x1xf32> -> vector<8x1xf32>
    %158 = vector.broadcast %157 : vector<8x1xf32> to vector<8x8xf32>
    %159 = arith.mulf %154, %158 : vector<8x8xf32>
    %160 = arith.truncf %159 : vector<8x8xf32> to vector<8x8xbf16>
    %161 = arith.truncf %142 : vector<8x8xf32> to vector<8x8xbf16>
    %cst_47 = arith.constant dense<0.000000e+00> : vector<8x8xf32>
    %162 = tpu.matmul %160, %161, %cst_47 {dimension_numbers = #tpu.dot_dimension_numbers<[1], [0], [0], [1], [0, 0, 1, 1], [], []>} : vector<8x8xbf16>, vector<8x8xbf16>, vector<8x8xf32> -> vector<8x8xf32>
    %163 = vector.extract_strided_slice %44 {offsets = [8, 8], sizes = [8, 8], strides = [1, 1]} : vector<16x96xf32> to vector<8x8xf32>
    %164 = vector.extract_strided_slice %44 {offsets = [8, 40], sizes = [8, 8], strides = [1, 1]} : vector<16x96xf32> to vector<8x8xf32>
    %165 = vector.extract_strided_slice %44 {offsets = [8, 72], sizes = [8, 8], strides = [1, 1]} : vector<16x96xf32> to vector<8x8xf32>
    %166 = arith.truncf %163 : vector<8x8xf32> to vector<8x8xbf16>
    %167 = arith.truncf %164 : vector<8x8xf32> to vector<8x8xbf16>
    %cst_48 = arith.constant dense<0.000000e+00> : vector<8x8xf32>
    %168 = tpu.matmul %166, %167, %cst_48 {dimension_numbers = #tpu.dot_dimension_numbers<[1], [1], [0], [0], [0, 0, 1, 0], [], []>} : vector<8x8xbf16>, vector<8x8xbf16>, vector<8x8xf32> -> vector<8x8xf32>
    %cst_49 = arith.constant 0.353553385 : f32
    %169 = vector.broadcast %cst_49 : f32 to vector<8x8xf32>
    %170 = arith.mulf %168, %169 : vector<8x8xf32>
    %171 = vector.broadcast %139 : vector<1x8xf32> to vector<8x8xf32>
    %172 = arith.addf %170, %171 : vector<8x8xf32>
    %cst_50 = arith.constant dense<0xFF800000> : vector<8xf32>
    %173 = vector.multi_reduction <maximumf>, %172, %cst_50 [1] : vector<8x8xf32> to vector<8xf32>
    %174 = vector.shape_cast %173 : vector<8xf32> to vector<8x1xf32>
    %175 = vector.broadcast %174 : vector<8x1xf32> to vector<8x8xf32>
    %176 = arith.subf %172, %175 : vector<8x8xf32>
    %177 = math.exp %176 : vector<8x8xf32>
    %cst_51 = arith.constant dense<0.000000e+00> : vector<8xf32>
    %178 = vector.multi_reduction <add>, %177, %cst_51 [1] : vector<8x8xf32> to vector<8xf32>
    %179 = vector.shape_cast %178 : vector<8xf32> to vector<8x1xf32>
    %180 = tpu.reciprocal %179 {approx = true} : vector<8x1xf32> -> vector<8x1xf32>
    %181 = vector.broadcast %180 : vector<8x1xf32> to vector<8x8xf32>
    %182 = arith.mulf %177, %181 : vector<8x8xf32>
    %183 = arith.truncf %182 : vector<8x8xf32> to vector<8x8xbf16>
    %184 = arith.truncf %165 : vector<8x8xf32> to vector<8x8xbf16>
    %cst_52 = arith.constant dense<0.000000e+00> : vector<8x8xf32>
    %185 = tpu.matmul %183, %184, %cst_52 {dimension_numbers = #tpu.dot_dimension_numbers<[1], [0], [0], [1], [0, 0, 1, 1], [], []>} : vector<8x8xbf16>, vector<8x8xbf16>, vector<8x8xf32> -> vector<8x8xf32>
    %186 = vector.extract_strided_slice %44 {offsets = [8, 16], sizes = [8, 8], strides = [1, 1]} : vector<16x96xf32> to vector<8x8xf32>
    %187 = vector.extract_strided_slice %44 {offsets = [8, 48], sizes = [8, 8], strides = [1, 1]} : vector<16x96xf32> to vector<8x8xf32>
    %188 = vector.extract_strided_slice %44 {offsets = [8, 80], sizes = [8, 8], strides = [1, 1]} : vector<16x96xf32> to vector<8x8xf32>
    %189 = arith.truncf %186 : vector<8x8xf32> to vector<8x8xbf16>
    %190 = arith.truncf %187 : vector<8x8xf32> to vector<8x8xbf16>
    %cst_53 = arith.constant dense<0.000000e+00> : vector<8x8xf32>
    %191 = tpu.matmul %189, %190, %cst_53 {dimension_numbers = #tpu.dot_dimension_numbers<[1], [1], [0], [0], [0, 0, 1, 0], [], []>} : vector<8x8xbf16>, vector<8x8xbf16>, vector<8x8xf32> -> vector<8x8xf32>
    %cst_54 = arith.constant 0.353553385 : f32
    %192 = vector.broadcast %cst_54 : f32 to vector<8x8xf32>
    %193 = arith.mulf %191, %192 : vector<8x8xf32>
    %194 = vector.broadcast %139 : vector<1x8xf32> to vector<8x8xf32>
    %195 = arith.addf %193, %194 : vector<8x8xf32>
    %cst_55 = arith.constant dense<0xFF800000> : vector<8xf32>
    %196 = vector.multi_reduction <maximumf>, %195, %cst_55 [1] : vector<8x8xf32> to vector<8xf32>
    %197 = vector.shape_cast %196 : vector<8xf32> to vector<8x1xf32>
    %198 = vector.broadcast %197 : vector<8x1xf32> to vector<8x8xf32>
    %199 = arith.subf %195, %198 : vector<8x8xf32>
    %200 = math.exp %199 : vector<8x8xf32>
    %cst_56 = arith.constant dense<0.000000e+00> : vector<8xf32>
    %201 = vector.multi_reduction <add>, %200, %cst_56 [1] : vector<8x8xf32> to vector<8xf32>
    %202 = vector.shape_cast %201 : vector<8xf32> to vector<8x1xf32>
    %203 = tpu.reciprocal %202 {approx = true} : vector<8x1xf32> -> vector<8x1xf32>
    %204 = vector.broadcast %203 : vector<8x1xf32> to vector<8x8xf32>
    %205 = arith.mulf %200, %204 : vector<8x8xf32>
    %206 = arith.truncf %205 : vector<8x8xf32> to vector<8x8xbf16>
    %207 = arith.truncf %188 : vector<8x8xf32> to vector<8x8xbf16>
    %cst_57 = arith.constant dense<0.000000e+00> : vector<8x8xf32>
    %208 = tpu.matmul %206, %207, %cst_57 {dimension_numbers = #tpu.dot_dimension_numbers<[1], [0], [0], [1], [0, 0, 1, 1], [], []>} : vector<8x8xbf16>, vector<8x8xbf16>, vector<8x8xf32> -> vector<8x8xf32>
    %209 = vector.extract_strided_slice %44 {offsets = [8, 24], sizes = [8, 8], strides = [1, 1]} : vector<16x96xf32> to vector<8x8xf32>
    %210 = vector.extract_strided_slice %44 {offsets = [8, 56], sizes = [8, 8], strides = [1, 1]} : vector<16x96xf32> to vector<8x8xf32>
    %211 = vector.extract_strided_slice %44 {offsets = [8, 88], sizes = [8, 8], strides = [1, 1]} : vector<16x96xf32> to vector<8x8xf32>
    %212 = arith.truncf %209 : vector<8x8xf32> to vector<8x8xbf16>
    %213 = arith.truncf %210 : vector<8x8xf32> to vector<8x8xbf16>
    %cst_58 = arith.constant dense<0.000000e+00> : vector<8x8xf32>
    %214 = tpu.matmul %212, %213, %cst_58 {dimension_numbers = #tpu.dot_dimension_numbers<[1], [1], [0], [0], [0, 0, 1, 0], [], []>} : vector<8x8xbf16>, vector<8x8xbf16>, vector<8x8xf32> -> vector<8x8xf32>
    %cst_59 = arith.constant 0.353553385 : f32
    %215 = vector.broadcast %cst_59 : f32 to vector<8x8xf32>
    %216 = arith.mulf %214, %215 : vector<8x8xf32>
    %217 = vector.broadcast %139 : vector<1x8xf32> to vector<8x8xf32>
    %218 = arith.addf %216, %217 : vector<8x8xf32>
    %cst_60 = arith.constant dense<0xFF800000> : vector<8xf32>
    %219 = vector.multi_reduction <maximumf>, %218, %cst_60 [1] : vector<8x8xf32> to vector<8xf32>
    %220 = vector.shape_cast %219 : vector<8xf32> to vector<8x1xf32>
    %221 = vector.broadcast %220 : vector<8x1xf32> to vector<8x8xf32>
    %222 = arith.subf %218, %221 : vector<8x8xf32>
    %223 = math.exp %222 : vector<8x8xf32>
    %cst_61 = arith.constant dense<0.000000e+00> : vector<8xf32>
    %224 = vector.multi_reduction <add>, %223, %cst_61 [1] : vector<8x8xf32> to vector<8xf32>
    %225 = vector.shape_cast %224 : vector<8xf32> to vector<8x1xf32>
    %226 = tpu.reciprocal %225 {approx = true} : vector<8x1xf32> -> vector<8x1xf32>
    %227 = vector.broadcast %226 : vector<8x1xf32> to vector<8x8xf32>
    %228 = arith.mulf %223, %227 : vector<8x8xf32>
    %229 = arith.truncf %228 : vector<8x8xf32> to vector<8x8xbf16>
    %230 = arith.truncf %211 : vector<8x8xf32> to vector<8x8xbf16>
    %cst_62 = arith.constant dense<0.000000e+00> : vector<8x8xf32>
    %231 = tpu.matmul %229, %230, %cst_62 {dimension_numbers = #tpu.dot_dimension_numbers<[1], [0], [0], [1], [0, 0, 1, 1], [], []>} : vector<8x8xbf16>, vector<8x8xbf16>, vector<8x8xf32> -> vector<8x8xf32>
    %232 = tpu.concatenate %162, %185, %208, %231 in 1 : vector<8x8xf32>, vector<8x8xf32>, vector<8x8xf32>, vector<8x8xf32> -> vector<8x32xf32>
    %233 = tpu.concatenate %138, %232 in 0 : vector<8x32xf32>, vector<8x32xf32> -> vector<16x32xf32>
    %234 = arith.truncf %233 : vector<16x32xf32> to vector<16x32xbf16>
    %c0_63 = arith.constant 0 : index
    %c0_64 = arith.constant 0 : index
    %235 = vector.load %arg9[%c0_63, %c0_64] : memref<32x32xbf16, #tpu.memory_space<vmem>>, vector<32x32xbf16>
    %cst_65 = arith.constant dense<0.000000e+00> : vector<16x32xf32>
    %236 = tpu.matmul %234, %235, %cst_65 {dimension_numbers = #tpu.dot_dimension_numbers<[1], [0], [0], [1], [0, 0, 1, 1], [], []>} : vector<16x32xbf16>, vector<32x32xbf16>, vector<16x32xf32> -> vector<16x32xf32>
    %c0_66 = arith.constant 0 : index
    %c0_67 = arith.constant 0 : index
    %237 = vector.load %arg10[%c0_66, %c0_67] : memref<1x32xf32, #tpu.memory_space<vmem>>, vector<1x32xf32>
    %238 = vector.broadcast %237 : vector<1x32xf32> to vector<16x32xf32>
    %239 = arith.addf %236, %238 : vector<16x32xf32>
    %240 = arith.addf %37, %239 : vector<16x32xf32>
    %c0_68 = arith.constant 0 : index
    %c0_69 = arith.constant 0 : index
    %241 = vector.load %arg11[%c0_68, %c0_69] : memref<1x32xf32, #tpu.memory_space<vmem>>, vector<1x32xf32>
    %c0_70 = arith.constant 0 : index
    %c0_71 = arith.constant 0 : index
    %242 = vector.load %arg12[%c0_70, %c0_71] : memref<1x32xf32, #tpu.memory_space<vmem>>, vector<1x32xf32>
    %cst_72 = arith.constant dense<0.000000e+00> : vector<16xf32>
    %243 = vector.multi_reduction <add>, %240, %cst_72 [1] : vector<16x32xf32> to vector<16xf32>
    %244 = vector.shape_cast %243 : vector<16xf32> to vector<16x1xf32>
    %cst_73 = arith.constant 3.200000e+01 : f32
    %245 = vector.broadcast %cst_73 : f32 to vector<16x1xf32>
    %246 = arith.divf %244, %245 : vector<16x1xf32>
    %247 = vector.broadcast %246 : vector<16x1xf32> to vector<16x32xf32>
    %248 = arith.subf %240, %247 : vector<16x32xf32>
    %249 = arith.mulf %248, %248 : vector<16x32xf32>
    %cst_74 = arith.constant dense<0.000000e+00> : vector<16xf32>
    %250 = vector.multi_reduction <add>, %249, %cst_74 [1] : vector<16x32xf32> to vector<16xf32>
    %251 = vector.shape_cast %250 : vector<16xf32> to vector<16x1xf32>
    %cst_75 = arith.constant 3.200000e+01 : f32
    %252 = vector.broadcast %cst_75 : f32 to vector<16x1xf32>
    %253 = arith.divf %251, %252 : vector<16x1xf32>
    %254 = vector.broadcast %246 : vector<16x1xf32> to vector<16x32xf32>
    %255 = arith.subf %240, %254 : vector<16x32xf32>
    %cst_76 = arith.constant 9.99999974E-6 : f32
    %256 = vector.broadcast %cst_76 : f32 to vector<16x1xf32>
    %257 = arith.addf %253, %256 : vector<16x1xf32>
    %258 = math.rsqrt %257 : vector<16x1xf32>
    %259 = vector.broadcast %258 : vector<16x1xf32> to vector<16x32xf32>
    %260 = arith.mulf %255, %259 : vector<16x32xf32>
    %261 = vector.broadcast %241 : vector<1x32xf32> to vector<16x32xf32>
    %262 = arith.mulf %260, %261 : vector<16x32xf32>
    %263 = vector.broadcast %242 : vector<1x32xf32> to vector<16x32xf32>
    %264 = arith.addf %262, %263 : vector<16x32xf32>
    %265 = arith.truncf %264 : vector<16x32xf32> to vector<16x32xbf16>
    %c0_77 = arith.constant 0 : index
    %c0_78 = arith.constant 0 : index
    %266 = vector.load %arg13[%c0_77, %c0_78] : memref<32x64xbf16, #tpu.memory_space<vmem>>, vector<32x64xbf16>
    %cst_79 = arith.constant dense<0.000000e+00> : vector<16x64xf32>
    %267 = tpu.matmul %265, %266, %cst_79 {dimension_numbers = #tpu.dot_dimension_numbers<[1], [0], [0], [1], [0, 0, 1, 1], [], []>} : vector<16x32xbf16>, vector<32x64xbf16>, vector<16x64xf32> -> vector<16x64xf32>
    %c0_80 = arith.constant 0 : index
    %c0_81 = arith.constant 0 : index
    %268 = vector.load %arg14[%c0_80, %c0_81] : memref<1x64xf32, #tpu.memory_space<vmem>>, vector<1x64xf32>
    %269 = vector.broadcast %268 : vector<1x64xf32> to vector<16x64xf32>
    %270 = arith.addf %267, %269 : vector<16x64xf32>
    %271 = arith.mulf %270, %270 : vector<16x64xf32>
    %272 = arith.mulf %270, %271 : vector<16x64xf32>
    %cst_82 = arith.constant 4.471500e-02 : f32
    %273 = vector.broadcast %cst_82 : f32 to vector<16x64xf32>
    %274 = arith.mulf %273, %272 : vector<16x64xf32>
    %275 = arith.addf %270, %274 : vector<16x64xf32>
    %cst_83 = arith.constant 0.797884583 : f32
    %276 = vector.broadcast %cst_83 : f32 to vector<16x64xf32>
    %277 = arith.mulf %276, %275 : vector<16x64xf32>
    %278 = math.tanh %277 : vector<16x64xf32>
    %cst_84 = arith.constant 1.000000e+00 : f32
    %279 = vector.broadcast %cst_84 : f32 to vector<16x64xf32>
    %280 = arith.addf %279, %278 : vector<16x64xf32>
    %cst_85 = arith.constant 5.000000e-01 : f32
    %281 = vector.broadcast %cst_85 : f32 to vector<16x64xf32>
    %282 = arith.mulf %281, %280 : vector<16x64xf32>
    %283 = arith.mulf %270, %282 : vector<16x64xf32>
    %284 = arith.truncf %283 : vector<16x64xf32> to vector<16x64xbf16>
    %c0_86 = arith.constant 0 : index
    %c0_87 = arith.constant 0 : index
    %285 = vector.load %arg15[%c0_86, %c0_87] : memref<64x32xbf16, #tpu.memory_space<vmem>>, vector<64x32xbf16>
    %cst_88 = arith.constant dense<0.000000e+00> : vector<16x32xf32>
    %286 = tpu.matmul %284, %285, %cst_88 {dimension_numbers = #tpu.dot_dimension_numbers<[1], [0], [0], [1], [0, 0, 1, 1], [], []>} : vector<16x64xbf16>, vector<64x32xbf16>, vector<16x32xf32> -> vector<16x32xf32>
    %c0_89 = arith.constant 0 : index
    %c0_90 = arith.constant 0 : index
    %287 = vector.load %arg16[%c0_89, %c0_90] : memref<1x32xf32, #tpu.memory_space<vmem>>, vector<1x32xf32>
    %288 = vector.broadcast %287 : vector<1x32xf32> to vector<16x32xf32>
    %289 = arith.addf %286, %288 : vector<16x32xf32>
    %290 = arith.addf %264, %289 : vector<16x32xf32>
    %c0_91 = arith.constant 0 : index
    %c0_92 = arith.constant 0 : index
    %291 = vector.load %arg17[%c0_91, %c0_92] : memref<1x32xf32, #tpu.memory_space<vmem>>, vector<1x32xf32>
    %c0_93 = arith.constant 0 : index
    %c0_94 = arith.constant 0 : index
    %292 = vector.load %arg18[%c0_93, %c0_94] : memref<1x32xf32, #tpu.memory_space<vmem>>, vector<1x32xf32>
    %cst_95 = arith.constant dense<0.000000e+00> : vector<16xf32>
    %293 = vector.multi_reduction <add>, %290, %cst_95 [1] : vector<16x32xf32> to vector<16xf32>
    %294 = vector.shape_cast %293 : vector<16xf32> to vector<16x1xf32>
    %cst_96 = arith.constant 3.200000e+01 : f32
    %295 = vector.broadcast %cst_96 : f32 to vector<16x1xf32>
    %296 = arith.divf %294, %295 : vector<16x1xf32>
    %297 = vector.broadcast %296 : vector<16x1xf32> to vector<16x32xf32>
    %298 = arith.subf %290, %297 : vector<16x32xf32>
    %299 = arith.mulf %298, %298 : vector<16x32xf32>
    %cst_97 = arith.constant dense<0.000000e+00> : vector<16xf32>
    %300 = vector.multi_reduction <add>, %299, %cst_97 [1] : vector<16x32xf32> to vector<16xf32>
    %301 = vector.shape_cast %300 : vector<16xf32> to vector<16x1xf32>
    %cst_98 = arith.constant 3.200000e+01 : f32
    %302 = vector.broadcast %cst_98 : f32 to vector<16x1xf32>
    %303 = arith.divf %301, %302 : vector<16x1xf32>
    %304 = vector.broadcast %296 : vector<16x1xf32> to vector<16x32xf32>
    %305 = arith.subf %290, %304 : vector<16x32xf32>
    %cst_99 = arith.constant 9.99999974E-6 : f32
    %306 = vector.broadcast %cst_99 : f32 to vector<16x1xf32>
    %307 = arith.addf %303, %306 : vector<16x1xf32>
    %308 = math.rsqrt %307 : vector<16x1xf32>
    %309 = vector.broadcast %308 : vector<16x1xf32> to vector<16x32xf32>
    %310 = arith.mulf %305, %309 : vector<16x32xf32>
    %311 = vector.broadcast %291 : vector<1x32xf32> to vector<16x32xf32>
    %312 = arith.mulf %310, %311 : vector<16x32xf32>
    %313 = vector.broadcast %292 : vector<1x32xf32> to vector<16x32xf32>
    %314 = arith.addf %312, %313 : vector<16x32xf32>
    %315 = arith.truncf %314 : vector<16x32xf32> to vector<16x32xbf16>
    %c0_100 = arith.constant 0 : index
    %c0_101 = arith.constant 0 : index
    %316 = vector.load %arg19[%c0_100, %c0_101] : memref<32x96xbf16, #tpu.memory_space<vmem>>, vector<32x96xbf16>
    %cst_102 = arith.constant dense<0.000000e+00> : vector<16x96xf32>
    %317 = tpu.matmul %315, %316, %cst_102 {dimension_numbers = #tpu.dot_dimension_numbers<[1], [0], [0], [1], [0, 0, 1, 1], [], []>} : vector<16x32xbf16>, vector<32x96xbf16>, vector<16x96xf32> -> vector<16x96xf32>
    %c0_103 = arith.constant 0 : index
    %c0_104 = arith.constant 0 : index
    %318 = vector.load %arg20[%c0_103, %c0_104] : memref<1x96xf32, #tpu.memory_space<vmem>>, vector<1x96xf32>
    %319 = vector.broadcast %318 : vector<1x96xf32> to vector<16x96xf32>
    %320 = arith.addf %317, %319 : vector<16x96xf32>
    %321 = vector.extract_strided_slice %38 {offsets = [0, 0], sizes = [1, 8], strides = [1, 1]} : vector<2x8xf32> to vector<1x8xf32>
    %322 = vector.extract_strided_slice %320 {offsets = [0, 0], sizes = [8, 8], strides = [1, 1]} : vector<16x96xf32> to vector<8x8xf32>
    %323 = vector.extract_strided_slice %320 {offsets = [0, 32], sizes = [8, 8], strides = [1, 1]} : vector<16x96xf32> to vector<8x8xf32>
    %324 = vector.extract_strided_slice %320 {offsets = [0, 64], sizes = [8, 8], strides = [1, 1]} : vector<16x96xf32> to vector<8x8xf32>
    %325 = arith.truncf %322 : vector<8x8xf32> to vector<8x8xbf16>
    %326 = arith.truncf %323 : vector<8x8xf32> to vector<8x8xbf16>
    %cst_105 = arith.constant dense<0.000000e+00> : vector<8x8xf32>
    %327 = tpu.matmul %325, %326, %cst_105 {dimension_numbers = #tpu.dot_dimension_numbers<[1], [1], [0], [0], [0, 0, 1, 0], [], []>} : vector<8x8xbf16>, vector<8x8xbf16>, vector<8x8xf32> -> vector<8x8xf32>
    %cst_106 = arith.constant 0.353553385 : f32
    %328 = vector.broadcast %cst_106 : f32 to vector<8x8xf32>
    %329 = arith.mulf %327, %328 : vector<8x8xf32>
    %330 = vector.broadcast %321 : vector<1x8xf32> to vector<8x8xf32>
    %331 = arith.addf %329, %330 : vector<8x8xf32>
    %cst_107 = arith.constant dense<0xFF800000> : vector<8xf32>
    %332 = vector.multi_reduction <maximumf>, %331, %cst_107 [1] : vector<8x8xf32> to vector<8xf32>
    %333 = vector.shape_cast %332 : vector<8xf32> to vector<8x1xf32>
    %334 = vector.broadcast %333 : vector<8x1xf32> to vector<8x8xf32>
    %335 = arith.subf %331, %334 : vector<8x8xf32>
    %336 = math.exp %335 : vector<8x8xf32>
    %cst_108 = arith.constant dense<0.000000e+00> : vector<8xf32>
    %337 = vector.multi_reduction <add>, %336, %cst_108 [1] : vector<8x8xf32> to vector<8xf32>
    %338 = vector.shape_cast %337 : vector<8xf32> to vector<8x1xf32>
    %339 = tpu.reciprocal %338 {approx = true} : vector<8x1xf32> -> vector<8x1xf32>
    %340 = vector.broadcast %339 : vector<8x1xf32> to vector<8x8xf32>
    %341 = arith.mulf %336, %340 : vector<8x8xf32>
    %342 = arith.truncf %341 : vector<8x8xf32> to vector<8x8xbf16>
    %343 = arith.truncf %324 : vector<8x8xf32> to vector<8x8xbf16>
    %cst_109 = arith.constant dense<0.000000e+00> : vector<8x8xf32>
    %344 = tpu.matmul %342, %343, %cst_109 {dimension_numbers = #tpu.dot_dimension_numbers<[1], [0], [0], [1], [0, 0, 1, 1], [], []>} : vector<8x8xbf16>, vector<8x8xbf16>, vector<8x8xf32> -> vector<8x8xf32>
    %345 = vector.extract_strided_slice %320 {offsets = [0, 8], sizes = [8, 8], strides = [1, 1]} : vector<16x96xf32> to vector<8x8xf32>
    %346 = vector.extract_strided_slice %320 {offsets = [0, 40], sizes = [8, 8], strides = [1, 1]} : vector<16x96xf32> to vector<8x8xf32>
    %347 = vector.extract_strided_slice %320 {offsets = [0, 72], sizes = [8, 8], strides = [1, 1]} : vector<16x96xf32> to vector<8x8xf32>
    %348 = arith.truncf %345 : vector<8x8xf32> to vector<8x8xbf16>
    %349 = arith.truncf %346 : vector<8x8xf32> to vector<8x8xbf16>
    %cst_110 = arith.constant dense<0.000000e+00> : vector<8x8xf32>
    %350 = tpu.matmul %348, %349, %cst_110 {dimension_numbers = #tpu.dot_dimension_numbers<[1], [1], [0], [0], [0, 0, 1, 0], [], []>} : vector<8x8xbf16>, vector<8x8xbf16>, vector<8x8xf32> -> vector<8x8xf32>
    %cst_111 = arith.constant 0.353553385 : f32
    %351 = vector.broadcast %cst_111 : f32 to vector<8x8xf32>
    %352 = arith.mulf %350, %351 : vector<8x8xf32>
    %353 = vector.broadcast %321 : vector<1x8xf32> to vector<8x8xf32>
    %354 = arith.addf %352, %353 : vector<8x8xf32>
    %cst_112 = arith.constant dense<0xFF800000> : vector<8xf32>
    %355 = vector.multi_reduction <maximumf>, %354, %cst_112 [1] : vector<8x8xf32> to vector<8xf32>
    %356 = vector.shape_cast %355 : vector<8xf32> to vector<8x1xf32>
    %357 = vector.broadcast %356 : vector<8x1xf32> to vector<8x8xf32>
    %358 = arith.subf %354, %357 : vector<8x8xf32>
    %359 = math.exp %358 : vector<8x8xf32>
    %cst_113 = arith.constant dense<0.000000e+00> : vector<8xf32>
    %360 = vector.multi_reduction <add>, %359, %cst_113 [1] : vector<8x8xf32> to vector<8xf32>
    %361 = vector.shape_cast %360 : vector<8xf32> to vector<8x1xf32>
    %362 = tpu.reciprocal %361 {approx = true} : vector<8x1xf32> -> vector<8x1xf32>
    %363 = vector.broadcast %362 : vector<8x1xf32> to vector<8x8xf32>
    %364 = arith.mulf %359, %363 : vector<8x8xf32>
    %365 = arith.truncf %364 : vector<8x8xf32> to vector<8x8xbf16>
    %366 = arith.truncf %347 : vector<8x8xf32> to vector<8x8xbf16>
    %cst_114 = arith.constant dense<0.000000e+00> : vector<8x8xf32>
    %367 = tpu.matmul %365, %366, %cst_114 {dimension_numbers = #tpu.dot_dimension_numbers<[1], [0], [0], [1], [0, 0, 1, 1], [], []>} : vector<8x8xbf16>, vector<8x8xbf16>, vector<8x8xf32> -> vector<8x8xf32>
    %368 = vector.extract_strided_slice %320 {offsets = [0, 16], sizes = [8, 8], strides = [1, 1]} : vector<16x96xf32> to vector<8x8xf32>
    %369 = vector.extract_strided_slice %320 {offsets = [0, 48], sizes = [8, 8], strides = [1, 1]} : vector<16x96xf32> to vector<8x8xf32>
    %370 = vector.extract_strided_slice %320 {offsets = [0, 80], sizes = [8, 8], strides = [1, 1]} : vector<16x96xf32> to vector<8x8xf32>
    %371 = arith.truncf %368 : vector<8x8xf32> to vector<8x8xbf16>
    %372 = arith.truncf %369 : vector<8x8xf32> to vector<8x8xbf16>
    %cst_115 = arith.constant dense<0.000000e+00> : vector<8x8xf32>
    %373 = tpu.matmul %371, %372, %cst_115 {dimension_numbers = #tpu.dot_dimension_numbers<[1], [1], [0], [0], [0, 0, 1, 0], [], []>} : vector<8x8xbf16>, vector<8x8xbf16>, vector<8x8xf32> -> vector<8x8xf32>
    %cst_116 = arith.constant 0.353553385 : f32
    %374 = vector.broadcast %cst_116 : f32 to vector<8x8xf32>
    %375 = arith.mulf %373, %374 : vector<8x8xf32>
    %376 = vector.broadcast %321 : vector<1x8xf32> to vector<8x8xf32>
    %377 = arith.addf %375, %376 : vector<8x8xf32>
    %cst_117 = arith.constant dense<0xFF800000> : vector<8xf32>
    %378 = vector.multi_reduction <maximumf>, %377, %cst_117 [1] : vector<8x8xf32> to vector<8xf32>
    %379 = vector.shape_cast %378 : vector<8xf32> to vector<8x1xf32>
    %380 = vector.broadcast %379 : vector<8x1xf32> to vector<8x8xf32>
    %381 = arith.subf %377, %380 : vector<8x8xf32>
    %382 = math.exp %381 : vector<8x8xf32>
    %cst_118 = arith.constant dense<0.000000e+00> : vector<8xf32>
    %383 = vector.multi_reduction <add>, %382, %cst_118 [1] : vector<8x8xf32> to vector<8xf32>
    %384 = vector.shape_cast %383 : vector<8xf32> to vector<8x1xf32>
    %385 = tpu.reciprocal %384 {approx = true} : vector<8x1xf32> -> vector<8x1xf32>
    %386 = vector.broadcast %385 : vector<8x1xf32> to vector<8x8xf32>
    %387 = arith.mulf %382, %386 : vector<8x8xf32>
    %388 = arith.truncf %387 : vector<8x8xf32> to vector<8x8xbf16>
    %389 = arith.truncf %370 : vector<8x8xf32> to vector<8x8xbf16>
    %cst_119 = arith.constant dense<0.000000e+00> : vector<8x8xf32>
    %390 = tpu.matmul %388, %389, %cst_119 {dimension_numbers = #tpu.dot_dimension_numbers<[1], [0], [0], [1], [0, 0, 1, 1], [], []>} : vector<8x8xbf16>, vector<8x8xbf16>, vector<8x8xf32> -> vector<8x8xf32>
    %391 = vector.extract_strided_slice %320 {offsets = [0, 24], sizes = [8, 8], strides = [1, 1]} : vector<16x96xf32> to vector<8x8xf32>
    %392 = vector.extract_strided_slice %320 {offsets = [0, 56], sizes = [8, 8], strides = [1, 1]} : vector<16x96xf32> to vector<8x8xf32>
    %393 = vector.extract_strided_slice %320 {offsets = [0, 88], sizes = [8, 8], strides = [1, 1]} : vector<16x96xf32> to vector<8x8xf32>
    %394 = arith.truncf %391 : vector<8x8xf32> to vector<8x8xbf16>
    %395 = arith.truncf %392 : vector<8x8xf32> to vector<8x8xbf16>
    %cst_120 = arith.constant dense<0.000000e+00> : vector<8x8xf32>
    %396 = tpu.matmul %394, %395, %cst_120 {dimension_numbers = #tpu.dot_dimension_numbers<[1], [1], [0], [0], [0, 0, 1, 0], [], []>} : vector<8x8xbf16>, vector<8x8xbf16>, vector<8x8xf32> -> vector<8x8xf32>
    %cst_121 = arith.constant 0.353553385 : f32
    %397 = vector.broadcast %cst_121 : f32 to vector<8x8xf32>
    %398 = arith.mulf %396, %397 : vector<8x8xf32>
    %399 = vector.broadcast %321 : vector<1x8xf32> to vector<8x8xf32>
    %400 = arith.addf %398, %399 : vector<8x8xf32>
    %cst_122 = arith.constant dense<0xFF800000> : vector<8xf32>
    %401 = vector.multi_reduction <maximumf>, %400, %cst_122 [1] : vector<8x8xf32> to vector<8xf32>
    %402 = vector.shape_cast %401 : vector<8xf32> to vector<8x1xf32>
    %403 = vector.broadcast %402 : vector<8x1xf32> to vector<8x8xf32>
    %404 = arith.subf %400, %403 : vector<8x8xf32>
    %405 = math.exp %404 : vector<8x8xf32>
    %cst_123 = arith.constant dense<0.000000e+00> : vector<8xf32>
    %406 = vector.multi_reduction <add>, %405, %cst_123 [1] : vector<8x8xf32> to vector<8xf32>
    %407 = vector.shape_cast %406 : vector<8xf32> to vector<8x1xf32>
    %408 = tpu.reciprocal %407 {approx = true} : vector<8x1xf32> -> vector<8x1xf32>
    %409 = vector.broadcast %408 : vector<8x1xf32> to vector<8x8xf32>
    %410 = arith.mulf %405, %409 : vector<8x8xf32>
    %411 = arith.truncf %410 : vector<8x8xf32> to vector<8x8xbf16>
    %412 = arith.truncf %393 : vector<8x8xf32> to vector<8x8xbf16>
    %cst_124 = arith.constant dense<0.000000e+00> : vector<8x8xf32>
    %413 = tpu.matmul %411, %412, %cst_124 {dimension_numbers = #tpu.dot_dimension_numbers<[1], [0], [0], [1], [0, 0, 1, 1], [], []>} : vector<8x8xbf16>, vector<8x8xbf16>, vector<8x8xf32> -> vector<8x8xf32>
    %414 = tpu.concatenate %344, %367, %390, %413 in 1 : vector<8x8xf32>, vector<8x8xf32>, vector<8x8xf32>, vector<8x8xf32> -> vector<8x32xf32>
    %415 = vector.extract_strided_slice %38 {offsets = [1, 0], sizes = [1, 8], strides = [1, 1]} : vector<2x8xf32> to vector<1x8xf32>
    %416 = vector.extract_strided_slice %320 {offsets = [8, 0], sizes = [8, 8], strides = [1, 1]} : vector<16x96xf32> to vector<8x8xf32>
    %417 = vector.extract_strided_slice %320 {offsets = [8, 32], sizes = [8, 8], strides = [1, 1]} : vector<16x96xf32> to vector<8x8xf32>
    %418 = vector.extract_strided_slice %320 {offsets = [8, 64], sizes = [8, 8], strides = [1, 1]} : vector<16x96xf32> to vector<8x8xf32>
    %419 = arith.truncf %416 : vector<8x8xf32> to vector<8x8xbf16>
    %420 = arith.truncf %417 : vector<8x8xf32> to vector<8x8xbf16>
    %cst_125 = arith.constant dense<0.000000e+00> : vector<8x8xf32>
    %421 = tpu.matmul %419, %420, %cst_125 {dimension_numbers = #tpu.dot_dimension_numbers<[1], [1], [0], [0], [0, 0, 1, 0], [], []>} : vector<8x8xbf16>, vector<8x8xbf16>, vector<8x8xf32> -> vector<8x8xf32>
    %cst_126 = arith.constant 0.353553385 : f32
    %422 = vector.broadcast %cst_126 : f32 to vector<8x8xf32>
    %423 = arith.mulf %421, %422 : vector<8x8xf32>
    %424 = vector.broadcast %415 : vector<1x8xf32> to vector<8x8xf32>
    %425 = arith.addf %423, %424 : vector<8x8xf32>
    %cst_127 = arith.constant dense<0xFF800000> : vector<8xf32>
    %426 = vector.multi_reduction <maximumf>, %425, %cst_127 [1] : vector<8x8xf32> to vector<8xf32>
    %427 = vector.shape_cast %426 : vector<8xf32> to vector<8x1xf32>
    %428 = vector.broadcast %427 : vector<8x1xf32> to vector<8x8xf32>
    %429 = arith.subf %425, %428 : vector<8x8xf32>
    %430 = math.exp %429 : vector<8x8xf32>
    %cst_128 = arith.constant dense<0.000000e+00> : vector<8xf32>
    %431 = vector.multi_reduction <add>, %430, %cst_128 [1] : vector<8x8xf32> to vector<8xf32>
    %432 = vector.shape_cast %431 : vector<8xf32> to vector<8x1xf32>
    %433 = tpu.reciprocal %432 {approx = true} : vector<8x1xf32> -> vector<8x1xf32>
    %434 = vector.broadcast %433 : vector<8x1xf32> to vector<8x8xf32>
    %435 = arith.mulf %430, %434 : vector<8x8xf32>
    %436 = arith.truncf %435 : vector<8x8xf32> to vector<8x8xbf16>
    %437 = arith.truncf %418 : vector<8x8xf32> to vector<8x8xbf16>
    %cst_129 = arith.constant dense<0.000000e+00> : vector<8x8xf32>
    %438 = tpu.matmul %436, %437, %cst_129 {dimension_numbers = #tpu.dot_dimension_numbers<[1], [0], [0], [1], [0, 0, 1, 1], [], []>} : vector<8x8xbf16>, vector<8x8xbf16>, vector<8x8xf32> -> vector<8x8xf32>
    %439 = vector.extract_strided_slice %320 {offsets = [8, 8], sizes = [8, 8], strides = [1, 1]} : vector<16x96xf32> to vector<8x8xf32>
    %440 = vector.extract_strided_slice %320 {offsets = [8, 40], sizes = [8, 8], strides = [1, 1]} : vector<16x96xf32> to vector<8x8xf32>
    %441 = vector.extract_strided_slice %320 {offsets = [8, 72], sizes = [8, 8], strides = [1, 1]} : vector<16x96xf32> to vector<8x8xf32>
    %442 = arith.truncf %439 : vector<8x8xf32> to vector<8x8xbf16>
    %443 = arith.truncf %440 : vector<8x8xf32> to vector<8x8xbf16>
    %cst_130 = arith.constant dense<0.000000e+00> : vector<8x8xf32>
    %444 = tpu.matmul %442, %443, %cst_130 {dimension_numbers = #tpu.dot_dimension_numbers<[1], [1], [0], [0], [0, 0, 1, 0], [], []>} : vector<8x8xbf16>, vector<8x8xbf16>, vector<8x8xf32> -> vector<8x8xf32>
    %cst_131 = arith.constant 0.353553385 : f32
    %445 = vector.broadcast %cst_131 : f32 to vector<8x8xf32>
    %446 = arith.mulf %444, %445 : vector<8x8xf32>
    %447 = vector.broadcast %415 : vector<1x8xf32> to vector<8x8xf32>
    %448 = arith.addf %446, %447 : vector<8x8xf32>
    %cst_132 = arith.constant dense<0xFF800000> : vector<8xf32>
    %449 = vector.multi_reduction <maximumf>, %448, %cst_132 [1] : vector<8x8xf32> to vector<8xf32>
    %450 = vector.shape_cast %449 : vector<8xf32> to vector<8x1xf32>
    %451 = vector.broadcast %450 : vector<8x1xf32> to vector<8x8xf32>
    %452 = arith.subf %448, %451 : vector<8x8xf32>
    %453 = math.exp %452 : vector<8x8xf32>
    %cst_133 = arith.constant dense<0.000000e+00> : vector<8xf32>
    %454 = vector.multi_reduction <add>, %453, %cst_133 [1] : vector<8x8xf32> to vector<8xf32>
    %455 = vector.shape_cast %454 : vector<8xf32> to vector<8x1xf32>
    %456 = tpu.reciprocal %455 {approx = true} : vector<8x1xf32> -> vector<8x1xf32>
    %457 = vector.broadcast %456 : vector<8x1xf32> to vector<8x8xf32>
    %458 = arith.mulf %453, %457 : vector<8x8xf32>
    %459 = arith.truncf %458 : vector<8x8xf32> to vector<8x8xbf16>
    %460 = arith.truncf %441 : vector<8x8xf32> to vector<8x8xbf16>
    %cst_134 = arith.constant dense<0.000000e+00> : vector<8x8xf32>
    %461 = tpu.matmul %459, %460, %cst_134 {dimension_numbers = #tpu.dot_dimension_numbers<[1], [0], [0], [1], [0, 0, 1, 1], [], []>} : vector<8x8xbf16>, vector<8x8xbf16>, vector<8x8xf32> -> vector<8x8xf32>
    %462 = vector.extract_strided_slice %320 {offsets = [8, 16], sizes = [8, 8], strides = [1, 1]} : vector<16x96xf32> to vector<8x8xf32>
    %463 = vector.extract_strided_slice %320 {offsets = [8, 48], sizes = [8, 8], strides = [1, 1]} : vector<16x96xf32> to vector<8x8xf32>
    %464 = vector.extract_strided_slice %320 {offsets = [8, 80], sizes = [8, 8], strides = [1, 1]} : vector<16x96xf32> to vector<8x8xf32>
    %465 = arith.truncf %462 : vector<8x8xf32> to vector<8x8xbf16>
    %466 = arith.truncf %463 : vector<8x8xf32> to vector<8x8xbf16>
    %cst_135 = arith.constant dense<0.000000e+00> : vector<8x8xf32>
    %467 = tpu.matmul %465, %466, %cst_135 {dimension_numbers = #tpu.dot_dimension_numbers<[1], [1], [0], [0], [0, 0, 1, 0], [], []>} : vector<8x8xbf16>, vector<8x8xbf16>, vector<8x8xf32> -> vector<8x8xf32>
    %cst_136 = arith.constant 0.353553385 : f32
    %468 = vector.broadcast %cst_136 : f32 to vector<8x8xf32>
    %469 = arith.mulf %467, %468 : vector<8x8xf32>
    %470 = vector.broadcast %415 : vector<1x8xf32> to vector<8x8xf32>
    %471 = arith.addf %469, %470 : vector<8x8xf32>
    %cst_137 = arith.constant dense<0xFF800000> : vector<8xf32>
    %472 = vector.multi_reduction <maximumf>, %471, %cst_137 [1] : vector<8x8xf32> to vector<8xf32>
    %473 = vector.shape_cast %472 : vector<8xf32> to vector<8x1xf32>
    %474 = vector.broadcast %473 : vector<8x1xf32> to vector<8x8xf32>
    %475 = arith.subf %471, %474 : vector<8x8xf32>
    %476 = math.exp %475 : vector<8x8xf32>
    %cst_138 = arith.constant dense<0.000000e+00> : vector<8xf32>
    %477 = vector.multi_reduction <add>, %476, %cst_138 [1] : vector<8x8xf32> to vector<8xf32>
    %478 = vector.shape_cast %477 : vector<8xf32> to vector<8x1xf32>
    %479 = tpu.reciprocal %478 {approx = true} : vector<8x1xf32> -> vector<8x1xf32>
    %480 = vector.broadcast %479 : vector<8x1xf32> to vector<8x8xf32>
    %481 = arith.mulf %476, %480 : vector<8x8xf32>
    %482 = arith.truncf %481 : vector<8x8xf32> to vector<8x8xbf16>
    %483 = arith.truncf %464 : vector<8x8xf32> to vector<8x8xbf16>
    %cst_139 = arith.constant dense<0.000000e+00> : vector<8x8xf32>
    %484 = tpu.matmul %482, %483, %cst_139 {dimension_numbers = #tpu.dot_dimension_numbers<[1], [0], [0], [1], [0, 0, 1, 1], [], []>} : vector<8x8xbf16>, vector<8x8xbf16>, vector<8x8xf32> -> vector<8x8xf32>
    %485 = vector.extract_strided_slice %320 {offsets = [8, 24], sizes = [8, 8], strides = [1, 1]} : vector<16x96xf32> to vector<8x8xf32>
    %486 = vector.extract_strided_slice %320 {offsets = [8, 56], sizes = [8, 8], strides = [1, 1]} : vector<16x96xf32> to vector<8x8xf32>
    %487 = vector.extract_strided_slice %320 {offsets = [8, 88], sizes = [8, 8], strides = [1, 1]} : vector<16x96xf32> to vector<8x8xf32>
    %488 = arith.truncf %485 : vector<8x8xf32> to vector<8x8xbf16>
    %489 = arith.truncf %486 : vector<8x8xf32> to vector<8x8xbf16>
    %cst_140 = arith.constant dense<0.000000e+00> : vector<8x8xf32>
    %490 = tpu.matmul %488, %489, %cst_140 {dimension_numbers = #tpu.dot_dimension_numbers<[1], [1], [0], [0], [0, 0, 1, 0], [], []>} : vector<8x8xbf16>, vector<8x8xbf16>, vector<8x8xf32> -> vector<8x8xf32>
    %cst_141 = arith.constant 0.353553385 : f32
    %491 = vector.broadcast %cst_141 : f32 to vector<8x8xf32>
    %492 = arith.mulf %490, %491 : vector<8x8xf32>
    %493 = vector.broadcast %415 : vector<1x8xf32> to vector<8x8xf32>
    %494 = arith.addf %492, %493 : vector<8x8xf32>
    %cst_142 = arith.constant dense<0xFF800000> : vector<8xf32>
    %495 = vector.multi_reduction <maximumf>, %494, %cst_142 [1] : vector<8x8xf32> to vector<8xf32>
    %496 = vector.shape_cast %495 : vector<8xf32> to vector<8x1xf32>
    %497 = vector.broadcast %496 : vector<8x1xf32> to vector<8x8xf32>
    %498 = arith.subf %494, %497 : vector<8x8xf32>
    %499 = math.exp %498 : vector<8x8xf32>
    %cst_143 = arith.constant dense<0.000000e+00> : vector<8xf32>
    %500 = vector.multi_reduction <add>, %499, %cst_143 [1] : vector<8x8xf32> to vector<8xf32>
    %501 = vector.shape_cast %500 : vector<8xf32> to vector<8x1xf32>
    %502 = tpu.reciprocal %501 {approx = true} : vector<8x1xf32> -> vector<8x1xf32>
    %503 = vector.broadcast %502 : vector<8x1xf32> to vector<8x8xf32>
    %504 = arith.mulf %499, %503 : vector<8x8xf32>
    %505 = arith.truncf %504 : vector<8x8xf32> to vector<8x8xbf16>
    %506 = arith.truncf %487 : vector<8x8xf32> to vector<8x8xbf16>
    %cst_144 = arith.constant dense<0.000000e+00> : vector<8x8xf32>
    %507 = tpu.matmul %505, %506, %cst_144 {dimension_numbers = #tpu.dot_dimension_numbers<[1], [0], [0], [1], [0, 0, 1, 1], [], []>} : vector<8x8xbf16>, vector<8x8xbf16>, vector<8x8xf32> -> vector<8x8xf32>
    %508 = tpu.concatenate %438, %461, %484, %507 in 1 : vector<8x8xf32>, vector<8x8xf32>, vector<8x8xf32>, vector<8x8xf32> -> vector<8x32xf32>
    %509 = tpu.concatenate %414, %508 in 0 : vector<8x32xf32>, vector<8x32xf32> -> vector<16x32xf32>
    %510 = arith.truncf %509 : vector<16x32xf32> to vector<16x32xbf16>
    %c0_145 = arith.constant 0 : index
    %c0_146 = arith.constant 0 : index
    %511 = vector.load %arg21[%c0_145, %c0_146] : memref<32x32xbf16, #tpu.memory_space<vmem>>, vector<32x32xbf16>
    %cst_147 = arith.constant dense<0.000000e+00> : vector<16x32xf32>
    %512 = tpu.matmul %510, %511, %cst_147 {dimension_numbers = #tpu.dot_dimension_numbers<[1], [0], [0], [1], [0, 0, 1, 1], [], []>} : vector<16x32xbf16>, vector<32x32xbf16>, vector<16x32xf32> -> vector<16x32xf32>
    %c0_148 = arith.constant 0 : index
    %c0_149 = arith.constant 0 : index
    %513 = vector.load %arg22[%c0_148, %c0_149] : memref<1x32xf32, #tpu.memory_space<vmem>>, vector<1x32xf32>
    %514 = vector.broadcast %513 : vector<1x32xf32> to vector<16x32xf32>
    %515 = arith.addf %512, %514 : vector<16x32xf32>
    %516 = arith.addf %314, %515 : vector<16x32xf32>
    %c0_150 = arith.constant 0 : index
    %c0_151 = arith.constant 0 : index
    %517 = vector.load %arg23[%c0_150, %c0_151] : memref<1x32xf32, #tpu.memory_space<vmem>>, vector<1x32xf32>
    %c0_152 = arith.constant 0 : index
    %c0_153 = arith.constant 0 : index
    %518 = vector.load %arg24[%c0_152, %c0_153] : memref<1x32xf32, #tpu.memory_space<vmem>>, vector<1x32xf32>
    %cst_154 = arith.constant dense<0.000000e+00> : vector<16xf32>
    %519 = vector.multi_reduction <add>, %516, %cst_154 [1] : vector<16x32xf32> to vector<16xf32>
    %520 = vector.shape_cast %519 : vector<16xf32> to vector<16x1xf32>
    %cst_155 = arith.constant 3.200000e+01 : f32
    %521 = vector.broadcast %cst_155 : f32 to vector<16x1xf32>
    %522 = arith.divf %520, %521 : vector<16x1xf32>
    %523 = vector.broadcast %522 : vector<16x1xf32> to vector<16x32xf32>
    %524 = arith.subf %516, %523 : vector<16x32xf32>
    %525 = arith.mulf %524, %524 : vector<16x32xf32>
    %cst_156 = arith.constant dense<0.000000e+00> : vector<16xf32>
    %526 = vector.multi_reduction <add>, %525, %cst_156 [1] : vector<16x32xf32> to vector<16xf32>
    %527 = vector.shape_cast %526 : vector<16xf32> to vector<16x1xf32>
    %cst_157 = arith.constant 3.200000e+01 : f32
    %528 = vector.broadcast %cst_157 : f32 to vector<16x1xf32>
    %529 = arith.divf %527, %528 : vector<16x1xf32>
    %530 = vector.broadcast %522 : vector<16x1xf32> to vector<16x32xf32>
    %531 = arith.subf %516, %530 : vector<16x32xf32>
    %cst_158 = arith.constant 9.99999974E-6 : f32
    %532 = vector.broadcast %cst_158 : f32 to vector<16x1xf32>
    %533 = arith.addf %529, %532 : vector<16x1xf32>
    %534 = math.rsqrt %533 : vector<16x1xf32>
    %535 = vector.broadcast %534 : vector<16x1xf32> to vector<16x32xf32>
    %536 = arith.mulf %531, %535 : vector<16x32xf32>
    %537 = vector.broadcast %517 : vector<1x32xf32> to vector<16x32xf32>
    %538 = arith.mulf %536, %537 : vector<16x32xf32>
    %539 = vector.broadcast %518 : vector<1x32xf32> to vector<16x32xf32>
    %540 = arith.addf %538, %539 : vector<16x32xf32>
    %541 = arith.truncf %540 : vector<16x32xf32> to vector<16x32xbf16>
    %c0_159 = arith.constant 0 : index
    %c0_160 = arith.constant 0 : index
    %542 = vector.load %arg25[%c0_159, %c0_160] : memref<32x64xbf16, #tpu.memory_space<vmem>>, vector<32x64xbf16>
    %cst_161 = arith.constant dense<0.000000e+00> : vector<16x64xf32>
    %543 = tpu.matmul %541, %542, %cst_161 {dimension_numbers = #tpu.dot_dimension_numbers<[1], [0], [0], [1], [0, 0, 1, 1], [], []>} : vector<16x32xbf16>, vector<32x64xbf16>, vector<16x64xf32> -> vector<16x64xf32>
    %c0_162 = arith.constant 0 : index
    %c0_163 = arith.constant 0 : index
    %544 = vector.load %arg26[%c0_162, %c0_163] : memref<1x64xf32, #tpu.memory_space<vmem>>, vector<1x64xf32>
    %545 = vector.broadcast %544 : vector<1x64xf32> to vector<16x64xf32>
    %546 = arith.addf %543, %545 : vector<16x64xf32>
    %547 = arith.mulf %546, %546 : vector<16x64xf32>
    %548 = arith.mulf %546, %547 : vector<16x64xf32>
    %cst_164 = arith.constant 4.471500e-02 : f32
    %549 = vector.broadcast %cst_164 : f32 to vector<16x64xf32>
    %550 = arith.mulf %549, %548 : vector<16x64xf32>
    %551 = arith.addf %546, %550 : vector<16x64xf32>
    %cst_165 = arith.constant 0.797884583 : f32
    %552 = vector.broadcast %cst_165 : f32 to vector<16x64xf32>
    %553 = arith.mulf %552, %551 : vector<16x64xf32>
    %554 = math.tanh %553 : vector<16x64xf32>
    %cst_166 = arith.constant 1.000000e+00 : f32
    %555 = vector.broadcast %cst_166 : f32 to vector<16x64xf32>
    %556 = arith.addf %555, %554 : vector<16x64xf32>
    %cst_167 = arith.constant 5.000000e-01 : f32
    %557 = vector.broadcast %cst_167 : f32 to vector<16x64xf32>
    %558 = arith.mulf %557, %556 : vector<16x64xf32>
    %559 = arith.mulf %546, %558 : vector<16x64xf32>
    %560 = arith.truncf %559 : vector<16x64xf32> to vector<16x64xbf16>
    %c0_168 = arith.constant 0 : index
    %c0_169 = arith.constant 0 : index
    %561 = vector.load %arg27[%c0_168, %c0_169] : memref<64x32xbf16, #tpu.memory_space<vmem>>, vector<64x32xbf16>
    %cst_170 = arith.constant dense<0.000000e+00> : vector<16x32xf32>
    %562 = tpu.matmul %560, %561, %cst_170 {dimension_numbers = #tpu.dot_dimension_numbers<[1], [0], [0], [1], [0, 0, 1, 1], [], []>} : vector<16x64xbf16>, vector<64x32xbf16>, vector<16x32xf32> -> vector<16x32xf32>
    %c0_171 = arith.constant 0 : index
    %c0_172 = arith.constant 0 : index
    %563 = vector.load %arg28[%c0_171, %c0_172] : memref<1x32xf32, #tpu.memory_space<vmem>>, vector<1x32xf32>
    %564 = vector.broadcast %563 : vector<1x32xf32> to vector<16x32xf32>
    %565 = arith.addf %562, %564 : vector<16x32xf32>
    %566 = arith.addf %540, %565 : vector<16x32xf32>
    %c0_173 = arith.constant 0 : index
    %c0_174 = arith.constant 0 : index
    %567 = vector.load %arg29[%c0_173, %c0_174] : memref<1x32xf32, #tpu.memory_space<vmem>>, vector<1x32xf32>
    %c0_175 = arith.constant 0 : index
    %c0_176 = arith.constant 0 : index
    %568 = vector.load %arg30[%c0_175, %c0_176] : memref<1x32xf32, #tpu.memory_space<vmem>>, vector<1x32xf32>
    %cst_177 = arith.constant dense<0.000000e+00> : vector<16xf32>
    %569 = vector.multi_reduction <add>, %566, %cst_177 [1] : vector<16x32xf32> to vector<16xf32>
    %570 = vector.shape_cast %569 : vector<16xf32> to vector<16x1xf32>
    %cst_178 = arith.constant 3.200000e+01 : f32
    %571 = vector.broadcast %cst_178 : f32 to vector<16x1xf32>
    %572 = arith.divf %570, %571 : vector<16x1xf32>
    %573 = vector.broadcast %572 : vector<16x1xf32> to vector<16x32xf32>
    %574 = arith.subf %566, %573 : vector<16x32xf32>
    %575 = arith.mulf %574, %574 : vector<16x32xf32>
    %cst_179 = arith.constant dense<0.000000e+00> : vector<16xf32>
    %576 = vector.multi_reduction <add>, %575, %cst_179 [1] : vector<16x32xf32> to vector<16xf32>
    %577 = vector.shape_cast %576 : vector<16xf32> to vector<16x1xf32>
    %cst_180 = arith.constant 3.200000e+01 : f32
    %578 = vector.broadcast %cst_180 : f32 to vector<16x1xf32>
    %579 = arith.divf %577, %578 : vector<16x1xf32>
    %580 = vector.broadcast %572 : vector<16x1xf32> to vector<16x32xf32>
    %581 = arith.subf %566, %580 : vector<16x32xf32>
    %cst_181 = arith.constant 9.99999974E-6 : f32
    %582 = vector.broadcast %cst_181 : f32 to vector<16x1xf32>
    %583 = arith.addf %579, %582 : vector<16x1xf32>
    %584 = math.rsqrt %583 : vector<16x1xf32>
    %585 = vector.broadcast %584 : vector<16x1xf32> to vector<16x32xf32>
    %586 = arith.mulf %581, %585 : vector<16x32xf32>
    %587 = vector.broadcast %567 : vector<1x32xf32> to vector<16x32xf32>
    %588 = arith.mulf %586, %587 : vector<16x32xf32>
    %589 = vector.broadcast %568 : vector<1x32xf32> to vector<16x32xf32>
    %590 = arith.addf %588, %589 : vector<16x32xf32>
    %591 = vector.extract_strided_slice %590 {offsets = [0, 0], sizes = [1, 32], strides = [1, 1]} : vector<16x32xf32> to vector<1x32xf32>
    %592 = vector.extract_strided_slice %590 {offsets = [8, 0], sizes = [1, 32], strides = [1, 1]} : vector<16x32xf32> to vector<1x32xf32>
    %593 = tpu.concatenate %591, %592 in 0 : vector<1x32xf32>, vector<1x32xf32> -> vector<2x32xf32>
    %594 = arith.truncf %593 : vector<2x32xf32> to vector<2x32xbf16>
    %c0_182 = arith.constant 0 : index
    %c0_183 = arith.constant 0 : index
    %595 = vector.load %arg31[%c0_182, %c0_183] : memref<32x32xbf16, #tpu.memory_space<vmem>>, vector<32x32xbf16>
    %cst_184 = arith.constant dense<0.000000e+00> : vector<2x32xf32>
    %596 = tpu.matmul %594, %595, %cst_184 {dimension_numbers = #tpu.dot_dimension_numbers<[1], [0], [0], [1], [0, 0, 1, 1], [], []>} : vector<2x32xbf16>, vector<32x32xbf16>, vector<2x32xf32> -> vector<2x32xf32>
    %c0_185 = arith.constant 0 : index
    %c0_186 = arith.constant 0 : index
    %597 = vector.load %arg32[%c0_185, %c0_186] : memref<1x32xf32, #tpu.memory_space<vmem>>, vector<1x32xf32>
    %598 = vector.broadcast %597 : vector<1x32xf32> to vector<2x32xf32>
    %599 = arith.addf %596, %598 : vector<2x32xf32>
    %600 = math.tanh %599 : vector<2x32xf32>
    %601 = arith.truncf %600 : vector<2x32xf32> to vector<2x32xbf16>
    %c0_187 = arith.constant 0 : index
    %c0_188 = arith.constant 0 : index
    %602 = vector.load %arg33[%c0_187, %c0_188] : memref<32x512xbf16, #tpu.memory_space<vmem>>, vector<32x512xbf16>
    %cst_189 = arith.constant dense<0.000000e+00> : vector<2x512xf32>
    %603 = tpu.matmul %601, %602, %cst_189 {dimension_numbers = #tpu.dot_dimension_numbers<[1], [0], [0], [1], [0, 0, 1, 1], [], []>} : vector<2x32xbf16>, vector<32x512xbf16>, vector<2x512xf32> -> vector<2x512xf32>
    %c0_190 = arith.constant 0 : index
    %c0_191 = arith.constant 0 : index
    %604 = vector.load %arg34[%c0_190, %c0_191] : memref<1x512xf32, #tpu.memory_space<vmem>>, vector<1x512xf32>
    %605 = vector.broadcast %604 : vector<1x512xf32> to vector<2x512xf32>
    %606 = arith.addf %603, %605 : vector<2x512xf32>
    %cst_192 = arith.constant 0.000000e+00 : f32
    %607 = vector.broadcast %cst_192 : f32 to vector<2x512xf32>
    %608 = arith.maximumf %606, %607 : vector<2x512xf32>
    %c0_193 = arith.constant 0 : index
    %c0_194 = arith.constant 0 : index
    %609 = vector.load %arg35[%c0_193, %c0_194] : memref<1x512xf32, #tpu.memory_space<vmem>>, vector<1x512xf32>
    %c0_195 = arith.constant 0 : index
    %c0_196 = arith.constant 0 : index
    %610 = vector.load %arg36[%c0_195, %c0_196] : memref<1x512xf32, #tpu.memory_space<vmem>>, vector<1x512xf32>
    %cst_197 = arith.constant dense<0.000000e+00> : vector<2xf32>
    %611 = vector.multi_reduction <add>, %608, %cst_197 [1] : vector<2x512xf32> to vector<2xf32>
    %612 = vector.shape_cast %611 : vector<2xf32> to vector<2x1xf32>
    %cst_198 = arith.constant 5.120000e+02 : f32
    %613 = vector.broadcast %cst_198 : f32 to vector<2x1xf32>
    %614 = arith.divf %612, %613 : vector<2x1xf32>
    %615 = vector.broadcast %614 : vector<2x1xf32> to vector<2x512xf32>
    %616 = arith.subf %608, %615 : vector<2x512xf32>
    %617 = arith.mulf %616, %616 : vector<2x512xf32>
    %cst_199 = arith.constant dense<0.000000e+00> : vector<2xf32>
    %618 = vector.multi_reduction <add>, %617, %cst_199 [1] : vector<2x512xf32> to vector<2xf32>
    %619 = vector.shape_cast %618 : vector<2xf32> to vector<2x1xf32>
    %cst_200 = arith.constant 5.120000e+02 : f32
    %620 = vector.broadcast %cst_200 : f32 to vector<2x1xf32>
    %621 = arith.divf %619, %620 : vector<2x1xf32>
    %622 = vector.broadcast %614 : vector<2x1xf32> to vector<2x512xf32>
    %623 = arith.subf %608, %622 : vector<2x512xf32>
    %cst_201 = arith.constant 9.99999974E-6 : f32
    %624 = vector.broadcast %cst_201 : f32 to vector<2x1xf32>
    %625 = arith.addf %621, %624 : vector<2x1xf32>
    %626 = math.rsqrt %625 : vector<2x1xf32>
    %627 = vector.broadcast %626 : vector<2x1xf32> to vector<2x512xf32>
    %628 = arith.mulf %623, %627 : vector<2x512xf32>
    %629 = vector.broadcast %609 : vector<1x512xf32> to vector<2x512xf32>
    %630 = arith.mulf %628, %629 : vector<2x512xf32>
    %631 = vector.broadcast %610 : vector<1x512xf32> to vector<2x512xf32>
    %632 = arith.addf %630, %631 : vector<2x512xf32>
    %633 = arith.truncf %632 : vector<2x512xf32> to vector<2x512xbf16>
    %c0_202 = arith.constant 0 : index
    %c0_203 = arith.constant 0 : index
    %634 = vector.load %arg37[%c0_202, %c0_203] : memref<512x128xbf16, #tpu.memory_space<vmem>>, vector<512x128xbf16>
    %cst_204 = arith.constant dense<0.000000e+00> : vector<2x128xf32>
    %635 = tpu.matmul %633, %634, %cst_204 {dimension_numbers = #tpu.dot_dimension_numbers<[1], [0], [0], [1], [0, 0, 1, 1], [], []>} : vector<2x512xbf16>, vector<512x128xbf16>, vector<2x128xf32> -> vector<2x128xf32>
    %c0_205 = arith.constant 0 : index
    %c0_206 = arith.constant 0 : index
    %636 = vector.load %arg38[%c0_205, %c0_206] : memref<1x128xf32, #tpu.memory_space<vmem>>, vector<1x128xf32>
    %637 = vector.broadcast %636 : vector<1x128xf32> to vector<2x128xf32>
    %638 = arith.addf %635, %637 : vector<2x128xf32>
    %cst_207 = arith.constant 0.000000e+00 : f32
    %639 = vector.broadcast %cst_207 : f32 to vector<2x128xf32>
    %640 = arith.maximumf %638, %639 : vector<2x128xf32>
    %c0_208 = arith.constant 0 : index
    %c0_209 = arith.constant 0 : index
    %641 = vector.load %arg39[%c0_208, %c0_209] : memref<1x128xf32, #tpu.memory_space<vmem>>, vector<1x128xf32>
    %c0_210 = arith.constant 0 : index
    %c0_211 = arith.constant 0 : index
    %642 = vector.load %arg40[%c0_210, %c0_211] : memref<1x128xf32, #tpu.memory_space<vmem>>, vector<1x128xf32>
    %cst_212 = arith.constant dense<0.000000e+00> : vector<2xf32>
    %643 = vector.multi_reduction <add>, %640, %cst_212 [1] : vector<2x128xf32> to vector<2xf32>
    %644 = vector.shape_cast %643 : vector<2xf32> to vector<2x1xf32>
    %cst_213 = arith.constant 1.280000e+02 : f32
    %645 = vector.broadcast %cst_213 : f32 to vector<2x1xf32>
    %646 = arith.divf %644, %645 : vector<2x1xf32>
    %647 = vector.broadcast %646 : vector<2x1xf32> to vector<2x128xf32>
    %648 = arith.subf %640, %647 : vector<2x128xf32>
    %649 = arith.mulf %648, %648 : vector<2x128xf32>
    %cst_214 = arith.constant dense<0.000000e+00> : vector<2xf32>
    %650 = vector.multi_reduction <add>, %649, %cst_214 [1] : vector<2x128xf32> to vector<2xf32>
    %651 = vector.shape_cast %650 : vector<2xf32> to vector<2x1xf32>
    %cst_215 = arith.constant 1.280000e+02 : f32
    %652 = vector.broadcast %cst_215 : f32 to vector<2x1xf32>
    %653 = arith.divf %651, %652 : vector<2x1xf32>
    %654 = vector.broadcast %646 : vector<2x1xf32> to vector<2x128xf32>
    %655 = arith.subf %640, %654 : vector<2x128xf32>
    %cst_216 = arith.constant 9.99999974E-6 : f32
    %656 = vector.broadcast %cst_216 : f32 to vector<2x1xf32>
    %657 = arith.addf %653, %656 : vector<2x1xf32>
    %658 = math.rsqrt %657 : vector<2x1xf32>
    %659 = vector.broadcast %658 : vector<2x1xf32> to vector<2x128xf32>
    %660 = arith.mulf %655, %659 : vector<2x128xf32>
    %661 = vector.broadcast %641 : vector<1x128xf32> to vector<2x128xf32>
    %662 = arith.mulf %660, %661 : vector<2x128xf32>
    %663 = vector.broadcast %642 : vector<1x128xf32> to vector<2x128xf32>
    %664 = arith.addf %662, %663 : vector<2x128xf32>
    %665 = arith.truncf %664 : vector<2x128xf32> to vector<2x128xbf16>
    %c0_217 = arith.constant 0 : index
    %c0_218 = arith.constant 0 : index
    %666 = vector.load %arg41[%c0_217, %c0_218] : memref<128x128xbf16, #tpu.memory_space<vmem>>, vector<128x128xbf16>
    %cst_219 = arith.constant dense<0.000000e+00> : vector<2x128xf32>
    %667 = tpu.matmul %665, %666, %cst_219 {dimension_numbers = #tpu.dot_dimension_numbers<[1], [0], [0], [1], [0, 0, 1, 1], [], []>} : vector<2x128xbf16>, vector<128x128xbf16>, vector<2x128xf32> -> vector<2x128xf32>
    %c0_220 = arith.constant 0 : index
    %c0_221 = arith.constant 0 : index
    %668 = vector.load %arg42[%c0_220, %c0_221] : memref<1x128xf32, #tpu.memory_space<vmem>>, vector<1x128xf32>
    %669 = vector.broadcast %668 : vector<1x128xf32> to vector<2x128xf32>
    %670 = arith.addf %667, %669 : vector<2x128xf32>
    %cst_222 = arith.constant dense<0xFF800000> : vector<2xf32>
    %671 = vector.multi_reduction <maximumf>, %670, %cst_222 [1] : vector<2x128xf32> to vector<2xf32>
    %672 = vector.shape_cast %671 : vector<2xf32> to vector<2x1xf32>
    %673 = vector.broadcast %672 : vector<2x1xf32> to vector<2x128xf32>
    %674 = arith.subf %670, %673 : vector<2x128xf32>
    %675 = math.exp %674 : vector<2x128xf32>
    %cst_223 = arith.constant dense<0.000000e+00> : vector<2xf32>
    %676 = vector.multi_reduction <add>, %675, %cst_223 [1] : vector<2x128xf32> to vector<2xf32>
    %677 = vector.shape_cast %676 : vector<2xf32> to vector<2x1xf32>
    %678 = vector.broadcast %677 : vector<2x1xf32> to vector<2x128xf32>
    %679 = arith.divf %675, %678 : vector<2x128xf32>
    %c0_224 = arith.constant 0 : index
    %c0_225 = arith.constant 0 : index
    %680 = vector.load %arg43[%c0_224, %c0_225] : memref<2x128xf32, #tpu.memory_space<vmem>>, vector<2x128xf32>
    tpu.vector_store %arg43[%c0_224, %c0_225], %679 {strides = array<i32>} : memref<2x128xf32, #tpu.memory_space<vmem>>, vector<2x128xf32>,
    return
  }
}

</mosaic_0001>

<llo_original>
// kernel: bert_classifier_forward.1
$region0: #{bert_classifier_forward.1}
  #allocation0 [shape = 'u32[]', space=smem, size = 0x4, offset = 0x4, fixed_abs, tag = 'smem constant byte address 0x4 - core index']
  #allocation1 [shape = 'u32[144,128]{1,0:T(1,128)}', space=vmem, size = 0x12000, scoped, tag = 'internal scratch']
  %s0 = inlined_call_operand.smem [shape: u32[44], index: -1, kind: input, shape index: {}]
  %s1 = sld [smem:[%s0]]
  %s2 = scalar_lea.smem %s0, 1
  %s3 = sld [smem:[%s2]]
  %s4 = scalar_lea.smem %s0, 2
  %s5 = sld [smem:[%s4]]
  %s6 = scalar_lea.smem %s0, 3
  %s7 = sld [smem:[%s6]]
  %s8 = scalar_lea.smem %s0, 4
  %s9 = sld [smem:[%s8]]
  %s10 = scalar_lea.smem %s0, 5
  %s11 = sld [smem:[%s10]]
  %s12 = scalar_lea.smem %s0, 6
  %s13 = sld [smem:[%s12]]
  %s14 = scalar_lea.smem %s0, 7
  %s15 = sld [smem:[%s14]]
  %s16 = scalar_lea.smem %s0, 8
  %s17 = sld [smem:[%s16]]
  %s18 = scalar_lea.smem %s0, 9
  %s19 = sld [smem:[%s18]]
  %s20 = scalar_lea.smem %s0, 10
  %s21 = sld [smem:[%s20]]
  %s22 = scalar_lea.smem %s0, 11
  %s23 = sld [smem:[%s22]]
  %s24 = scalar_lea.smem %s0, 12
  %s25 = sld [smem:[%s24]]
  %s26 = scalar_lea.smem %s0, 13
  %s27 = sld [smem:[%s26]]
  %s28 = scalar_lea.smem %s0, 14
  %s29 = sld [smem:[%s28]]
  %s30 = scalar_lea.smem %s0, 15
  %s31 = sld [smem:[%s30]]
  %s32 = scalar_lea.smem %s0, 16
  %s33 = sld [smem:[%s32]]
  %s34 = scalar_lea.smem %s0, 17
  %s35 = sld [smem:[%s34]]
  %s36 = scalar_lea.smem %s0, 18
  %s37 = sld [smem:[%s36]]
  %s38 = scalar_lea.smem %s0, 19
  %s39 = sld [smem:[%s38]]
  %s40 = scalar_lea.smem %s0, 20
  %s41 = sld [smem:[%s40]]
  %s42 = scalar_lea.smem %s0, 21
  %s43 = sld [smem:[%s42]]
  %s44 = scalar_lea.smem %s0, 22
  %s45 = sld [smem:[%s44]]
  %s46 = scalar_lea.smem %s0, 23
  %s47 = sld [smem:[%s46]]
  %s48 = scalar_lea.smem %s0, 24
  %s49 = sld [smem:[%s48]]
  %s50 = scalar_lea.smem %s0, 25
  %s51 = sld [smem:[%s50]]
  %s52 = scalar_lea.smem %s0, 26
  %s53 = sld [smem:[%s52]]
  %s54 = scalar_lea.smem %s0, 27
  %s55 = sld [smem:[%s54]]
  %s56 = scalar_lea.smem %s0, 28
  %s57 = sld [smem:[%s56]]
  %s58 = scalar_lea.smem %s0, 29
  %s59 = sld [smem:[%s58]]
  %s60 = scalar_lea.smem %s0, 30
  %s61 = sld [smem:[%s60]]
  %s62 = scalar_lea.smem %s0, 31
  %s63 = sld [smem:[%s62]]
  %s64 = scalar_lea.smem %s0, 32
  %s65 = sld [smem:[%s64]]
  %s66 = scalar_lea.smem %s0, 33
  %s67 = sld [smem:[%s66]]
  %s68 = scalar_lea.smem %s0, 34
  %s69 = sld [smem:[%s68]]
  %s70 = scalar_lea.smem %s0, 35
  %s71 = sld [smem:[%s70]]
  %s72 = scalar_lea.smem %s0, 36
  %s73 = sld [smem:[%s72]]
  %s74 = scalar_lea.smem %s0, 37
  %s75 = sld [smem:[%s74]]
  %s76 = scalar_lea.smem %s0, 38
  %s77 = sld [smem:[%s76]]
  %s78 = scalar_lea.smem %s0, 39
  %s79 = sld [smem:[%s78]]
  %s80 = scalar_lea.smem %s0, 40
  %s81 = sld [smem:[%s80]]
  %s82 = scalar_lea.smem %s0, 41
  %s83 = sld [smem:[%s82]]
  %s84 = scalar_lea.smem %s0, 42
  %s85 = sld [smem:[%s84]]
  %s86 = scalar_lea.smem %s0, 43
  %s87 = sld [smem:[%s86]]
  %s88 = sld [smem:[#allocation0]]
  $region318: #{bert_classifier_forward.1} parent=0
    _
  %s90 = ssub.s32 1, %s88
  %s91 = scalar_select 0, %s90, %s88
  $region1: #{bert_classifier_forward.1} parent=0
    #allocation2 [shape = 'u8[512]{0}', space=vmem, size = 0x400, scoped, tag = 'input window, operand 5, single buffered']
    #allocation3 [shape = 's32[1]{0}', space=sflag, size = 0x4, scoped, tag = 'scoped memory for bert_classifier_forward.1']
    #allocation4 [shape = 's32[1]{0}', space=sflag, size = 0x4, scoped, tag = 'scoped memory for bert_classifier_forward.1']
    #allocation5 [shape = 'u8[512]{0}', space=vmem, size = 0x400, scoped, tag = 'input window, operand 6, single buffered']
    #allocation6 [shape = 's32[1]{0}', space=sflag, size = 0x4, scoped, tag = 'scoped memory for bert_classifier_forward.1']
    #allocation7 [shape = 'u8[8192]{0}', space=vmem, size = 0x2000, scoped, tag = 'input window, operand 7, single buffered']
    #allocation8 [shape = 'u8[512]{0}', space=vmem, size = 0x400, scoped, tag = 'input window, operand 8, single buffered']
    #allocation9 [shape = 's32[1]{0}', space=sflag, size = 0x4, scoped, tag = 'scoped memory for bert_classifier_forward.1']
    #allocation10 [shape = 'u8[8192]{0}', space=vmem, size = 0x2000, scoped, tag = 'input window, operand 9, single buffered']
    #allocation11 [shape = 'u8[512]{0}', space=vmem, size = 0x400, scoped, tag = 'input window, operand 10, single buffered']
    #allocation12 [shape = 's32[1]{0}', space=sflag, size = 0x4, scoped, tag = 'scoped memory for bert_classifier_forward.1']
    #allocation13 [shape = 'u8[512]{0}', space=vmem, size = 0x400, scoped, tag = 'input window, operand 11, single buffered']
    #allocation14 [shape = 'u8[512]{0}', space=vmem, size = 0x400, scoped, tag = 'input window, operand 12, single buffered']
    #allocation15 [shape = 's32[1]{0}', space=sflag, size = 0x4, scoped, tag = 'scoped memory for bert_classifier_forward.1']
    #allocation16 [shape = 'u8[8192]{0}', space=vmem, size = 0x2000, scoped, tag = 'input window, operand 13, single buffered']
    #allocation17 [shape = 'u8[512]{0}', space=vmem, size = 0x400, scoped, tag = 'input window, operand 14, single buffered']
    #allocation18 [shape = 's32[1]{0}', space=sflag, size = 0x4, scoped, tag = 'scoped memory for bert_classifier_forward.1']
    #allocation19 [shape = 'u8[512]{0}', space=vmem, size = 0x400, scoped, tag = 'input window, operand 16, single buffered']
    #allocation20 [shape = 'u8[512]{0}', space=vmem, size = 0x400, scoped, tag = 'input window, operand 17, single buffered']
    #allocation21 [shape = 's32[1]{0}', space=sflag, size = 0x4, scoped, tag = 'scoped memory for bert_classifier_forward.1']
    #allocation22 [shape = 'u8[512]{0}', space=vmem, size = 0x400, scoped, tag = 'input window, operand 18, single buffered']
    #allocation23 [shape = 'u8[8192]{0}', space=vmem, size = 0x2000, scoped, tag = 'input window, operand 19, single buffered']
    #allocation24 [shape = 's32[1]{0}', space=sflag, size = 0x4, scoped, tag = 'scoped memory for bert_classifier_forward.1']
    #allocation25 [shape = 'u8[512]{0}', space=vmem, size = 0x400, scoped, tag = 'input window, operand 20, single buffered']
    #allocation26 [shape = 'u8[8192]{0}', space=vmem, size = 0x2000, scoped, tag = 'input window, operand 21, single buffered']
    #allocation27 [shape = 's32[1]{0}', space=sflag, size = 0x4, scoped, tag = 'scoped memory for bert_classifier_forward.1']
    #allocation28 [shape = 'u8[512]{0}', space=vmem, size = 0x400, scoped, tag = 'input window, operand 22, single buffered']
    #allocation29 [shape = 'u8[512]{0}', space=vmem, size = 0x400, scoped, tag = 'input window, operand 23, single buffered']
    #allocation30 [shape = 's32[1]{0}', space=sflag, size = 0x4, scoped, tag = 'scoped memory for bert_classifier_forward.1']
    #allocation31 [shape = 'u8[512]{0}', space=vmem, size = 0x400, scoped, tag = 'input window, operand 24, single buffered']
    #allocation32 [shape = 'u8[8192]{0}', space=vmem, size = 0x2000, scoped, tag = 'input window, operand 25, single buffered']
    #allocation33 [shape = 's32[1]{0}', space=sflag, size = 0x4, scoped, tag = 'scoped memory for bert_classifier_forward.1']
    #allocation34 [shape = 'u8[512]{0}', space=vmem, size = 0x400, scoped, tag = 'input window, operand 26, single buffered']
    #allocation35 [shape = 'u8[512]{0}', space=vmem, size = 0x400, scoped, tag = 'input window, operand 28, single buffered']
    #allocation36 [shape = 's32[1]{0}', space=sflag, size = 0x4, scoped, tag = 'scoped memory for bert_classifier_forward.1']
    #allocation37 [shape = 'u8[512]{0}', space=vmem, size = 0x400, scoped, tag = 'input window, operand 29, single buffered']
    #allocation38 [shape = 'u8[512]{0}', space=vmem, size = 0x400, scoped, tag = 'input window, operand 30, single buffered']
    #allocation39 [shape = 's32[1]{0}', space=sflag, size = 0x4, scoped, tag = 'scoped memory for bert_classifier_forward.1']
    #allocation40 [shape = 'u8[8192]{0}', space=vmem, size = 0x2000, scoped, tag = 'input window, operand 31, single buffered']
    #allocation41 [shape = 'u8[32768]{0}', space=vmem, size = 0x8000, scoped, tag = 'input window, operand 33, single buffered']
    #allocation42 [shape = 's32[1]{0}', space=sflag, size = 0x4, scoped, tag = 'scoped memory for bert_classifier_forward.1']
    #allocation43 [shape = 'u8[2048]{0}', space=vmem, size = 0x800, scoped, tag = 'input window, operand 34, single buffered']
    #allocation44 [shape = 'u8[2048]{0}', space=vmem, size = 0x800, scoped, tag = 'input window, operand 35, single buffered']
    #allocation45 [shape = 's32[1]{0}', space=sflag, size = 0x4, scoped, tag = 'scoped memory for bert_classifier_forward.1']
    #allocation46 [shape = 'u8[2048]{0}', space=vmem, size = 0x800, scoped, tag = 'input window, operand 36, single buffered']
    #allocation47 [shape = 'u8[512]{0}', space=vmem, size = 0x400, scoped, tag = 'input window, operand 38, single buffered']
    #allocation48 [shape = 's32[1]{0}', space=sflag, size = 0x4, scoped, tag = 'scoped memory for bert_classifier_forward.1']
    #allocation49 [shape = 'u8[512]{0}', space=vmem, size = 0x400, scoped, tag = 'input window, operand 39, single buffered']
    #allocation50 [shape = 'u8[512]{0}', space=vmem, size = 0x400, scoped, tag = 'input window, operand 40, single buffered']
    #allocation51 [shape = 's32[1]{0}', space=sflag, size = 0x4, scoped, tag = 'scoped memory for bert_classifier_forward.1']
    #allocation52 [shape = 'u8[32768]{0}', space=vmem, size = 0x8000, scoped, tag = 'input window, operand 41, single buffered']
    #allocation53 [shape = 'u8[512]{0}', space=vmem, size = 0x400, scoped, tag = 'input window, operand 42, single buffered']
    #allocation54 [shape = 's32[1]{0}', space=sflag, size = 0x4, scoped, tag = 'scoped memory for bert_classifier_forward.1']
    #allocation55 [shape = 'u8[1024]{0}', space=vmem, size = 0x400, scoped, tag = 'output window, operand 0, single buffered']
    %92 = vsyncpa [#allocation3], 0
    %93 = vsyncpa [#allocation6], 0
    %94 = vsyncpa [#allocation9], 0
    %95 = vsyncpa [#allocation12], 0
    %96 = vsyncpa [#allocation15], 0
    %97 = vsyncpa [#allocation18], 0
    %98 = vsyncpa [#allocation21], 0
    %99 = vsyncpa [#allocation24], 0
    %100 = vsyncpa [#allocation27], 0
    %101 = vsyncpa [#allocation30], 0
    %102 = vsyncpa [#allocation33], 0
    %103 = vsyncpa [#allocation36], 0
    %104 = vsyncpa [#allocation39], 0
    %105 = vsyncpa [#allocation42], 0
    %106 = vsyncpa [#allocation45], 0
    %107 = vsyncpa [#allocation48], 0
    %108 = vsyncpa [#allocation51], 0
    %109 = vsyncpa [#allocation54], 0
    %110 = vsyncpa [#allocation4], 0
    // Predicated region
    $region2: #{bert_classifier_forward.1} parent=1 // pred_check
      _
    $region3: #{bert_classifier_forward.1} parent=1 // pred_check_branch
      %112 = sbr.rel (0) target = $region5
    $region4: #{bert_classifier_forward.1} parent=1 // pred_region
      _
    $region5: #{bert_classifier_forward.1} parent=1 // pred_fallthru
      _
    // Predicated region
    $region6: #{bert_classifier_forward.1} parent=1 // pred_check
      _
    $region7: #{bert_classifier_forward.1} parent=1 // pred_check_branch
      %114 = sbr.rel (0) target = $region9
    $region8: #{bert_classifier_forward.1} parent=1 // pred_region
      _
    $region9: #{bert_classifier_forward.1} parent=1 // pred_fallthru
      _
    // Predicated region
    $region10: #{bert_classifier_forward.1} parent=1 // pred_check
      _
    $region11: #{bert_classifier_forward.1} parent=1 // pred_check_branch
      %116 = sbr.rel (0) target = $region13
    $region12: #{bert_classifier_forward.1} parent=1 // pred_region
      _
    $region13: #{bert_classifier_forward.1} parent=1 // pred_fallthru
      _
    // Predicated region
    $region14: #{bert_classifier_forward.1} parent=1 // pred_check
      _
    $region15: #{bert_classifier_forward.1} parent=1 // pred_check_branch
      %118 = sbr.rel (0) target = $region17
    $region16: #{bert_classifier_forward.1} parent=1 // pred_region
      _
    $region17: #{bert_classifier_forward.1} parent=1 // pred_fallthru
      _
    // Predicated region
    $region18: #{bert_classifier_forward.1} parent=1 // pred_check
      _
    $region19: #{bert_classifier_forward.1} parent=1 // pred_check_branch
      %120 = sbr.rel (0) target = $region21
    $region20: #{bert_classifier_forward.1} parent=1 // pred_region
      _
    $region21: #{bert_classifier_forward.1} parent=1 // pred_fallthru
      _
    // Predicated region
    $region22: #{bert_classifier_forward.1} parent=1 // pred_check
      _
    $region23: #{bert_classifier_forward.1} parent=1 // pred_check_branch
      %122 = sbr.rel (0) target = $region25
    $region24: #{bert_classifier_forward.1} parent=1 // pred_region
      %s124 = ssub.s32 16, 16
      %125 = vsyncadd [#allocation3], %s124
      %s127 = sshll.u32 [#allocation2], 4
      %s128 = int_to_ptr.vmem [resolvable:$true] %s127
      %130 = dma.hbm_to_vmem [thread:$0]  %s11, 16, %s128, [#allocation3]
    $region25: #{bert_classifier_forward.1} parent=1 // pred_fallthru
      _
    // Predicated region
    $region26: #{bert_classifier_forward.1} parent=1 // pred_check
      _
    $region27: #{bert_classifier_forward.1} parent=1 // pred_check_branch
      %132 = sbr.rel (0) target = $region29
    $region28: #{bert_classifier_forward.1} parent=1 // pred_region
      %s134 = ssub.s32 16, 16
      %135 = vsyncadd [#allocation6], %s134
      %s137 = sshll.u32 [#allocation5], 4
      %s138 = int_to_ptr.vmem [resolvable:$true] %s137
      %140 = dma.hbm_to_vmem [thread:$0]  %s13, 16, %s138, [#allocation6]
    $region29: #{bert_classifier_forward.1} parent=1 // pred_fallthru
      _
    // Predicated region
    $region30: #{bert_classifier_forward.1} parent=1 // pred_check
      _
    $region31: #{bert_classifier_forward.1} parent=1 // pred_check_branch
      %142 = sbr.rel (0) target = $region33
    $region32: #{bert_classifier_forward.1} parent=1 // pred_region
      %s144 = ssub.s32 256, 256
      %145 = vsyncadd [#allocation6], %s144
      %s146 = sshll.u32 [#allocation7], 4
      %s147 = int_to_ptr.vmem [resolvable:$true] %s146
      %152 = dma.hbm_to_vmem [thread:$0]  %s15, 256, %s147, [#allocation6], 64, 64, 4
    $region33: #{bert_classifier_forward.1} parent=1 // pred_fallthru
      _
    // Predicated region
    $region34: #{bert_classifier_forward.1} parent=1 // pred_check
      _
    $region35: #{bert_classifier_forward.1} parent=1 // pred_check_branch
      %154 = sbr.rel (0) target = $region37
    $region36: #{bert_classifier_forward.1} parent=1 // pred_region
      %s156 = ssub.s32 16, 16
      %157 = vsyncadd [#allocation9], %s156
      %s159 = sshll.u32 [#allocation8], 4
      %s160 = int_to_ptr.vmem [resolvable:$true] %s159
      %162 = dma.hbm_to_vmem [thread:$0]  %s17, 16, %s160, [#allocation9]
    $region37: #{bert_classifier_forward.1} parent=1 // pred_fallthru
      _
    // Predicated region
    $region38: #{bert_classifier_forward.1} parent=1 // pred_check
      _
    $region39: #{bert_classifier_forward.1} parent=1 // pred_check_branch
      %164 = sbr.rel (0) target = $region41
    $region40: #{bert_classifier_forward.1} parent=1 // pred_region
      %s166 = ssub.s32 256, 256
      %167 = vsyncadd [#allocation9], %s166
      %s168 = sshll.u32 [#allocation10], 4
      %s169 = int_to_ptr.vmem [resolvable:$true] %s168
      %174 = dma.hbm_to_vmem [thread:$0]  %s19, 256, %s169, [#allocation9], 64, 64, 4
    $region41: #{bert_classifier_forward.1} parent=1 // pred_fallthru
      _
    // Predicated region
    $region42: #{bert_classifier_forward.1} parent=1 // pred_check
      _
    $region43: #{bert_classifier_forward.1} parent=1 // pred_check_branch
      %176 = sbr.rel (0) target = $region45
    $region44: #{bert_classifier_forward.1} parent=1 // pred_region
      %s178 = ssub.s32 16, 16
      %179 = vsyncadd [#allocation12], %s178
      %s181 = sshll.u32 [#allocation11], 4
      %s182 = int_to_ptr.vmem [resolvable:$true] %s181
      %184 = dma.hbm_to_vmem [thread:$0]  %s21, 16, %s182, [#allocation12]
    $region45: #{bert_classifier_forward.1} parent=1 // pred_fallthru
      _
    // Predicated region
    $region46: #{bert_classifier_forward.1} parent=1 // pred_check
      _
    $region47: #{bert_classifier_forward.1} parent=1 // pred_check_branch
      %186 = sbr.rel (0) target = $region49
    $region48: #{bert_classifier_forward.1} parent=1 // pred_region
      %s188 = ssub.s32 16, 16
      %189 = vsyncadd [#allocation12], %s188
      %s191 = sshll.u32 [#allocation13], 4
      %s192 = int_to_ptr.vmem [resolvable:$true] %s191
      %194 = dma.hbm_to_vmem [thread:$0]  %s23, 16, %s192, [#allocation12]
    $region49: #{bert_classifier_forward.1} parent=1 // pred_fallthru
      _
    // Predicated region
    $region50: #{bert_classifier_forward.1} parent=1 // pred_check
      _
    $region51: #{bert_classifier_forward.1} parent=1 // pred_check_branch
      %196 = sbr.rel (0) target = $region53
    $region52: #{bert_classifier_forward.1} parent=1 // pred_region
      %s198 = ssub.s32 16, 16
      %199 = vsyncadd [#allocation15], %s198
      %s201 = sshll.u32 [#allocation14], 4
      %s202 = int_to_ptr.vmem [resolvable:$true] %s201
      %204 = dma.hbm_to_vmem [thread:$0]  %s25, 16, %s202, [#allocation15]
    $region53: #{bert_classifier_forward.1} parent=1 // pred_fallthru
      _
    // Predicated region
    $region54: #{bert_classifier_forward.1} parent=1 // pred_check
      _
    $region55: #{bert_classifier_forward.1} parent=1 // pred_check_branch
      %206 = sbr.rel (0) target = $region57
    $region56: #{bert_classifier_forward.1} parent=1 // pred_region
      %s208 = ssub.s32 256, 256
      %209 = vsyncadd [#allocation15], %s208
      %s210 = sshll.u32 [#allocation16], 4
      %s211 = int_to_ptr.vmem [resolvable:$true] %s210
      %216 = dma.hbm_to_vmem [thread:$0]  %s27, 256, %s211, [#allocation15], 64, 64, 4
    $region57: #{bert_classifier_forward.1} parent=1 // pred_fallthru
      _
    // Predicated region
    $region58: #{bert_classifier_forward.1} parent=1 // pred_check
      _
    $region59: #{bert_classifier_forward.1} parent=1 // pred_check_branch
      %218 = sbr.rel (0) target = $region61
    $region60: #{bert_classifier_forward.1} parent=1 // pred_region
      %s220 = ssub.s32 16, 16
      %221 = vsyncadd [#allocation18], %s220
      %s223 = sshll.u32 [#allocation17], 4
      %s224 = int_to_ptr.vmem [resolvable:$true] %s223
      %226 = dma.hbm_to_vmem [thread:$0]  %s29, 16, %s224, [#allocation18]
    $region61: #{bert_classifier_forward.1} parent=1 // pred_fallthru
      _
    // Predicated region
    $region62: #{bert_classifier_forward.1} parent=1 // pred_check
      _
    $region63: #{bert_classifier_forward.1} parent=1 // pred_check_branch
      %228 = sbr.rel (0) target = $region65
    $region64: #{bert_classifier_forward.1} parent=1 // pred_region
      _
    $region65: #{bert_classifier_forward.1} parent=1 // pred_fallthru
      _
    // Predicated region
    $region66: #{bert_classifier_forward.1} parent=1 // pred_check
      _
    $region67: #{bert_classifier_forward.1} parent=1 // pred_check_branch
      %230 = sbr.rel (0) target = $region69
    $region68: #{bert_classifier_forward.1} parent=1 // pred_region
      %s232 = ssub.s32 16, 16
      %233 = vsyncadd [#allocation18], %s232
      %s235 = sshll.u32 [#allocation19], 4
      %s236 = int_to_ptr.vmem [resolvable:$true] %s235
      %238 = dma.hbm_to_vmem [thread:$0]  %s33, 16, %s236, [#allocation18]
    $region69: #{bert_classifier_forward.1} parent=1 // pred_fallthru
      _
    // Predicated region
    $region70: #{bert_classifier_forward.1} parent=1 // pred_check
      _
    $region71: #{bert_classifier_forward.1} parent=1 // pred_check_branch
      %240 = sbr.rel (0) target = $region73
    $region72: #{bert_classifier_forward.1} parent=1 // pred_region
      %s242 = ssub.s32 16, 16
      %243 = vsyncadd [#allocation21], %s242
      %s245 = sshll.u32 [#allocation20], 4
      %s246 = int_to_ptr.vmem [resolvable:$true] %s245
      %248 = dma.hbm_to_vmem [thread:$0]  %s35, 16, %s246, [#allocation21]
    $region73: #{bert_classifier_forward.1} parent=1 // pred_fallthru
      _
    // Predicated region
    $region74: #{bert_classifier_forward.1} parent=1 // pred_check
      _
    $region75: #{bert_classifier_forward.1} parent=1 // pred_check_branch
      %250 = sbr.rel (0) target = $region77
    $region76: #{bert_classifier_forward.1} parent=1 // pred_region
      %s252 = ssub.s32 16, 16
      %253 = vsyncadd [#allocation21], %s252
      %s255 = sshll.u32 [#allocation22], 4
      %s256 = int_to_ptr.vmem [resolvable:$true] %s255
      %258 = dma.hbm_to_vmem [thread:$0]  %s37, 16, %s256, [#allocation21]
    $region77: #{bert_classifier_forward.1} parent=1 // pred_fallthru
      _
    // Predicated region
    $region78: #{bert_classifier_forward.1} parent=1 // pred_check
      _
    $region79: #{bert_classifier_forward.1} parent=1 // pred_check_branch
      %260 = sbr.rel (0) target = $region81
    $region80: #{bert_classifier_forward.1} parent=1 // pred_region
      %s262 = ssub.s32 256, 256
      %263 = vsyncadd [#allocation24], %s262
      %s264 = sshll.u32 [#allocation23], 4
      %s265 = int_to_ptr.vmem [resolvable:$true] %s264
      %270 = dma.hbm_to_vmem [thread:$0]  %s39, 256, %s265, [#allocation24], 64, 64, 4
    $region81: #{bert_classifier_forward.1} parent=1 // pred_fallthru
      _
    // Predicated region
    $region82: #{bert_classifier_forward.1} parent=1 // pred_check
      _
    $region83: #{bert_classifier_forward.1} parent=1 // pred_check_branch
      %272 = sbr.rel (0) target = $region85
    $region84: #{bert_classifier_forward.1} parent=1 // pred_region
      %s274 = ssub.s32 16, 16
      %275 = vsyncadd [#allocation24], %s274
      %s277 = sshll.u32 [#allocation25], 4
      %s278 = int_to_ptr.vmem [resolvable:$true] %s277
      %280 = dma.hbm_to_vmem [thread:$0]  %s41, 16, %s278, [#allocation24]
    $region85: #{bert_classifier_forward.1} parent=1 // pred_fallthru
      _
    // Predicated region
    $region86: #{bert_classifier_forward.1} parent=1 // pred_check
      _
    $region87: #{bert_classifier_forward.1} parent=1 // pred_check_branch
      %282 = sbr.rel (0) target = $region89
    $region88: #{bert_classifier_forward.1} parent=1 // pred_region
      %s284 = ssub.s32 256, 256
      %285 = vsyncadd [#allocation27], %s284
      %s286 = sshll.u32 [#allocation26], 4
      %s287 = int_to_ptr.vmem [resolvable:$true] %s286
      %292 = dma.hbm_to_vmem [thread:$0]  %s43, 256, %s287, [#allocation27], 64, 64, 4
    $region89: #{bert_classifier_forward.1} parent=1 // pred_fallthru
      _
    // Predicated region
    $region90: #{bert_classifier_forward.1} parent=1 // pred_check
      _
    $region91: #{bert_classifier_forward.1} parent=1 // pred_check_branch
      %294 = sbr.rel (0) target = $region93
    $region92: #{bert_classifier_forward.1} parent=1 // pred_region
      %s296 = ssub.s32 16, 16
      %297 = vsyncadd [#allocation27], %s296
      %s299 = sshll.u32 [#allocation28], 4
      %s300 = int_to_ptr.vmem [resolvable:$true] %s299
      %302 = dma.hbm_to_vmem [thread:$0]  %s45, 16, %s300, [#allocation27]
    $region93: #{bert_classifier_forward.1} parent=1 // pred_fallthru
      _
    // Predicated region
    $region94: #{bert_classifier_forward.1} parent=1 // pred_check
      _
    $region95: #{bert_classifier_forward.1} parent=1 // pred_check_branch
      %304 = sbr.rel (0) target = $region97
    $region96: #{bert_classifier_forward.1} parent=1 // pred_region
      %s306 = ssub.s32 16, 16
      %307 = vsyncadd [#allocation30], %s306
      %s309 = sshll.u32 [#allocation29], 4
      %s310 = int_to_ptr.vmem [resolvable:$true] %s309
      %312 = dma.hbm_to_vmem [thread:$0]  %s47, 16, %s310, [#allocation30]
    $region97: #{bert_classifier_forward.1} parent=1 // pred_fallthru
      _
    // Predicated region
    $region98: #{bert_classifier_forward.1} parent=1 // pred_check
      _
    $region99: #{bert_classifier_forward.1} parent=1 // pred_check_branch
      %314 = sbr.rel (0) target = $region101
    $region100: #{bert_classifier_forward.1} parent=1 // pred_region
      %s316 = ssub.s32 16, 16
      %317 = vsyncadd [#allocation30], %s316
      %s319 = sshll.u32 [#allocation31], 4
      %s320 = int_to_ptr.vmem [resolvable:$true] %s319
      %322 = dma.hbm_to_vmem [thread:$0]  %s49, 16, %s320, [#allocation30]
    $region101: #{bert_classifier_forward.1} parent=1 // pred_fallthru
      _
    // Predicated region
    $region102: #{bert_classifier_forward.1} parent=1 // pred_check
      _
    $region103: #{bert_classifier_forward.1} parent=1 // pred_check_branch
      %324 = sbr.rel (0) target = $region105
    $region104: #{bert_classifier_forward.1} parent=1 // pred_region
      %s326 = ssub.s32 256, 256
      %327 = vsyncadd [#allocation33], %s326
      %s328 = sshll.u32 [#allocation32], 4
      %s329 = int_to_ptr.vmem [resolvable:$true] %s328
      %334 = dma.hbm_to_vmem [thread:$0]  %s51, 256, %s329, [#allocation33], 64, 64, 4
    $region105: #{bert_classifier_forward.1} parent=1 // pred_fallthru
      _
    // Predicated region
    $region106: #{bert_classifier_forward.1} parent=1 // pred_check
      _
    $region107: #{bert_classifier_forward.1} parent=1 // pred_check_branch
      %336 = sbr.rel (0) target = $region109
    $region108: #{bert_classifier_forward.1} parent=1 // pred_region
      %s338 = ssub.s32 16, 16
      %339 = vsyncadd [#allocation33], %s338
      %s341 = sshll.u32 [#allocation34], 4
      %s342 = int_to_ptr.vmem [resolvable:$true] %s341
      %344 = dma.hbm_to_vmem [thread:$0]  %s53, 16, %s342, [#allocation33]
    $region109: #{bert_classifier_forward.1} parent=1 // pred_fallthru
      _
    // Predicated region
    $region110: #{bert_classifier_forward.1} parent=1 // pred_check
      _
    $region111: #{bert_classifier_forward.1} parent=1 // pred_check_branch
      %346 = sbr.rel (0) target = $region113
    $region112: #{bert_classifier_forward.1} parent=1 // pred_region
      _
    $region113: #{bert_classifier_forward.1} parent=1 // pred_fallthru
      _
    // Predicated region
    $region114: #{bert_classifier_forward.1} parent=1 // pred_check
      _
    $region115: #{bert_classifier_forward.1} parent=1 // pred_check_branch
      %348 = sbr.rel (0) target = $region117
    $region116: #{bert_classifier_forward.1} parent=1 // pred_region
      %s350 = ssub.s32 16, 16
      %351 = vsyncadd [#allocation36], %s350
      %s353 = sshll.u32 [#allocation35], 4
      %s354 = int_to_ptr.vmem [resolvable:$true] %s353
      %356 = dma.hbm_to_vmem [thread:$0]  %s57, 16, %s354, [#allocation36]
    $region117: #{bert_classifier_forward.1} parent=1 // pred_fallthru
      _
    // Predicated region
    $region118: #{bert_classifier_forward.1} parent=1 // pred_check
      _
    $region119: #{bert_classifier_forward.1} parent=1 // pred_check_branch
      %358 = sbr.rel (0) target = $region121
    $region120: #{bert_classifier_forward.1} parent=1 // pred_region
      %s360 = ssub.s32 16, 16
      %361 = vsyncadd [#allocation36], %s360
      %s363 = sshll.u32 [#allocation37], 4
      %s364 = int_to_ptr.vmem [resolvable:$true] %s363
      %366 = dma.hbm_to_vmem [thread:$0]  %s59, 16, %s364, [#allocation36]
    $region121: #{bert_classifier_forward.1} parent=1 // pred_fallthru
      _
    // Predicated region
    $region122: #{bert_classifier_forward.1} parent=1 // pred_check
      _
    $region123: #{bert_classifier_forward.1} parent=1 // pred_check_branch
      %368 = sbr.rel (0) target = $region125
    $region124: #{bert_classifier_forward.1} parent=1 // pred_region
      %s370 = ssub.s32 16, 16
      %371 = vsyncadd [#allocation39], %s370
      %s373 = sshll.u32 [#allocation38], 4
      %s374 = int_to_ptr.vmem [resolvable:$true] %s373
      %376 = dma.hbm_to_vmem [thread:$0]  %s61, 16, %s374, [#allocation39]
    $region125: #{bert_classifier_forward.1} parent=1 // pred_fallthru
      _
    // Predicated region
    $region126: #{bert_classifier_forward.1} parent=1 // pred_check
      _
    $region127: #{bert_classifier_forward.1} parent=1 // pred_check_branch
      %378 = sbr.rel (0) target = $region129
    $region128: #{bert_classifier_forward.1} parent=1 // pred_region
      %s380 = ssub.s32 256, 256
      %381 = vsyncadd [#allocation39], %s380
      %s382 = sshll.u32 [#allocation40], 4
      %s383 = int_to_ptr.vmem [resolvable:$true] %s382
      %388 = dma.hbm_to_vmem [thread:$0]  %s63, 256, %s383, [#allocation39], 64, 64, 4
    $region129: #{bert_classifier_forward.1} parent=1 // pred_fallthru
      _
    // Predicated region
    $region130: #{bert_classifier_forward.1} parent=1 // pred_check
      _
    $region131: #{bert_classifier_forward.1} parent=1 // pred_check_branch
      %390 = sbr.rel (0) target = $region133
    $region132: #{bert_classifier_forward.1} parent=1 // pred_region
      _
    $region133: #{bert_classifier_forward.1} parent=1 // pred_fallthru
      _
    // Predicated region
    $region134: #{bert_classifier_forward.1} parent=1 // pred_check
      _
    $region135: #{bert_classifier_forward.1} parent=1 // pred_check_branch
      %392 = sbr.rel (0) target = $region137
    $region136: #{bert_classifier_forward.1} parent=1 // pred_region
      %s394 = ssub.s32 1024, 1024
      %395 = vsyncadd [#allocation42], %s394
      %s396 = sshll.u32 [#allocation41], 4
      %s397 = int_to_ptr.vmem [resolvable:$true] %s396
      %402 = dma.hbm_to_vmem [thread:$0]  %s67, 1024, %s397, [#allocation42], 256, 256, 16
    $region137: #{bert_classifier_forward.1} parent=1 // pred_fallthru
      _
    // Predicated region
    $region138: #{bert_classifier_forward.1} parent=1 // pred_check
      _
    $region139: #{bert_classifier_forward.1} parent=1 // pred_check_branch
      %404 = sbr.rel (0) target = $region141
    $region140: #{bert_classifier_forward.1} parent=1 // pred_region
      %s406 = ssub.s32 64, 64
      %407 = vsyncadd [#allocation42], %s406
      %s409 = sshll.u32 [#allocation43], 4
      %s410 = int_to_ptr.vmem [resolvable:$true] %s409
      %412 = dma.hbm_to_vmem [thread:$0]  %s69, 64, %s410, [#allocation42]
    $region141: #{bert_classifier_forward.1} parent=1 // pred_fallthru
      _
    // Predicated region
    $region142: #{bert_classifier_forward.1} parent=1 // pred_check
      _
    $region143: #{bert_classifier_forward.1} parent=1 // pred_check_branch
      %414 = sbr.rel (0) target = $region145
    $region144: #{bert_classifier_forward.1} parent=1 // pred_region
      %s416 = ssub.s32 64, 64
      %417 = vsyncadd [#allocation45], %s416
      %s419 = sshll.u32 [#allocation44], 4
      %s420 = int_to_ptr.vmem [resolvable:$true] %s419
      %422 = dma.hbm_to_vmem [thread:$0]  %s71, 64, %s420, [#allocation45]
    $region145: #{bert_classifier_forward.1} parent=1 // pred_fallthru
      _
    // Predicated region
    $region146: #{bert_classifier_forward.1} parent=1 // pred_check
      _
    $region147: #{bert_classifier_forward.1} parent=1 // pred_check_branch
      %424 = sbr.rel (0) target = $region149
    $region148: #{bert_classifier_forward.1} parent=1 // pred_region
      %s426 = ssub.s32 64, 64
      %427 = vsyncadd [#allocation45], %s426
      %s429 = sshll.u32 [#allocation46], 4
      %s430 = int_to_ptr.vmem [resolvable:$true] %s429
      %432 = dma.hbm_to_vmem [thread:$0]  %s73, 64, %s430, [#allocation45]
    $region149: #{bert_classifier_forward.1} parent=1 // pred_fallthru
      _
    // Predicated region
    $region150: #{bert_classifier_forward.1} parent=1 // pred_check
      _
    $region151: #{bert_classifier_forward.1} parent=1 // pred_check_branch
      %434 = sbr.rel (0) target = $region153
    $region152: #{bert_classifier_forward.1} parent=1 // pred_region
      _
    $region153: #{bert_classifier_forward.1} parent=1 // pred_fallthru
      _
    // Predicated region
    $region154: #{bert_classifier_forward.1} parent=1 // pred_check
      _
    $region155: #{bert_classifier_forward.1} parent=1 // pred_check_branch
      %436 = sbr.rel (0) target = $region157
    $region156: #{bert_classifier_forward.1} parent=1 // pred_region
      %s438 = ssub.s32 16, 16
      %439 = vsyncadd [#allocation48], %s438
      %s441 = sshll.u32 [#allocation47], 4
      %s442 = int_to_ptr.vmem [resolvable:$true] %s441
      %444 = dma.hbm_to_vmem [thread:$0]  %s77, 16, %s442, [#allocation48]
    $region157: #{bert_classifier_forward.1} parent=1 // pred_fallthru
      _
    // Predicated region
    $region158: #{bert_classifier_forward.1} parent=1 // pred_check
      _
    $region159: #{bert_classifier_forward.1} parent=1 // pred_check_branch
      %446 = sbr.rel (0) target = $region161
    $region160: #{bert_classifier_forward.1} parent=1 // pred_region
      %s448 = ssub.s32 16, 16
      %449 = vsyncadd [#allocation48], %s448
      %s451 = sshll.u32 [#allocation49], 4
      %s452 = int_to_ptr.vmem [resolvable:$true] %s451
      %454 = dma.hbm_to_vmem [thread:$0]  %s79, 16, %s452, [#allocation48]
    $region161: #{bert_classifier_forward.1} parent=1 // pred_fallthru
      _
    // Predicated region
    $region162: #{bert_classifier_forward.1} parent=1 // pred_check
      _
    $region163: #{bert_classifier_forward.1} parent=1 // pred_check_branch
      %456 = sbr.rel (0) target = $region165
    $region164: #{bert_classifier_forward.1} parent=1 // pred_region
      %s458 = ssub.s32 16, 16
      %459 = vsyncadd [#allocation51], %s458
      %s461 = sshll.u32 [#allocation50], 4
      %s462 = int_to_ptr.vmem [resolvable:$true] %s461
      %464 = dma.hbm_to_vmem [thread:$0]  %s81, 16, %s462, [#allocation51]
    $region165: #{bert_classifier_forward.1} parent=1 // pred_fallthru
      _
    // Predicated region
    $region166: #{bert_classifier_forward.1} parent=1 // pred_check
      _
    $region167: #{bert_classifier_forward.1} parent=1 // pred_check_branch
      %466 = sbr.rel (0) target = $region169
    $region168: #{bert_classifier_forward.1} parent=1 // pred_region
      %s468 = ssub.s32 1024, 1024
      %469 = vsyncadd [#allocation51], %s468
      %s470 = sshll.u32 [#allocation52], 4
      %s471 = int_to_ptr.vmem [resolvable:$true] %s470
      %476 = dma.hbm_to_vmem [thread:$0]  %s83, 1024, %s471, [#allocation51], 64, 64, 4
    $region169: #{bert_classifier_forward.1} parent=1 // pred_fallthru
      _
    // Predicated region
    $region170: #{bert_classifier_forward.1} parent=1 // pred_check
      _
    $region171: #{bert_classifier_forward.1} parent=1 // pred_check_branch
      %478 = sbr.rel (0) target = $region173
    $region172: #{bert_classifier_forward.1} parent=1 // pred_region
      %s480 = ssub.s32 16, 16
      %481 = vsyncadd [#allocation54], %s480
      %s483 = sshll.u32 [#allocation53], 4
      %s484 = int_to_ptr.vmem [resolvable:$true] %s483
      %486 = dma.hbm_to_vmem [thread:$0]  %s85, 16, %s484, [#allocation54]
    $region173: #{bert_classifier_forward.1} parent=1 // pred_fallthru
      _
    // Predicated region
    $region174: #{bert_classifier_forward.1} parent=1 // pred_check
      _
    $region175: #{bert_classifier_forward.1} parent=1 // pred_check_branch
      %488 = sbr.rel (0) target = $region177
    $region176: #{bert_classifier_forward.1} parent=1 // pred_region
      %489 = dma.done [#allocation3], 16
    $region177: #{bert_classifier_forward.1} parent=1 // pred_fallthru
      _
    // Predicated region
    $region178: #{bert_classifier_forward.1} parent=1 // pred_check
      _
    $region179: #{bert_classifier_forward.1} parent=1 // pred_check_branch
      %491 = sbr.rel (0) target = $region181
    $region180: #{bert_classifier_forward.1} parent=1 // pred_region
      %492 = dma.done [#allocation6], 16
    $region181: #{bert_classifier_forward.1} parent=1 // pred_fallthru
      _
    // Predicated region
    $region182: #{bert_classifier_forward.1} parent=1 // pred_check
      _
    $region183: #{bert_classifier_forward.1} parent=1 // pred_check_branch
      %494 = sbr.rel (0) target = $region185
    $region184: #{bert_classifier_forward.1} parent=1 // pred_region
      %495 = dma.done [#allocation6], 256
    $region185: #{bert_classifier_forward.1} parent=1 // pred_fallthru
      _
    // Predicated region
    $region186: #{bert_classifier_forward.1} parent=1 // pred_check
      _
    $region187: #{bert_classifier_forward.1} parent=1 // pred_check_branch
      %497 = sbr.rel (0) target = $region189
    $region188: #{bert_classifier_forward.1} parent=1 // pred_region
      %498 = dma.done [#allocation9], 16
    $region189: #{bert_classifier_forward.1} parent=1 // pred_fallthru
      _
    // Predicated region
    $region190: #{bert_classifier_forward.1} parent=1 // pred_check
      _
    $region191: #{bert_classifier_forward.1} parent=1 // pred_check_branch
      %500 = sbr.rel (0) target = $region193
    $region192: #{bert_classifier_forward.1} parent=1 // pred_region
      %501 = dma.done [#allocation9], 256
    $region193: #{bert_classifier_forward.1} parent=1 // pred_fallthru
      _
    // Predicated region
    $region194: #{bert_classifier_forward.1} parent=1 // pred_check
      _
    $region195: #{bert_classifier_forward.1} parent=1 // pred_check_branch
      %503 = sbr.rel (0) target = $region197
    $region196: #{bert_classifier_forward.1} parent=1 // pred_region
      %504 = dma.done [#allocation12], 16
    $region197: #{bert_classifier_forward.1} parent=1 // pred_fallthru
      _
    // Predicated region
    $region198: #{bert_classifier_forward.1} parent=1 // pred_check
      _
    $region199: #{bert_classifier_forward.1} parent=1 // pred_check_branch
      %506 = sbr.rel (0) target = $region201
    $region200: #{bert_classifier_forward.1} parent=1 // pred_region
      %507 = dma.done [#allocation12], 16
    $region201: #{bert_classifier_forward.1} parent=1 // pred_fallthru
      _
    // Predicated region
    $region202: #{bert_classifier_forward.1} parent=1 // pred_check
      _
    $region203: #{bert_classifier_forward.1} parent=1 // pred_check_branch
      %509 = sbr.rel (0) target = $region205
    $region204: #{bert_classifier_forward.1} parent=1 // pred_region
      %510 = dma.done [#allocation15], 16
    $region205: #{bert_classifier_forward.1} parent=1 // pred_fallthru
      _
    // Predicated region
    $region206: #{bert_classifier_forward.1} parent=1 // pred_check
      _
    $region207: #{bert_classifier_forward.1} parent=1 // pred_check_branch
      %512 = sbr.rel (0) target = $region209
    $region208: #{bert_classifier_forward.1} parent=1 // pred_region
      %513 = dma.done [#allocation15], 256
    $region209: #{bert_classifier_forward.1} parent=1 // pred_fallthru
      _
    // Predicated region
    $region210: #{bert_classifier_forward.1} parent=1 // pred_check
      _
    $region211: #{bert_classifier_forward.1} parent=1 // pred_check_branch
      %515 = sbr.rel (0) target = $region213
    $region212: #{bert_classifier_forward.1} parent=1 // pred_region
      %516 = dma.done [#allocation18], 16
    $region213: #{bert_classifier_forward.1} parent=1 // pred_fallthru
      _
    // Predicated region
    $region214: #{bert_classifier_forward.1} parent=1 // pred_check
      _
    $region215: #{bert_classifier_forward.1} parent=1 // pred_check_branch
      %518 = sbr.rel (0) target = $region217
    $region216: #{bert_classifier_forward.1} parent=1 // pred_region
      %519 = dma.done [#allocation18], 16
    $region217: #{bert_classifier_forward.1} parent=1 // pred_fallthru
      _
    // Predicated region
    $region218: #{bert_classifier_forward.1} parent=1 // pred_check
      _
    $region219: #{bert_classifier_forward.1} parent=1 // pred_check_branch
      %521 = sbr.rel (0) target = $region221
    $region220: #{bert_classifier_forward.1} parent=1 // pred_region
      %522 = dma.done [#allocation21], 16
    $region221: #{bert_classifier_forward.1} parent=1 // pred_fallthru
      _
    // Predicated region
    $region222: #{bert_classifier_forward.1} parent=1 // pred_check
      _
    $region223: #{bert_classifier_forward.1} parent=1 // pred_check_branch
      %524 = sbr.rel (0) target = $region225
    $region224: #{bert_classifier_forward.1} parent=1 // pred_region
      %525 = dma.done [#allocation21], 16
    $region225: #{bert_classifier_forward.1} parent=1 // pred_fallthru
      _
    // Predicated region
    $region226: #{bert_classifier_forward.1} parent=1 // pred_check
      _
    $region227: #{bert_classifier_forward.1} parent=1 // pred_check_branch
      %527 = sbr.rel (0) target = $region229
    $region228: #{bert_classifier_forward.1} parent=1 // pred_region
      %528 = dma.done [#allocation24], 256
    $region229: #{bert_classifier_forward.1} parent=1 // pred_fallthru
      _
    // Predicated region
    $region230: #{bert_classifier_forward.1} parent=1 // pred_check
      _
    $region231: #{bert_classifier_forward.1} parent=1 // pred_check_branch
      %530 = sbr.rel (0) target = $region233
    $region232: #{bert_classifier_forward.1} parent=1 // pred_region
      %531 = dma.done [#allocation24], 16
    $region233: #{bert_classifier_forward.1} parent=1 // pred_fallthru
      _
    // Predicated region
    $region234: #{bert_classifier_forward.1} parent=1 // pred_check
      _
    $region235: #{bert_classifier_forward.1} parent=1 // pred_check_branch
      %533 = sbr.rel (0) target = $region237
    $region236: #{bert_classifier_forward.1} parent=1 // pred_region
      %534 = dma.done [#allocation27], 256
    $region237: #{bert_classifier_forward.1} parent=1 // pred_fallthru
      _
    // Predicated region
    $region238: #{bert_classifier_forward.1} parent=1 // pred_check
      _
    $region239: #{bert_classifier_forward.1} parent=1 // pred_check_branch
      %536 = sbr.rel (0) target = $region241
    $region240: #{bert_classifier_forward.1} parent=1 // pred_region
      %537 = dma.done [#allocation27], 16
    $region241: #{bert_classifier_forward.1} parent=1 // pred_fallthru
      _
    // Predicated region
    $region242: #{bert_classifier_forward.1} parent=1 // pred_check
      _
    $region243: #{bert_classifier_forward.1} parent=1 // pred_check_branch
      %539 = sbr.rel (0) target = $region245
    $region244: #{bert_classifier_forward.1} parent=1 // pred_region
      %540 = dma.done [#allocation30], 16
    $region245: #{bert_classifier_forward.1} parent=1 // pred_fallthru
      _
    // Predicated region
    $region246: #{bert_classifier_forward.1} parent=1 // pred_check
      _
    $region247: #{bert_classifier_forward.1} parent=1 // pred_check_branch
      %542 = sbr.rel (0) target = $region249
    $region248: #{bert_classifier_forward.1} parent=1 // pred_region
      %543 = dma.done [#allocation30], 16
    $region249: #{bert_classifier_forward.1} parent=1 // pred_fallthru
      _
    // Predicated region
    $region250: #{bert_classifier_forward.1} parent=1 // pred_check
      _
    $region251: #{bert_classifier_forward.1} parent=1 // pred_check_branch
      %545 = sbr.rel (0) target = $region253
    $region252: #{bert_classifier_forward.1} parent=1 // pred_region
      %546 = dma.done [#allocation33], 256
    $region253: #{bert_classifier_forward.1} parent=1 // pred_fallthru
      _
    // Predicated region
    $region254: #{bert_classifier_forward.1} parent=1 // pred_check
      _
    $region255: #{bert_classifier_forward.1} parent=1 // pred_check_branch
      %548 = sbr.rel (0) target = $region257
    $region256: #{bert_classifier_forward.1} parent=1 // pred_region
      %549 = dma.done [#allocation33], 16
    $region257: #{bert_classifier_forward.1} parent=1 // pred_fallthru
      _
    // Predicated region
    $region258: #{bert_classifier_forward.1} parent=1 // pred_check
      _
    $region259: #{bert_classifier_forward.1} parent=1 // pred_check_branch
      %551 = sbr.rel (0) target = $region261
    $region260: #{bert_classifier_forward.1} parent=1 // pred_region
      %552 = dma.done [#allocation36], 16
    $region261: #{bert_classifier_forward.1} parent=1 // pred_fallthru
      _
    // Predicated region
    $region262: #{bert_classifier_forward.1} parent=1 // pred_check
      _
    $region263: #{bert_classifier_forward.1} parent=1 // pred_check_branch
      %554 = sbr.rel (0) target = $region265
    $region264: #{bert_classifier_forward.1} parent=1 // pred_region
      %555 = dma.done [#allocation36], 16
    $region265: #{bert_classifier_forward.1} parent=1 // pred_fallthru
      _
    // Predicated region
    $region266: #{bert_classifier_forward.1} parent=1 // pred_check
      _
    $region267: #{bert_classifier_forward.1} parent=1 // pred_check_branch
      %557 = sbr.rel (0) target = $region269
    $region268: #{bert_classifier_forward.1} parent=1 // pred_region
      %558 = dma.done [#allocation39], 16
    $region269: #{bert_classifier_forward.1} parent=1 // pred_fallthru
      _
    // Predicated region
    $region270: #{bert_classifier_forward.1} parent=1 // pred_check
      _
    $region271: #{bert_classifier_forward.1} parent=1 // pred_check_branch
      %560 = sbr.rel (0) target = $region273
    $region272: #{bert_classifier_forward.1} parent=1 // pred_region
      %561 = dma.done [#allocation39], 256
    $region273: #{bert_classifier_forward.1} parent=1 // pred_fallthru
      _
    // Predicated region
    $region274: #{bert_classifier_forward.1} parent=1 // pred_check
      _
    $region275: #{bert_classifier_forward.1} parent=1 // pred_check_branch
      %563 = sbr.rel (0) target = $region277
    $region276: #{bert_classifier_forward.1} parent=1 // pred_region
      %564 = dma.done [#allocation42], 1024
    $region277: #{bert_classifier_forward.1} parent=1 // pred_fallthru
      _
    // Predicated region
    $region278: #{bert_classifier_forward.1} parent=1 // pred_check
      _
    $region279: #{bert_classifier_forward.1} parent=1 // pred_check_branch
      %566 = sbr.rel (0) target = $region281
    $region280: #{bert_classifier_forward.1} parent=1 // pred_region
      %567 = dma.done [#allocation42], 64
    $region281: #{bert_classifier_forward.1} parent=1 // pred_fallthru
      _
    // Predicated region
    $region282: #{bert_classifier_forward.1} parent=1 // pred_check
      _
    $region283: #{bert_classifier_forward.1} parent=1 // pred_check_branch
      %569 = sbr.rel (0) target = $region285
    $region284: #{bert_classifier_forward.1} parent=1 // pred_region
      %570 = dma.done [#allocation45], 64
    $region285: #{bert_classifier_forward.1} parent=1 // pred_fallthru
      _
    // Predicated region
    $region286: #{bert_classifier_forward.1} parent=1 // pred_check
      _
    $region287: #{bert_classifier_forward.1} parent=1 // pred_check_branch
      %572 = sbr.rel (0) target = $region289
    $region288: #{bert_classifier_forward.1} parent=1 // pred_region
      %573 = dma.done [#allocation45], 64
    $region289: #{bert_classifier_forward.1} parent=1 // pred_fallthru
      _
    // Predicated region
    $region290: #{bert_classifier_forward.1} parent=1 // pred_check
      _
    $region291: #{bert_classifier_forward.1} parent=1 // pred_check_branch
      %575 = sbr.rel (0) target = $region293
    $region292: #{bert_classifier_forward.1} parent=1 // pred_region
      %576 = dma.done [#allocation48], 16
    $region293: #{bert_classifier_forward.1} parent=1 // pred_fallthru
      _
    // Predicated region
    $region294: #{bert_classifier_forward.1} parent=1 // pred_check
      _
    $region295: #{bert_classifier_forward.1} parent=1 // pred_check_branch
      %578 = sbr.rel (0) target = $region297
    $region296: #{bert_classifier_forward.1} parent=1 // pred_region
      %579 = dma.done [#allocation48], 16
    $region297: #{bert_classifier_forward.1} parent=1 // pred_fallthru
      _
    // Predicated region
    $region298: #{bert_classifier_forward.1} parent=1 // pred_check
      _
    $region299: #{bert_classifier_forward.1} parent=1 // pred_check_branch
      %581 = sbr.rel (0) target = $region301
    $region300: #{bert_classifier_forward.1} parent=1 // pred_region
      %582 = dma.done [#allocation51], 16
    $region301: #{bert_classifier_forward.1} parent=1 // pred_fallthru
      _
    // Predicated region
    $region302: #{bert_classifier_forward.1} parent=1 // pred_check
      _
    $region303: #{bert_classifier_forward.1} parent=1 // pred_check_branch
      %584 = sbr.rel (0) target = $region305
    $region304: #{bert_classifier_forward.1} parent=1 // pred_region
      %585 = dma.done [#allocation51], 1024
    $region305: #{bert_classifier_forward.1} parent=1 // pred_fallthru
      _
    // Predicated region
    $region306: #{bert_classifier_forward.1} parent=1 // pred_check
      _
    $region307: #{bert_classifier_forward.1} parent=1 // pred_check_branch
      %587 = sbr.rel (0) target = $region309
    $region308: #{bert_classifier_forward.1} parent=1 // pred_region
      %588 = dma.done [#allocation54], 16
    $region309: #{bert_classifier_forward.1} parent=1 // pred_fallthru
      _
    %v590 = vld [vmem:[%s1] sm:$0xff]
    %v591 = vld [vmem:[%s1 + $0x8] sm:$0xff]
    %v592 = vlaneseq
    %v593 = vand.u32 %v592, 127
    %594 = vset.pattern.permute.xlu0 0
    %595 = vperm.xlu0 %594, %v590
    %v596 = vpop.permute.xlu0 %595
    %597 = vset.pattern.permute.xlu0 0
    %598 = vperm.xlu0 %597, %v591
    %v599 = vpop.permute.xlu0 %598
    %vm600 = vcmp.eq.s32.totalorder %v596, %v593
    %vm601 = vcmp.eq.s32.totalorder %v599, %v593
    %v602 = vsel %vm600, 1, 0
    %v603 = vsel %vm601, 1, 0
    %v604 = vcvt.s32.f32 %v602
    %v605 = vcvt.s32.f32 %v603
    %v606 = vld [vmem:[%s5] sm:$0xff]
    %v607 = vld [vmem:[%s5 + $0x8] sm:$0xff]
    %v608 = vld [vmem:[%s5 + $0x10] sm:$0xff]
    %v609 = vld [vmem:[%s5 + $0x18] sm:$0xff]
    %v610 = vld [vmem:[%s5 + $0x20] sm:$0xff]
    %v611 = vld [vmem:[%s5 + $0x28] sm:$0xff]
    %v612 = vld [vmem:[%s5 + $0x30] sm:$0xff]
    %v613 = vld [vmem:[%s5 + $0x38] sm:$0xff]
    %v614 = vld [vmem:[%s5 + $0x40] sm:$0xff]
    %v615 = vld [vmem:[%s5 + $0x48] sm:$0xff]
    %v616 = vld [vmem:[%s5 + $0x50] sm:$0xff]
    %v617 = vld [vmem:[%s5 + $0x58] sm:$0xff]
    %v618 = vld [vmem:[%s5 + $0x60] sm:$0xf]
    %v619 = vld [vmem:[%s7] sm:$0xff]
    %vm620 = vcmask 818176
    %v622 = vsel %vm620, %v604, 0
    %v625 = vsel %vm620, %v605, 0
    %vm627 = vcmask 1043456
    %v629 = vsel %vm627, %v618, 0
    %631 = vmatprep.subr.mxu0 0.0
    %632 = vmatpush1.msra.mxu0 0.0
    %633 = vmatprep.subr.mxu0 0.0
    %634 = vmatpush1.msra.mxu0 0.0
    %635 = vmatprep.subr.mxu0 0.0
    %636 = vmatpush1.msra.mxu0 0.0
    %637 = vmatprep.subr.mxu0 0.0
    %638 = vmatpush1.msra.mxu0 %v629
    %639 = vmatprep.subr.mxu0 0.0
    %640 = vmatpush1.msra.mxu0 %v617
    %641 = vmatprep.subr.mxu0 0.0
    %642 = vmatpush1.msra.mxu0 %v616
    %643 = vmatprep.subr.mxu0 0.0
    %644 = vmatpush1.msra.mxu0 %v615
    %645 = vmatprep.subr.mxu0 0.0
    %646 = vmatpush1.msra.mxu0 %v614
    %647 = vmatprep.subr.mxu0 0.0
    %648 = vmatpush1.msra.mxu0 %v613
    %649 = vmatprep.subr.mxu0 0.0
    %650 = vmatpush1.msra.mxu0 %v612
    %651 = vmatprep.subr.mxu0 0.0
    %652 = vmatpush1.msra.mxu0 %v611
    %653 = vmatprep.subr.mxu0 0.0
    %654 = vmatpush1.msra.mxu0 %v610
    %655 = vmatprep.subr.mxu0 0.0
    %656 = vmatpush1.msra.mxu0 %v609
    %657 = vmatprep.subr.mxu0 0.0
    %658 = vmatpush1.msra.mxu0 %v608
    %659 = vmatprep.subr.mxu0 0.0
    %660 = vmatpush1.msra.mxu0 %v607
    %661 = vmatprep.subr.mxu0 0.0
    %662 = vmatpush1.msra.mxu0 %v606
    %663 = vmatprep.subr.mxu0 0.0
    %664 = vmatpush2.msra.mxu0 0.0
    %665 = vmatprep.subr.mxu0 0.0
    %666 = vmatpush2.msra.mxu0 0.0
    %667 = vmatprep.subr.mxu0 0.0
    %668 = vmatpush2.msra.mxu0 0.0
    %669 = vmatprep.subr.mxu0 0.0
    %670 = vmatpush2.msra.mxu0 0.0
    %671 = vmatprep.subr.mxu0 0.0
    %672 = vmatpush2.msra.mxu0 0.0
    %673 = vmatprep.subr.mxu0 0.0
    %674 = vmatpush2.msra.mxu0 0.0
    %675 = vmatprep.subr.mxu0 0.0
    %676 = vmatpush2.msra.mxu0 0.0
    %677 = vmatprep.subr.mxu0 0.0
    %678 = vmatpush2.msra.mxu0 0.0
    %679 = vmatprep.subr.mxu0 0.0
    %680 = vmatpush2.msra.mxu0 0.0
    %681 = vmatprep.subr.mxu0 0.0
    %682 = vmatpush2.msra.mxu0 0.0
    %683 = vmatprep.subr.mxu0 0.0
    %684 = vmatpush2.msra.mxu0 0.0
    %685 = vmatprep.subr.mxu0 0.0
    %686 = vmatpush2.msra.mxu0 0.0
    %687 = vmatprep.subr.mxu0 0.0
    %688 = vmatpush2.msra.mxu0 0.0
    %689 = vmatprep.subr.mxu0 0.0
    %690 = vmatpush2.msra.mxu0 0.0
    %691 = vmatprep.subr.mxu0 0.0
    %692 = vmatpush2.msra.mxu0 0.0
    %693 = vmatprep.subr.mxu0 0.0
    %694 = vmatpush2.msra.mxu0 0.0
    %695 = vmatprep.mubr.f32.mxu0 0.0
    %696 = vmatmul.mubr.f32.gmra.mxu0 %v622
    %v697 = vpop.f32.mrf.mxu0
    %v698 = vadd.f32 %v619, %v697
    %v699 = vpop.f32.mrf.mxu0
    %700 = vmatprep.mubr.f32.mxu0 0.0
    %701 = vmatmul.mubr.f32.gmra.mxu0 %v625
    %v702 = vpop.f32.mrf.mxu0
    %v703 = vadd.f32 %v619, %v702
    %v704 = vpop.f32.mrf.mxu0
    %705 = vdwg.mxu0
    %v706 = vld [vmem:[%s9] sm:$0x1]
    %v708 = vlaneseq
    %v709 = vshrl.u32 %v708, 7
    %v710 = vsub.s32 0, %v709
    %v711 = vrot.slane %v706, %v710
    %v713 = vadd.f32 %v698, %v711
    %v714 = vadd.f32 %v703, %v711
    %v715 = vld [vmem:[#allocation2] sm:$0x1]
    %v716 = vld [vmem:[#allocation5] sm:$0x1]
    %vm717 = vcmask 261120
    %v718 = vsel %vm717, %v713, 0.0
    %719 = vadd.xlane.f32.xlu0 %v718
    %v720 = vpop.xlane.xlu0 %719
    %v721 = vsel %vm717, %v714, 0.0
    %722 = vadd.xlane.f32.xlu0 %v721
    %v723 = vpop.xlane.xlu0 %722
    %v724 = vrcp.pop 32.0
    %v725 = vmul.f32 %v720, %v724
    %v726 = vmul.f32 %v723, %v724
    %v727 = vsub.f32 %v713, %v725
    %v728 = vsub.f32 %v714, %v726
    %v729 = vmul.f32 %v727, %v727
    %v730 = vmul.f32 %v728, %v728
    %v731 = vsel %vm717, %v729, 0.0
    %732 = vadd.xlane.f32.xlu0 %v731
    %v733 = vpop.xlane.xlu0 %732
    %v734 = vsel %vm717, %v730, 0.0
    %735 = vadd.xlane.f32.xlu0 %v734
    %v736 = vpop.xlane.xlu0 %735
    %v737 = vmul.f32 %v733, %v724
    %v738 = vmul.f32 %v736, %v724
    %v739 = vadd.f32 %v737, 1e-05
    %v740 = vadd.f32 %v738, 1e-05
    %v741 = vrsqrt.pop %v739
    %v742 = vrsqrt.pop %v740
    %v743 = vmul.f32 %v727, %v741
    %v744 = vmul.f32 %v728, %v742
    %v746 = vlaneseq
    %v747 = vshrl.u32 %v746, 7
    %v748 = vsub.s32 0, %v747
    %v749 = vrot.slane %v715, %v748
    %v751 = vmul.f32 %v743, %v749
    %v752 = vmul.f32 %v744, %v749
    %v754 = vlaneseq
    %v755 = vshrl.u32 %v754, 7
    %v756 = vsub.s32 0, %v755
    %v757 = vrot.slane %v716, %v756
    %v759 = vadd.f32 %v751, %v757
    %v760 = vadd.f32 %v752, %v757
    %v761 = vld [vmem:[%s3] sm:$0x3]
    %v762 = vpack.c.bf16 %v760, %v759
    %v763 = vld [vmem:[#allocation7] sm:$0xf]
    %v764 = vld [vmem:[#allocation7 + $0x4] sm:$0xf]
    %v765 = vld [vmem:[#allocation7 + $0x8] sm:$0xf]
    %v766 = vld [vmem:[#allocation7 + $0xc] sm:$0xf]
    %v767 = vld [vmem:[#allocation8] sm:$0x1]
    %v769 = vlaneseq
    %v770 = vshrl.u32 %v769, 7
    %v771 = vsub.s32 0, %v770
    %v772 = vrot.slane %v767, %v771
    %v778 = vunpack.c.l.b16 %v763
    %v779 = vunpack.c.l.b16 %v764
    %v780 = vunpack.c.l.b16 %v765
    %v781 = vunpack.c.l.b16 %v766
    %v782 = vpack.c.b16 %v779, %v778
    %v783 = vpack.c.b16 %v781, %v780
    %v787 = vsel %vm717, %v762, 0
    %789 = vmatprep.subr.bf16.mxu0 0
    %790 = vmatpush1.bf16.msra.mxu0 0
    %791 = vmatprep.subr.bf16.mxu0 0
    %792 = vmatpush1.bf16.msra.mxu0 0
    %793 = vmatprep.subr.bf16.mxu0 0
    %794 = vmatpush1.bf16.msra.mxu0 0
    %795 = vmatprep.subr.bf16.mxu0 0
    %796 = vmatpush1.bf16.msra.mxu0 0
    %797 = vmatprep.subr.bf16.mxu0 0
    %798 = vmatpush1.bf16.msra.mxu0 0
    %799 = vmatprep.subr.bf16.mxu0 0
    %800 = vmatpush1.bf16.msra.mxu0 0
    %801 = vmatprep.subr.bf16.mxu0 0
    %802 = vmatpush1.bf16.msra.mxu0 %v783
    %803 = vmatprep.subr.bf16.mxu0 0
    %804 = vmatpush1.bf16.msra.mxu0 %v782
    %805 = vmatprep.subr.bf16.mxu0 0
    %806 = vmatpush2.bf16.msra.mxu0 0
    %807 = vmatprep.subr.bf16.mxu0 0
    %808 = vmatpush2.bf16.msra.mxu0 0
    %809 = vmatprep.subr.bf16.mxu0 0
    %810 = vmatpush2.bf16.msra.mxu0 0
    %811 = vmatprep.subr.bf16.mxu0 0
    %812 = vmatpush2.bf16.msra.mxu0 0
    %813 = vmatprep.subr.bf16.mxu0 0
    %814 = vmatpush2.bf16.msra.mxu0 0
    %815 = vmatprep.subr.bf16.mxu0 0
    %816 = vmatpush2.bf16.msra.mxu0 0
    %817 = vmatprep.subr.bf16.mxu0 0
    %818 = vmatpush2.bf16.msra.mxu0 0
    %819 = vmatprep.subr.bf16.mxu0 0
    %820 = vmatpush2.bf16.msra.mxu0 0
    %821 = vmatprep.mubr.bf16.mxu0 0
    %822 = vmatmul.mubr.bf16.gmra.mxu0 %v787
    %v823 = vpop.f32.mrf.mxu0
    %v824 = vadd.f32 %v772, %v823
    %v825 = vpop.f32.mrf.mxu0
    %v826 = vpop.f32.mrf.mxu0
    %v827 = vadd.f32 %v772, %v826
    %v828 = vpop.f32.mrf.mxu0
    %829 = vdwg.mxu0
    %v830 = vpack.c.bf16 %v824, %v824
    %832 = vrot.lane.b32.xlu0 %v830, 96
    %v833 = vpop.permute.xlu0 %832
    %vm834 = vcmask 64512
    %v836 = vsel %vm834, %v830, 0
    %v839 = vsel %vm834, %v833, 0
    %841 = vmatprep.subr.bf16.mxu0 0
    %842 = vmatpush1.bf16.xpose.msra.mxu0 0
    %843 = vmatprep.subr.bf16.mxu0 0
    %844 = vmatpush1.bf16.xpose.msra.mxu0 0
    %845 = vmatprep.subr.bf16.mxu0 0
    %846 = vmatpush1.bf16.xpose.msra.mxu0 0
    %847 = vmatprep.subr.bf16.mxu0 0
    %848 = vmatpush1.bf16.xpose.msra.mxu0 0
    %849 = vmatprep.subr.bf16.mxu0 0
    %850 = vmatpush1.bf16.xpose.msra.mxu0 0
    %851 = vmatprep.subr.bf16.mxu0 0
    %852 = vmatpush1.bf16.xpose.msra.mxu0 0
    %853 = vmatprep.subr.bf16.mxu0 0
    %854 = vmatpush1.bf16.xpose.msra.mxu0 0
    %855 = vmatprep.subr.bf16.mxu0 0
    %856 = vmatpush1.bf16.xpose.msra.mxu0 %v839
    %857 = vmatprep.subr.bf16.mxu0 0
    %858 = vmatpush2.bf16.xpose.msra.mxu0 0
    %859 = vmatprep.subr.bf16.mxu0 0
    %860 = vmatpush2.bf16.xpose.msra.mxu0 0
    %861 = vmatprep.subr.bf16.mxu0 0
    %862 = vmatpush2.bf16.xpose.msra.mxu0 0
    %863 = vmatprep.subr.bf16.mxu0 0
    %864 = vmatpush2.bf16.xpose.msra.mxu0 0
    %865 = vmatprep.subr.bf16.mxu0 0
    %866 = vmatpush2.bf16.xpose.msra.mxu0 0
    %867 = vmatprep.subr.bf16.mxu0 0
    %868 = vmatpush2.bf16.xpose.msra.mxu0 0
    %869 = vmatprep.subr.bf16.mxu0 0
    %870 = vmatpush2.bf16.xpose.msra.mxu0 0
    %871 = vmatprep.subr.bf16.mxu0 0
    %872 = vmatpush2.bf16.xpose.msra.mxu0 0
    %873 = vmatprep.mubr.bf16.mxu0 0
    %874 = vmatmul.mubr.bf16.gmra.mxu0 %v836
    %v875 = vpop.f32.mrf.mxu0
    %v876 = vadd.f32 0.0, %v875
    %v877 = vpop.f32.mrf.mxu0
    %v878 = vpop.f32.mrf.mxu0
    %v879 = vpop.f32.mrf.mxu0
    %880 = vdwg.mxu0
    %v881 = vmul.f32 %v876, 0.35355338
    %v882 = vlaneseq
    %v883 = vshrl.u32 %v882, 7
    %v884 = vsub.s32 0, %v883
    %v885 = vrot.slane %v761, %v884
    %v886 = vadd.f32 %v881, %v885
    %v887 = vsel %vm834, %v886, -inf
    %888 = vmax.xlane.f32.xlu0 %v887
    %v889 = vpop.xlane.xlu0 %888
    %v890 = vsub.f32 %v886, %v889
    %v891 = vmul.f32 %v890, 1.442695
    %v892 = vpow.pop %v891
    %v893 = vsel %vm834, %v892, 0.0
    %894 = vadd.xlane.f32.xlu0 %v893
    %v895 = vpop.xlane.xlu0 %894
    %v896 = vrcp.pop %v895
    %v897 = vmul.f32 %v892, %v896
    %v898 = vpack.c.bf16 %v897, %v897
    %899 = vrot.lane.b32.xlu0 %v830, 64
    %v900 = vpop.permute.xlu0 %899
    %v902 = vsel %vm834, %v898, 0
    %v905 = vsel %vm627, %v900, 0
    %907 = vmatprep.subr.bf16.mxu0 0
    %908 = vmatpush1.bf16.msra.mxu0 0
    %909 = vmatprep.subr.bf16.mxu0 0
    %910 = vmatpush1.bf16.msra.mxu0 0
    %911 = vmatprep.subr.bf16.mxu0 0
    %912 = vmatpush1.bf16.msra.mxu0 0
    %913 = vmatprep.subr.bf16.mxu0 0
    %914 = vmatpush1.bf16.msra.mxu0 0
    %915 = vmatprep.subr.bf16.mxu0 0
    %916 = vmatpush1.bf16.msra.mxu0 0
    %917 = vmatprep.subr.bf16.mxu0 0
    %918 = vmatpush1.bf16.msra.mxu0 0
    %919 = vmatprep.subr.bf16.mxu0 0
    %920 = vmatpush1.bf16.msra.mxu0 0
    %921 = vmatprep.subr.bf16.mxu0 0
    %922 = vmatpush1.bf16.msra.mxu0 %v905
    %923 = vmatprep.subr.bf16.mxu0 0
    %924 = vmatpush2.bf16.msra.mxu0 0
    %925 = vmatprep.subr.bf16.mxu0 0
    %926 = vmatpush2.bf16.msra.mxu0 0
    %927 = vmatprep.subr.bf16.mxu0 0
    %928 = vmatpush2.bf16.msra.mxu0 0
    %929 = vmatprep.subr.bf16.mxu0 0
    %930 = vmatpush2.bf16.msra.mxu0 0
    %931 = vmatprep.subr.bf16.mxu0 0
    %932 = vmatpush2.bf16.msra.mxu0 0
    %933 = vmatprep.subr.bf16.mxu0 0
    %934 = vmatpush2.bf16.msra.mxu0 0
    %935 = vmatprep.subr.bf16.mxu0 0
    %936 = vmatpush2.bf16.msra.mxu0 0
    %937 = vmatprep.subr.bf16.mxu0 0
    %938 = vmatpush2.bf16.msra.mxu0 0
    %939 = vmatprep.mubr.bf16.mxu0 0
    %940 = vmatmul.mubr.bf16.gmra.mxu0 %v902
    %v941 = vpop.f32.mrf.mxu0
    %v942 = vadd.f32 0.0, %v941
    %v943 = vpop.f32.mrf.mxu0
    %v944 = vpop.f32.mrf.mxu0
    %v945 = vpop.f32.mrf.mxu0
    %946 = vdwg.mxu0
    %947 = vrot.lane.b32.xlu0 %v830, 120
    %v948 = vpop.permute.xlu0 %947
    %949 = vrot.lane.b32.xlu0 %v830, 88
    %v950 = vpop.permute.xlu0 %949
    %v952 = vsel %vm834, %v948, 0
    %v955 = vsel %vm834, %v950, 0
    %957 = vmatprep.subr.bf16.mxu0 0
    %958 = vmatpush1.bf16.xpose.msra.mxu0 0
    %959 = vmatprep.subr.bf16.mxu0 0
    %960 = vmatpush1.bf16.xpose.msra.mxu0 0
    %961 = vmatprep.subr.bf16.mxu0 0
    %962 = vmatpush1.bf16.xpose.msra.mxu0 0
    %963 = vmatprep.subr.bf16.mxu0 0
    %964 = vmatpush1.bf16.xpose.msra.mxu0 0
    %965 = vmatprep.subr.bf16.mxu0 0
    %966 = vmatpush1.bf16.xpose.msra.mxu0 0
    %967 = vmatprep.subr.bf16.mxu0 0
    %968 = vmatpush1.bf16.xpose.msra.mxu0 0
    %969 = vmatprep.subr.bf16.mxu0 0
    %970 = vmatpush1.bf16.xpose.msra.mxu0 0
    %971 = vmatprep.subr.bf16.mxu0 0
    %972 = vmatpush1.bf16.xpose.msra.mxu0 %v955
    %973 = vmatprep.subr.bf16.mxu0 0
    %974 = vmatpush2.bf16.xpose.msra.mxu0 0
    %975 = vmatprep.subr.bf16.mxu0 0
    %976 = vmatpush2.bf16.xpose.msra.mxu0 0
    %977 = vmatprep.subr.bf16.mxu0 0
    %978 = vmatpush2.bf16.xpose.msra.mxu0 0
    %979 = vmatprep.subr.bf16.mxu0 0
    %980 = vmatpush2.bf16.xpose.msra.mxu0 0
    %981 = vmatprep.subr.bf16.mxu0 0
    %982 = vmatpush2.bf16.xpose.msra.mxu0 0
    %983 = vmatprep.subr.bf16.mxu0 0
    %984 = vmatpush2.bf16.xpose.msra.mxu0 0
    %985 = vmatprep.subr.bf16.mxu0 0
    %986 = vmatpush2.bf16.xpose.msra.mxu0 0
    %987 = vmatprep.subr.bf16.mxu0 0
    %988 = vmatpush2.bf16.xpose.msra.mxu0 0
    %989 = vmatprep.mubr.bf16.mxu0 0
    %990 = vmatmul.mubr.bf16.gmra.mxu0 %v952
    %v991 = vpop.f32.mrf.mxu0
    %v992 = vadd.f32 0.0, %v991
    %v993 = vpop.f32.mrf.mxu0
    %v994 = vpop.f32.mrf.mxu0
    %v995 = vpop.f32.mrf.mxu0
    %996 = vdwg.mxu0
    %v997 = vmul.f32 %v992, 0.35355338
    %v998 = vadd.f32 %v997, %v885
    %v999 = vsel %vm834, %v998, -inf
    %1000 = vmax.xlane.f32.xlu0 %v999
    %v1001 = vpop.xlane.xlu0 %1000
    %v1002 = vsub.f32 %v998, %v1001
    %v1003 = vmul.f32 %v1002, 1.442695
    %v1004 = vpow.pop %v1003
    %v1005 = vsel %vm834, %v1004, 0.0
    %1006 = vadd.xlane.f32.xlu0 %v1005
    %v1007 = vpop.xlane.xlu0 %1006
    %v1008 = vrcp.pop %v1007
    %v1009 = vmul.f32 %v1004, %v1008
    %v1010 = vpack.c.bf16 %v1009, %v1009
    %1011 = vrot.lane.b32.xlu0 %v830, 56
    %v1012 = vpop.permute.xlu0 %1011
    %v1014 = vsel %vm834, %v1010, 0
    %v1017 = vsel %vm627, %v1012, 0
    %1019 = vmatprep.subr.bf16.mxu0 0
    %1020 = vmatpush1.bf16.msra.mxu0 0
    %1021 = vmatprep.subr.bf16.mxu0 0
    %1022 = vmatpush1.bf16.msra.mxu0 0
    %1023 = vmatprep.subr.bf16.mxu0 0
    %1024 = vmatpush1.bf16.msra.mxu0 0
    %1025 = vmatprep.subr.bf16.mxu0 0
    %1026 = vmatpush1.bf16.msra.mxu0 0
    %1027 = vmatprep.subr.bf16.mxu0 0
    %1028 = vmatpush1.bf16.msra.mxu0 0
    %1029 = vmatprep.subr.bf16.mxu0 0
    %1030 = vmatpush1.bf16.msra.mxu0 0
    %1031 = vmatprep.subr.bf16.mxu0 0
    %1032 = vmatpush1.bf16.msra.mxu0 0
    %1033 = vmatprep.subr.bf16.mxu0 0
    %1034 = vmatpush1.bf16.msra.mxu0 %v1017
    %1035 = vmatprep.subr.bf16.mxu0 0
    %1036 = vmatpush2.bf16.msra.mxu0 0
    %1037 = vmatprep.subr.bf16.mxu0 0
    %1038 = vmatpush2.bf16.msra.mxu0 0
    %1039 = vmatprep.subr.bf16.mxu0 0
    %1040 = vmatpush2.bf16.msra.mxu0 0
    %1041 = vmatprep.subr.bf16.mxu0 0
    %1042 = vmatpush2.bf16.msra.mxu0 0
    %1043 = vmatprep.subr.bf16.mxu0 0
    %1044 = vmatpush2.bf16.msra.mxu0 0
    %1045 = vmatprep.subr.bf16.mxu0 0
    %1046 = vmatpush2.bf16.msra.mxu0 0
    %1047 = vmatprep.subr.bf16.mxu0 0
    %1048 = vmatpush2.bf16.msra.mxu0 0
    %1049 = vmatprep.subr.bf16.mxu0 0
    %1050 = vmatpush2.bf16.msra.mxu0 0
    %1051 = vmatprep.mubr.bf16.mxu0 0
    %1052 = vmatmul.mubr.bf16.gmra.mxu0 %v1014
    %v1053 = vpop.f32.mrf.mxu0
    %v1054 = vadd.f32 0.0, %v1053
    %v1055 = vpop.f32.mrf.mxu0
    %v1056 = vpop.f32.mrf.mxu0
    %v1057 = vpop.f32.mrf.mxu0
    %1058 = vdwg.mxu0
    %1059 = vrot.lane.b32.xlu0 %v830, 112
    %v1060 = vpop.permute.xlu0 %1059
    %1061 = vrot.lane.b32.xlu0 %v830, 80
    %v1062 = vpop.permute.xlu0 %1061
    %v1064 = vsel %vm834, %v1060, 0
    %v1067 = vsel %vm834, %v1062, 0
    %1069 = vmatprep.subr.bf16.mxu0 0
    %1070 = vmatpush1.bf16.xpose.msra.mxu0 0
    %1071 = vmatprep.subr.bf16.mxu0 0
    %1072 = vmatpush1.bf16.xpose.msra.mxu0 0
    %1073 = vmatprep.subr.bf16.mxu0 0
    %1074 = vmatpush1.bf16.xpose.msra.mxu0 0
    %1075 = vmatprep.subr.bf16.mxu0 0
    %1076 = vmatpush1.bf16.xpose.msra.mxu0 0
    %1077 = vmatprep.subr.bf16.mxu0 0
    %1078 = vmatpush1.bf16.xpose.msra.mxu0 0
    %1079 = vmatprep.subr.bf16.mxu0 0
    %1080 = vmatpush1.bf16.xpose.msra.mxu0 0
    %1081 = vmatprep.subr.bf16.mxu0 0
    %1082 = vmatpush1.bf16.xpose.msra.mxu0 0
    %1083 = vmatprep.subr.bf16.mxu0 0
    %1084 = vmatpush1.bf16.xpose.msra.mxu0 %v1067
    %1085 = vmatprep.subr.bf16.mxu0 0
    %1086 = vmatpush2.bf16.xpose.msra.mxu0 0
    %1087 = vmatprep.subr.bf16.mxu0 0
    %1088 = vmatpush2.bf16.xpose.msra.mxu0 0
    %1089 = vmatprep.subr.bf16.mxu0 0
    %1090 = vmatpush2.bf16.xpose.msra.mxu0 0
    %1091 = vmatprep.subr.bf16.mxu0 0
    %1092 = vmatpush2.bf16.xpose.msra.mxu0 0
    %1093 = vmatprep.subr.bf16.mxu0 0
    %1094 = vmatpush2.bf16.xpose.msra.mxu0 0
    %1095 = vmatprep.subr.bf16.mxu0 0
    %1096 = vmatpush2.bf16.xpose.msra.mxu0 0
    %1097 = vmatprep.subr.bf16.mxu0 0
    %1098 = vmatpush2.bf16.xpose.msra.mxu0 0
    %1099 = vmatprep.subr.bf16.mxu0 0
    %1100 = vmatpush2.bf16.xpose.msra.mxu0 0
    %1101 = vmatprep.mubr.bf16.mxu0 0
    %1102 = vmatmul.mubr.bf16.gmra.mxu0 %v1064
    %v1103 = vpop.f32.mrf.mxu0
    %v1104 = vadd.f32 0.0, %v1103
    %v1105 = vpop.f32.mrf.mxu0
    %v1106 = vpop.f32.mrf.mxu0
    %v1107 = vpop.f32.mrf.mxu0
    %1108 = vdwg.mxu0
    %v1109 = vmul.f32 %v1104, 0.35355338
    %v1110 = vadd.f32 %v1109, %v885
    %v1111 = vsel %vm834, %v1110, -inf
    %1112 = vmax.xlane.f32.xlu0 %v1111
    %v1113 = vpop.xlane.xlu0 %1112
    %v1114 = vsub.f32 %v1110, %v1113
    %v1115 = vmul.f32 %v1114, 1.442695
    %v1116 = vpow.pop %v1115
    %v1117 = vsel %vm834, %v1116, 0.0
    %1118 = vadd.xlane.f32.xlu0 %v1117
    %v1119 = vpop.xlane.xlu0 %1118
    %v1120 = vrcp.pop %v1119
    %v1121 = vmul.f32 %v1116, %v1120
    %v1122 = vpack.c.bf16 %v1121, %v1121
    %1123 = vrot.lane.b32.xlu0 %v830, 48
    %v1124 = vpop.permute.xlu0 %1123
    %v1126 = vsel %vm834, %v1122, 0
    %v1129 = vsel %vm627, %v1124, 0
    %1131 = vmatprep.subr.bf16.mxu0 0
    %1132 = vmatpush1.bf16.msra.mxu0 0
    %1133 = vmatprep.subr.bf16.mxu0 0
    %1134 = vmatpush1.bf16.msra.mxu0 0
    %1135 = vmatprep.subr.bf16.mxu0 0
    %1136 = vmatpush1.bf16.msra.mxu0 0
    %1137 = vmatprep.subr.bf16.mxu0 0
    %1138 = vmatpush1.bf16.msra.mxu0 0
    %1139 = vmatprep.subr.bf16.mxu0 0
    %1140 = vmatpush1.bf16.msra.mxu0 0
    %1141 = vmatprep.subr.bf16.mxu0 0
    %1142 = vmatpush1.bf16.msra.mxu0 0
    %1143 = vmatprep.subr.bf16.mxu0 0
    %1144 = vmatpush1.bf16.msra.mxu0 0
    %1145 = vmatprep.subr.bf16.mxu0 0
    %1146 = vmatpush1.bf16.msra.mxu0 %v1129
    %1147 = vmatprep.subr.bf16.mxu0 0
    %1148 = vmatpush2.bf16.msra.mxu0 0
    %1149 = vmatprep.subr.bf16.mxu0 0
    %1150 = vmatpush2.bf16.msra.mxu0 0
    %1151 = vmatprep.subr.bf16.mxu0 0
    %1152 = vmatpush2.bf16.msra.mxu0 0
    %1153 = vmatprep.subr.bf16.mxu0 0
    %1154 = vmatpush2.bf16.msra.mxu0 0
    %1155 = vmatprep.subr.bf16.mxu0 0
    %1156 = vmatpush2.bf16.msra.mxu0 0
    %1157 = vmatprep.subr.bf16.mxu0 0
    %1158 = vmatpush2.bf16.msra.mxu0 0
    %1159 = vmatprep.subr.bf16.mxu0 0
    %1160 = vmatpush2.bf16.msra.mxu0 0
    %1161 = vmatprep.subr.bf16.mxu0 0
    %1162 = vmatpush2.bf16.msra.mxu0 0
    %1163 = vmatprep.mubr.bf16.mxu0 0
    %1164 = vmatmul.mubr.bf16.gmra.mxu0 %v1126
    %v1165 = vpop.f32.mrf.mxu0
    %v1166 = vadd.f32 0.0, %v1165
    %v1167 = vpop.f32.mrf.mxu0
    %v1168 = vpop.f32.mrf.mxu0
    %v1169 = vpop.f32.mrf.mxu0
    %1170 = vdwg.mxu0
    %1171 = vrot.lane.b32.xlu0 %v830, 104
    %v1172 = vpop.permute.xlu0 %1171
    %1173 = vrot.lane.b32.xlu0 %v830, 72
    %v1174 = vpop.permute.xlu0 %1173
    %v1176 = vsel %vm834, %v1172, 0
    %v1179 = vsel %vm834, %v1174, 0
    %1181 = vmatprep.subr.bf16.mxu0 0
    %1182 = vmatpush1.bf16.xpose.msra.mxu0 0
    %1183 = vmatprep.subr.bf16.mxu0 0
    %1184 = vmatpush1.bf16.xpose.msra.mxu0 0
    %1185 = vmatprep.subr.bf16.mxu0 0
    %1186 = vmatpush1.bf16.xpose.msra.mxu0 0
    %1187 = vmatprep.subr.bf16.mxu0 0
    %1188 = vmatpush1.bf16.xpose.msra.mxu0 0
    %1189 = vmatprep.subr.bf16.mxu0 0
    %1190 = vmatpush1.bf16.xpose.msra.mxu0 0
    %1191 = vmatprep.subr.bf16.mxu0 0
    %1192 = vmatpush1.bf16.xpose.msra.mxu0 0
    %1193 = vmatprep.subr.bf16.mxu0 0
    %1194 = vmatpush1.bf16.xpose.msra.mxu0 0
    %1195 = vmatprep.subr.bf16.mxu0 0
    %1196 = vmatpush1.bf16.xpose.msra.mxu0 %v1179
    %1197 = vmatprep.subr.bf16.mxu0 0
    %1198 = vmatpush2.bf16.xpose.msra.mxu0 0
    %1199 = vmatprep.subr.bf16.mxu0 0
    %1200 = vmatpush2.bf16.xpose.msra.mxu0 0
    %1201 = vmatprep.subr.bf16.mxu0 0
    %1202 = vmatpush2.bf16.xpose.msra.mxu0 0
    %1203 = vmatprep.subr.bf16.mxu0 0
    %1204 = vmatpush2.bf16.xpose.msra.mxu0 0
    %1205 = vmatprep.subr.bf16.mxu0 0
    %1206 = vmatpush2.bf16.xpose.msra.mxu0 0
    %1207 = vmatprep.subr.bf16.mxu0 0
    %1208 = vmatpush2.bf16.xpose.msra.mxu0 0
    %1209 = vmatprep.subr.bf16.mxu0 0
    %1210 = vmatpush2.bf16.xpose.msra.mxu0 0
    %1211 = vmatprep.subr.bf16.mxu0 0
    %1212 = vmatpush2.bf16.xpose.msra.mxu0 0
    %1213 = vmatprep.mubr.bf16.mxu0 0
    %1214 = vmatmul.mubr.bf16.gmra.mxu0 %v1176
    %v1215 = vpop.f32.mrf.mxu0
    %v1216 = vadd.f32 0.0, %v1215
    %v1217 = vpop.f32.mrf.mxu0
    %v1218 = vpop.f32.mrf.mxu0
    %v1219 = vpop.f32.mrf.mxu0
    %1220 = vdwg.mxu0
    %v1221 = vmul.f32 %v1216, 0.35355338
    %v1222 = vadd.f32 %v1221, %v885
    %v1223 = vsel %vm834, %v1222, -inf
    %1224 = vmax.xlane.f32.xlu0 %v1223
    %v1225 = vpop.xlane.xlu0 %1224
    %v1226 = vsub.f32 %v1222, %v1225
    %v1227 = vmul.f32 %v1226, 1.442695
    %v1228 = vpow.pop %v1227
    %v1229 = vsel %vm834, %v1228, 0.0
    %1230 = vadd.xlane.f32.xlu0 %v1229
    %v1231 = vpop.xlane.xlu0 %1230
    %v1232 = vrcp.pop %v1231
    %v1233 = vmul.f32 %v1228, %v1232
    %v1234 = vpack.c.bf16 %v1233, %v1233
    %1235 = vrot.lane.b32.xlu0 %v830, 40
    %v1236 = vpop.permute.xlu0 %1235
    %v1238 = vsel %vm834, %v1234, 0
    %v1241 = vsel %vm627, %v1236, 0
    %1243 = vmatprep.subr.bf16.mxu0 0
    %1244 = vmatpush1.bf16.msra.mxu0 0
    %1245 = vmatprep.subr.bf16.mxu0 0
    %1246 = vmatpush1.bf16.msra.mxu0 0
    %1247 = vmatprep.subr.bf16.mxu0 0
    %1248 = vmatpush1.bf16.msra.mxu0 0
    %1249 = vmatprep.subr.bf16.mxu0 0
    %1250 = vmatpush1.bf16.msra.mxu0 0
    %1251 = vmatprep.subr.bf16.mxu0 0
    %1252 = vmatpush1.bf16.msra.mxu0 0
    %1253 = vmatprep.subr.bf16.mxu0 0
    %1254 = vmatpush1.bf16.msra.mxu0 0
    %1255 = vmatprep.subr.bf16.mxu0 0
    %1256 = vmatpush1.bf16.msra.mxu0 0
    %1257 = vmatprep.subr.bf16.mxu0 0
    %1258 = vmatpush1.bf16.msra.mxu0 %v1241
    %1259 = vmatprep.subr.bf16.mxu0 0
    %1260 = vmatpush2.bf16.msra.mxu0 0
    %1261 = vmatprep.subr.bf16.mxu0 0
    %1262 = vmatpush2.bf16.msra.mxu0 0
    %1263 = vmatprep.subr.bf16.mxu0 0
    %1264 = vmatpush2.bf16.msra.mxu0 0
    %1265 = vmatprep.subr.bf16.mxu0 0
    %1266 = vmatpush2.bf16.msra.mxu0 0
    %1267 = vmatprep.subr.bf16.mxu0 0
    %1268 = vmatpush2.bf16.msra.mxu0 0
    %1269 = vmatprep.subr.bf16.mxu0 0
    %1270 = vmatpush2.bf16.msra.mxu0 0
    %1271 = vmatprep.subr.bf16.mxu0 0
    %1272 = vmatpush2.bf16.msra.mxu0 0
    %1273 = vmatprep.subr.bf16.mxu0 0
    %1274 = vmatpush2.bf16.msra.mxu0 0
    %1275 = vmatprep.mubr.bf16.mxu0 0
    %1276 = vmatmul.mubr.bf16.gmra.mxu0 %v1238
    %v1277 = vpop.f32.mrf.mxu0
    %v1278 = vadd.f32 0.0, %v1277
    %v1279 = vpop.f32.mrf.mxu0
    %v1280 = vpop.f32.mrf.mxu0
    %v1281 = vpop.f32.mrf.mxu0
    %1282 = vdwg.mxu0
    %1284 = vrot.lane.b32.xlu0 %v1054, 8
    %v1285 = vpop.permute.xlu0 %1284
    %1288 = vrot.lane.b32.xlu0 %v1166, 16
    %v1289 = vpop.permute.xlu0 %1288
    %1292 = vrot.lane.b32.xlu0 %v1278, 24
    %v1293 = vpop.permute.xlu0 %1292
    %v1295 = vsel %vm834, %v942, %v1285
    %vm1296 = vcmask 130048
    %v1297 = vsel %vm1296, %v1295, %v1289
    %vm1298 = vcmask 195584
    %v1299 = vsel %vm1298, %v1297, %v1293
    %v1300 = vpack.c.bf16 %v827, %v827
    %1302 = vrot.lane.b32.xlu0 %v1300, 96
    %v1303 = vpop.permute.xlu0 %1302
    %v1305 = vsel %vm834, %v1300, 0
    %v1308 = vsel %vm834, %v1303, 0
    %1310 = vmatprep.subr.bf16.mxu0 0
    %1311 = vmatpush1.bf16.xpose.msra.mxu0 0
    %1312 = vmatprep.subr.bf16.mxu0 0
    %1313 = vmatpush1.bf16.xpose.msra.mxu0 0
    %1314 = vmatprep.subr.bf16.mxu0 0
    %1315 = vmatpush1.bf16.xpose.msra.mxu0 0
    %1316 = vmatprep.subr.bf16.mxu0 0
    %1317 = vmatpush1.bf16.xpose.msra.mxu0 0
    %1318 = vmatprep.subr.bf16.mxu0 0
    %1319 = vmatpush1.bf16.xpose.msra.mxu0 0
    %1320 = vmatprep.subr.bf16.mxu0 0
    %1321 = vmatpush1.bf16.xpose.msra.mxu0 0
    %1322 = vmatprep.subr.bf16.mxu0 0
    %1323 = vmatpush1.bf16.xpose.msra.mxu0 0
    %1324 = vmatprep.subr.bf16.mxu0 0
    %1325 = vmatpush1.bf16.xpose.msra.mxu0 %v1308
    %1326 = vmatprep.subr.bf16.mxu0 0
    %1327 = vmatpush2.bf16.xpose.msra.mxu0 0
    %1328 = vmatprep.subr.bf16.mxu0 0
    %1329 = vmatpush2.bf16.xpose.msra.mxu0 0
    %1330 = vmatprep.subr.bf16.mxu0 0
    %1331 = vmatpush2.bf16.xpose.msra.mxu0 0
    %1332 = vmatprep.subr.bf16.mxu0 0
    %1333 = vmatpush2.bf16.xpose.msra.mxu0 0
    %1334 = vmatprep.subr.bf16.mxu0 0
    %1335 = vmatpush2.bf16.xpose.msra.mxu0 0
    %1336 = vmatprep.subr.bf16.mxu0 0
    %1337 = vmatpush2.bf16.xpose.msra.mxu0 0
    %1338 = vmatprep.subr.bf16.mxu0 0
    %1339 = vmatpush2.bf16.xpose.msra.mxu0 0
    %1340 = vmatprep.subr.bf16.mxu0 0
    %1341 = vmatpush2.bf16.xpose.msra.mxu0 0
    %1342 = vmatprep.mubr.bf16.mxu0 0
    %1343 = vmatmul.mubr.bf16.gmra.mxu0 %v1305
    %v1344 = vpop.f32.mrf.mxu0
    %v1345 = vadd.f32 0.0, %v1344
    %v1346 = vpop.f32.mrf.mxu0
    %v1347 = vpop.f32.mrf.mxu0
    %v1348 = vpop.f32.mrf.mxu0
    %1349 = vdwg.mxu0
    %v1350 = vmul.f32 %v1345, 0.35355338
    %v1351 = vlaneseq
    %v1352 = vshrl.u32 %v1351, 7
    %v1353 = vsub.s32 1, %v1352
    %v1354 = vrot.slane %v761, %v1353
    %v1355 = vadd.f32 %v1350, %v1354
    %v1356 = vsel %vm834, %v1355, -inf
    %1357 = vmax.xlane.f32.xlu0 %v1356
    %v1358 = vpop.xlane.xlu0 %1357
    %v1359 = vsub.f32 %v1355, %v1358
    %v1360 = vmul.f32 %v1359, 1.442695
    %v1361 = vpow.pop %v1360
    %v1362 = vsel %vm834, %v1361, 0.0
    %1363 = vadd.xlane.f32.xlu0 %v1362
    %v1364 = vpop.xlane.xlu0 %1363
    %v1365 = vrcp.pop %v1364
    %v1366 = vmul.f32 %v1361, %v1365
    %v1367 = vpack.c.bf16 %v1366, %v1366
    %1368 = vrot.lane.b32.xlu0 %v1300, 64
    %v1369 = vpop.permute.xlu0 %1368
    %v1371 = vsel %vm834, %v1367, 0
    %v1374 = vsel %vm627, %v1369, 0
    %1376 = vmatprep.subr.bf16.mxu0 0
    %1377 = vmatpush1.bf16.msra.mxu0 0
    %1378 = vmatprep.subr.bf16.mxu0 0
    %1379 = vmatpush1.bf16.msra.mxu0 0
    %1380 = vmatprep.subr.bf16.mxu0 0
    %1381 = vmatpush1.bf16.msra.mxu0 0
    %1382 = vmatprep.subr.bf16.mxu0 0
    %1383 = vmatpush1.bf16.msra.mxu0 0
    %1384 = vmatprep.subr.bf16.mxu0 0
    %1385 = vmatpush1.bf16.msra.mxu0 0
    %1386 = vmatprep.subr.bf16.mxu0 0
    %1387 = vmatpush1.bf16.msra.mxu0 0
    %1388 = vmatprep.subr.bf16.mxu0 0
    %1389 = vmatpush1.bf16.msra.mxu0 0
    %1390 = vmatprep.subr.bf16.mxu0 0
    %1391 = vmatpush1.bf16.msra.mxu0 %v1374
    %1392 = vmatprep.subr.bf16.mxu0 0
    %1393 = vmatpush2.bf16.msra.mxu0 0
    %1394 = vmatprep.subr.bf16.mxu0 0
    %1395 = vmatpush2.bf16.msra.mxu0 0
    %1396 = vmatprep.subr.bf16.mxu0 0
    %1397 = vmatpush2.bf16.msra.mxu0 0
    %1398 = vmatprep.subr.bf16.mxu0 0
    %1399 = vmatpush2.bf16.msra.mxu0 0
    %1400 = vmatprep.subr.bf16.mxu0 0
    %1401 = vmatpush2.bf16.msra.mxu0 0
    %1402 = vmatprep.subr.bf16.mxu0 0
    %1403 = vmatpush2.bf16.msra.mxu0 0
    %1404 = vmatprep.subr.bf16.mxu0 0
    %1405 = vmatpush2.bf16.msra.mxu0 0
    %1406 = vmatprep.subr.bf16.mxu0 0
    %1407 = vmatpush2.bf16.msra.mxu0 0
    %1408 = vmatprep.mubr.bf16.mxu0 0
    %1409 = vmatmul.mubr.bf16.gmra.mxu0 %v1371
    %v1410 = vpop.f32.mrf.mxu0
    %v1411 = vadd.f32 0.0, %v1410
    %v1412 = vpop.f32.mrf.mxu0
    %v1413 = vpop.f32.mrf.mxu0
    %v1414 = vpop.f32.mrf.mxu0
    %1415 = vdwg.mxu0
    %1416 = vrot.lane.b32.xlu0 %v1300, 120
    %v1417 = vpop.permute.xlu0 %1416
    %1418 = vrot.lane.b32.xlu0 %v1300, 88
    %v1419 = vpop.permute.xlu0 %1418
    %v1421 = vsel %vm834, %v1417, 0
    %v1424 = vsel %vm834, %v1419, 0
    %1426 = vmatprep.subr.bf16.mxu0 0
    %1427 = vmatpush1.bf16.xpose.msra.mxu0 0
    %1428 = vmatprep.subr.bf16.mxu0 0
    %1429 = vmatpush1.bf16.xpose.msra.mxu0 0
    %1430 = vmatprep.subr.bf16.mxu0 0
    %1431 = vmatpush1.bf16.xpose.msra.mxu0 0
    %1432 = vmatprep.subr.bf16.mxu0 0
    %1433 = vmatpush1.bf16.xpose.msra.mxu0 0
    %1434 = vmatprep.subr.bf16.mxu0 0
    %1435 = vmatpush1.bf16.xpose.msra.mxu0 0
    %1436 = vmatprep.subr.bf16.mxu0 0
    %1437 = vmatpush1.bf16.xpose.msra.mxu0 0
    %1438 = vmatprep.subr.bf16.mxu0 0
    %1439 = vmatpush1.bf16.xpose.msra.mxu0 0
    %1440 = vmatprep.subr.bf16.mxu0 0
    %1441 = vmatpush1.bf16.xpose.msra.mxu0 %v1424
    %1442 = vmatprep.subr.bf16.mxu0 0
    %1443 = vmatpush2.bf16.xpose.msra.mxu0 0
    %1444 = vmatprep.subr.bf16.mxu0 0
    %1445 = vmatpush2.bf16.xpose.msra.mxu0 0
    %1446 = vmatprep.subr.bf16.mxu0 0
    %1447 = vmatpush2.bf16.xpose.msra.mxu0 0
    %1448 = vmatprep.subr.bf16.mxu0 0
    %1449 = vmatpush2.bf16.xpose.msra.mxu0 0
    %1450 = vmatprep.subr.bf16.mxu0 0
    %1451 = vmatpush2.bf16.xpose.msra.mxu0 0
    %1452 = vmatprep.subr.bf16.mxu0 0
    %1453 = vmatpush2.bf16.xpose.msra.mxu0 0
    %1454 = vmatprep.subr.bf16.mxu0 0
    %1455 = vmatpush2.bf16.xpose.msra.mxu0 0
    %1456 = vmatprep.subr.bf16.mxu0 0
    %1457 = vmatpush2.bf16.xpose.msra.mxu0 0
    %1458 = vmatprep.mubr.bf16.mxu0 0
    %1459 = vmatmul.mubr.bf16.gmra.mxu0 %v1421
    %v1460 = vpop.f32.mrf.mxu0
    %v1461 = vadd.f32 0.0, %v1460
    %v1462 = vpop.f32.mrf.mxu0
    %v1463 = vpop.f32.mrf.mxu0
    %v1464 = vpop.f32.mrf.mxu0
    %1465 = vdwg.mxu0
    %v1466 = vmul.f32 %v1461, 0.35355338
    %v1467 = vadd.f32 %v1466, %v1354
    %v1468 = vsel %vm834, %v1467, -inf
    %1469 = vmax.xlane.f32.xlu0 %v1468
    %v1470 = vpop.xlane.xlu0 %1469
    %v1471 = vsub.f32 %v1467, %v1470
    %v1472 = vmul.f32 %v1471, 1.442695
    %v1473 = vpow.pop %v1472
    %v1474 = vsel %vm834, %v1473, 0.0
    %1475 = vadd.xlane.f32.xlu0 %v1474
    %v1476 = vpop.xlane.xlu0 %1475
    %v1477 = vrcp.pop %v1476
    %v1478 = vmul.f32 %v1473, %v1477
    %v1479 = vpack.c.bf16 %v1478, %v1478
    %1480 = vrot.lane.b32.xlu0 %v1300, 56
    %v1481 = vpop.permute.xlu0 %1480
    %v1483 = vsel %vm834, %v1479, 0
    %v1486 = vsel %vm627, %v1481, 0
    %1488 = vmatprep.subr.bf16.mxu0 0
    %1489 = vmatpush1.bf16.msra.mxu0 0
    %1490 = vmatprep.subr.bf16.mxu0 0
    %1491 = vmatpush1.bf16.msra.mxu0 0
    %1492 = vmatprep.subr.bf16.mxu0 0
    %1493 = vmatpush1.bf16.msra.mxu0 0
    %1494 = vmatprep.subr.bf16.mxu0 0
    %1495 = vmatpush1.bf16.msra.mxu0 0
    %1496 = vmatprep.subr.bf16.mxu0 0
    %1497 = vmatpush1.bf16.msra.mxu0 0
    %1498 = vmatprep.subr.bf16.mxu0 0
    %1499 = vmatpush1.bf16.msra.mxu0 0
    %1500 = vmatprep.subr.bf16.mxu0 0
    %1501 = vmatpush1.bf16.msra.mxu0 0
    %1502 = vmatprep.subr.bf16.mxu0 0
    %1503 = vmatpush1.bf16.msra.mxu0 %v1486
    %1504 = vmatprep.subr.bf16.mxu0 0
    %1505 = vmatpush2.bf16.msra.mxu0 0
    %1506 = vmatprep.subr.bf16.mxu0 0
    %1507 = vmatpush2.bf16.msra.mxu0 0
    %1508 = vmatprep.subr.bf16.mxu0 0
    %1509 = vmatpush2.bf16.msra.mxu0 0
    %1510 = vmatprep.subr.bf16.mxu0 0
    %1511 = vmatpush2.bf16.msra.mxu0 0
    %1512 = vmatprep.subr.bf16.mxu0 0
    %1513 = vmatpush2.bf16.msra.mxu0 0
    %1514 = vmatprep.subr.bf16.mxu0 0
    %1515 = vmatpush2.bf16.msra.mxu0 0
    %1516 = vmatprep.subr.bf16.mxu0 0
    %1517 = vmatpush2.bf16.msra.mxu0 0
    %1518 = vmatprep.subr.bf16.mxu0 0
    %1519 = vmatpush2.bf16.msra.mxu0 0
    %1520 = vmatprep.mubr.bf16.mxu0 0
    %1521 = vmatmul.mubr.bf16.gmra.mxu0 %v1483
    %v1522 = vpop.f32.mrf.mxu0
    %v1523 = vadd.f32 0.0, %v1522
    %v1524 = vpop.f32.mrf.mxu0
    %v1525 = vpop.f32.mrf.mxu0
    %v1526 = vpop.f32.mrf.mxu0
    %1527 = vdwg.mxu0
    %1528 = vrot.lane.b32.xlu0 %v1300, 112
    %v1529 = vpop.permute.xlu0 %1528
    %1530 = vrot.lane.b32.xlu0 %v1300, 80
    %v1531 = vpop.permute.xlu0 %1530
    %v1533 = vsel %vm834, %v1529, 0
    %v1536 = vsel %vm834, %v1531, 0
    %1538 = vmatprep.subr.bf16.mxu0 0
    %1539 = vmatpush1.bf16.xpose.msra.mxu0 0
    %1540 = vmatprep.subr.bf16.mxu0 0
    %1541 = vmatpush1.bf16.xpose.msra.mxu0 0
    %1542 = vmatprep.subr.bf16.mxu0 0
    %1543 = vmatpush1.bf16.xpose.msra.mxu0 0
    %1544 = vmatprep.subr.bf16.mxu0 0
    %1545 = vmatpush1.bf16.xpose.msra.mxu0 0
    %1546 = vmatprep.subr.bf16.mxu0 0
    %1547 = vmatpush1.bf16.xpose.msra.mxu0 0
    %1548 = vmatprep.subr.bf16.mxu0 0
    %1549 = vmatpush1.bf16.xpose.msra.mxu0 0
    %1550 = vmatprep.subr.bf16.mxu0 0
    %1551 = vmatpush1.bf16.xpose.msra.mxu0 0
    %1552 = vmatprep.subr.bf16.mxu0 0
    %1553 = vmatpush1.bf16.xpose.msra.mxu0 %v1536
    %1554 = vmatprep.subr.bf16.mxu0 0
    %1555 = vmatpush2.bf16.xpose.msra.mxu0 0
    %1556 = vmatprep.subr.bf16.mxu0 0
    %1557 = vmatpush2.bf16.xpose.msra.mxu0 0
    %1558 = vmatprep.subr.bf16.mxu0 0
    %1559 = vmatpush2.bf16.xpose.msra.mxu0 0
    %1560 = vmatprep.subr.bf16.mxu0 0
    %1561 = vmatpush2.bf16.xpose.msra.mxu0 0
    %1562 = vmatprep.subr.bf16.mxu0 0
    %1563 = vmatpush2.bf16.xpose.msra.mxu0 0
    %1564 = vmatprep.subr.bf16.mxu0 0
    %1565 = vmatpush2.bf16.xpose.msra.mxu0 0
    %1566 = vmatprep.subr.bf16.mxu0 0
    %1567 = vmatpush2.bf16.xpose.msra.mxu0 0
    %1568 = vmatprep.subr.bf16.mxu0 0
    %1569 = vmatpush2.bf16.xpose.msra.mxu0 0
    %1570 = vmatprep.mubr.bf16.mxu0 0
    %1571 = vmatmul.mubr.bf16.gmra.mxu0 %v1533
    %v1572 = vpop.f32.mrf.mxu0
    %v1573 = vadd.f32 0.0, %v1572
    %v1574 = vpop.f32.mrf.mxu0
    %v1575 = vpop.f32.mrf.mxu0
    %v1576 = vpop.f32.mrf.mxu0
    %1577 = vdwg.mxu0
    %v1578 = vmul.f32 %v1573, 0.35355338
    %v1579 = vadd.f32 %v1578, %v1354
    %v1580 = vsel %vm834, %v1579, -inf
    %1581 = vmax.xlane.f32.xlu0 %v1580
    %v1582 = vpop.xlane.xlu0 %1581
    %v1583 = vsub.f32 %v1579, %v1582
    %v1584 = vmul.f32 %v1583, 1.442695
    %v1585 = vpow.pop %v1584
    %v1586 = vsel %vm834, %v1585, 0.0
    %1587 = vadd.xlane.f32.xlu0 %v1586
    %v1588 = vpop.xlane.xlu0 %1587
    %v1589 = vrcp.pop %v1588
    %v1590 = vmul.f32 %v1585, %v1589
    %v1591 = vpack.c.bf16 %v1590, %v1590
    %1592 = vrot.lane.b32.xlu0 %v1300, 48
    %v1593 = vpop.permute.xlu0 %1592
    %v1595 = vsel %vm834, %v1591, 0
    %v1598 = vsel %vm627, %v1593, 0
    %1600 = vmatprep.subr.bf16.mxu0 0
    %1601 = vmatpush1.bf16.msra.mxu0 0
    %1602 = vmatprep.subr.bf16.mxu0 0
    %1603 = vmatpush1.bf16.msra.mxu0 0
    %1604 = vmatprep.subr.bf16.mxu0 0
    %1605 = vmatpush1.bf16.msra.mxu0 0
    %1606 = vmatprep.subr.bf16.mxu0 0
    %1607 = vmatpush1.bf16.msra.mxu0 0
    %1608 = vmatprep.subr.bf16.mxu0 0
    %1609 = vmatpush1.bf16.msra.mxu0 0
    %1610 = vmatprep.subr.bf16.mxu0 0
    %1611 = vmatpush1.bf16.msra.mxu0 0
    %1612 = vmatprep.subr.bf16.mxu0 0
    %1613 = vmatpush1.bf16.msra.mxu0 0
    %1614 = vmatprep.subr.bf16.mxu0 0
    %1615 = vmatpush1.bf16.msra.mxu0 %v1598
    %1616 = vmatprep.subr.bf16.mxu0 0
    %1617 = vmatpush2.bf16.msra.mxu0 0
    %1618 = vmatprep.subr.bf16.mxu0 0
    %1619 = vmatpush2.bf16.msra.mxu0 0
    %1620 = vmatprep.subr.bf16.mxu0 0
    %1621 = vmatpush2.bf16.msra.mxu0 0
    %1622 = vmatprep.subr.bf16.mxu0 0
    %1623 = vmatpush2.bf16.msra.mxu0 0
    %1624 = vmatprep.subr.bf16.mxu0 0
    %1625 = vmatpush2.bf16.msra.mxu0 0
    %1626 = vmatprep.subr.bf16.mxu0 0
    %1627 = vmatpush2.bf16.msra.mxu0 0
    %1628 = vmatprep.subr.bf16.mxu0 0
    %1629 = vmatpush2.bf16.msra.mxu0 0
    %1630 = vmatprep.subr.bf16.mxu0 0
    %1631 = vmatpush2.bf16.msra.mxu0 0
    %1632 = vmatprep.mubr.bf16.mxu0 0
    %1633 = vmatmul.mubr.bf16.gmra.mxu0 %v1595
    %v1634 = vpop.f32.mrf.mxu0
    %v1635 = vadd.f32 0.0, %v1634
    %v1636 = vpop.f32.mrf.mxu0
    %v1637 = vpop.f32.mrf.mxu0
    %v1638 = vpop.f32.mrf.mxu0
    %1639 = vdwg.mxu0
    %1640 = vrot.lane.b32.xlu0 %v1300, 104
    %v1641 = vpop.permute.xlu0 %1640
    %1642 = vrot.lane.b32.xlu0 %v1300, 72
    %v1643 = vpop.permute.xlu0 %1642
    %v1645 = vsel %vm834, %v1641, 0
    %v1648 = vsel %vm834, %v1643, 0
    %1650 = vmatprep.subr.bf16.mxu0 0
    %1651 = vmatpush1.bf16.xpose.msra.mxu0 0
    %1652 = vmatprep.subr.bf16.mxu0 0
    %1653 = vmatpush1.bf16.xpose.msra.mxu0 0
    %1654 = vmatprep.subr.bf16.mxu0 0
    %1655 = vmatpush1.bf16.xpose.msra.mxu0 0
    %1656 = vmatprep.subr.bf16.mxu0 0
    %1657 = vmatpush1.bf16.xpose.msra.mxu0 0
    %1658 = vmatprep.subr.bf16.mxu0 0
    %1659 = vmatpush1.bf16.xpose.msra.mxu0 0
    %1660 = vmatprep.subr.bf16.mxu0 0
    %1661 = vmatpush1.bf16.xpose.msra.mxu0 0
    %1662 = vmatprep.subr.bf16.mxu0 0
    %1663 = vmatpush1.bf16.xpose.msra.mxu0 0
    %1664 = vmatprep.subr.bf16.mxu0 0
    %1665 = vmatpush1.bf16.xpose.msra.mxu0 %v1648
    %1666 = vmatprep.subr.bf16.mxu0 0
    %1667 = vmatpush2.bf16.xpose.msra.mxu0 0
    %1668 = vmatprep.subr.bf16.mxu0 0
    %1669 = vmatpush2.bf16.xpose.msra.mxu0 0
    %1670 = vmatprep.subr.bf16.mxu0 0
    %1671 = vmatpush2.bf16.xpose.msra.mxu0 0
    %1672 = vmatprep.subr.bf16.mxu0 0
    %1673 = vmatpush2.bf16.xpose.msra.mxu0 0
    %1674 = vmatprep.subr.bf16.mxu0 0
    %1675 = vmatpush2.bf16.xpose.msra.mxu0 0
    %1676 = vmatprep.subr.bf16.mxu0 0
    %1677 = vmatpush2.bf16.xpose.msra.mxu0 0
    %1678 = vmatprep.subr.bf16.mxu0 0
    %1679 = vmatpush2.bf16.xpose.msra.mxu0 0
    %1680 = vmatprep.subr.bf16.mxu0 0
    %1681 = vmatpush2.bf16.xpose.msra.mxu0 0
    %1682 = vmatprep.mubr.bf16.mxu0 0
    %1683 = vmatmul.mubr.bf16.gmra.mxu0 %v1645
    %v1684 = vpop.f32.mrf.mxu0
    %v1685 = vadd.f32 0.0, %v1684
    %v1686 = vpop.f32.mrf.mxu0
    %v1687 = vpop.f32.mrf.mxu0
    %v1688 = vpop.f32.mrf.mxu0
    %1689 = vdwg.mxu0
    %v1690 = vmul.f32 %v1685, 0.35355338
    %v1691 = vadd.f32 %v1690, %v1354
    %v1692 = vsel %vm834, %v1691, -inf
    %1693 = vmax.xlane.f32.xlu0 %v1692
    %v1694 = vpop.xlane.xlu0 %1693
    %v1695 = vsub.f32 %v1691, %v1694
    %v1696 = vmul.f32 %v1695, 1.442695
    %v1697 = vpow.pop %v1696
    %v1698 = vsel %vm834, %v1697, 0.0
    %1699 = vadd.xlane.f32.xlu0 %v1698
    %v1700 = vpop.xlane.xlu0 %1699
    %v1701 = vrcp.pop %v1700
    %v1702 = vmul.f32 %v1697, %v1701
    %v1703 = vpack.c.bf16 %v1702, %v1702
    %1704 = vrot.lane.b32.xlu0 %v1300, 40
    %v1705 = vpop.permute.xlu0 %1704
    %v1707 = vsel %vm834, %v1703, 0
    %v1710 = vsel %vm627, %v1705, 0
    %1712 = vmatprep.subr.bf16.mxu0 0
    %1713 = vmatpush1.bf16.msra.mxu0 0
    %1714 = vmatprep.subr.bf16.mxu0 0
    %1715 = vmatpush1.bf16.msra.mxu0 0
    %1716 = vmatprep.subr.bf16.mxu0 0
    %1717 = vmatpush1.bf16.msra.mxu0 0
    %1718 = vmatprep.subr.bf16.mxu0 0
    %1719 = vmatpush1.bf16.msra.mxu0 0
    %1720 = vmatprep.subr.bf16.mxu0 0
    %1721 = vmatpush1.bf16.msra.mxu0 0
    %1722 = vmatprep.subr.bf16.mxu0 0
    %1723 = vmatpush1.bf16.msra.mxu0 0
    %1724 = vmatprep.subr.bf16.mxu0 0
    %1725 = vmatpush1.bf16.msra.mxu0 0
    %1726 = vmatprep.subr.bf16.mxu0 0
    %1727 = vmatpush1.bf16.msra.mxu0 %v1710
    %1728 = vmatprep.subr.bf16.mxu0 0
    %1729 = vmatpush2.bf16.msra.mxu0 0
    %1730 = vmatprep.subr.bf16.mxu0 0
    %1731 = vmatpush2.bf16.msra.mxu0 0
    %1732 = vmatprep.subr.bf16.mxu0 0
    %1733 = vmatpush2.bf16.msra.mxu0 0
    %1734 = vmatprep.subr.bf16.mxu0 0
    %1735 = vmatpush2.bf16.msra.mxu0 0
    %1736 = vmatprep.subr.bf16.mxu0 0
    %1737 = vmatpush2.bf16.msra.mxu0 0
    %1738 = vmatprep.subr.bf16.mxu0 0
    %1739 = vmatpush2.bf16.msra.mxu0 0
    %1740 = vmatprep.subr.bf16.mxu0 0
    %1741 = vmatpush2.bf16.msra.mxu0 0
    %1742 = vmatprep.subr.bf16.mxu0 0
    %1743 = vmatpush2.bf16.msra.mxu0 0
    %1744 = vmatprep.mubr.bf16.mxu0 0
    %1745 = vmatmul.mubr.bf16.gmra.mxu0 %v1707
    %v1746 = vpop.f32.mrf.mxu0
    %v1747 = vadd.f32 0.0, %v1746
    %v1748 = vpop.f32.mrf.mxu0
    %v1749 = vpop.f32.mrf.mxu0
    %v1750 = vpop.f32.mrf.mxu0
    %1751 = vdwg.mxu0
    %1753 = vrot.lane.b32.xlu0 %v1523, 8
    %v1754 = vpop.permute.xlu0 %1753
    %1757 = vrot.lane.b32.xlu0 %v1635, 16
    %v1758 = vpop.permute.xlu0 %1757
    %1761 = vrot.lane.b32.xlu0 %v1747, 24
    %v1762 = vpop.permute.xlu0 %1761
    %v1764 = vsel %vm834, %v1411, %v1754
    %v1765 = vsel %vm1296, %v1764, %v1758
    %v1766 = vsel %vm1298, %v1765, %v1762
    %v1767 = vpack.c.bf16 %v1766, %v1299
    %v1768 = vld [vmem:[#allocation10] sm:$0xf]
    %v1769 = vld [vmem:[#allocation10 + $0x4] sm:$0xf]
    %v1770 = vld [vmem:[#allocation10 + $0x8] sm:$0xf]
    %v1771 = vld [vmem:[#allocation10 + $0xc] sm:$0xf]
    %v1772 = vld [vmem:[#allocation11] sm:$0x1]
    %v1774 = vlaneseq
    %v1775 = vshrl.u32 %v1774, 7
    %v1776 = vsub.s32 0, %v1775
    %v1777 = vrot.slane %v1772, %v1776
    %v1783 = vunpack.c.l.b16 %v1768
    %v1784 = vunpack.c.l.b16 %v1769
    %v1785 = vunpack.c.l.b16 %v1770
    %v1786 = vunpack.c.l.b16 %v1771
    %v1787 = vpack.c.b16 %v1784, %v1783
    %v1788 = vpack.c.b16 %v1786, %v1785
    %v1792 = vsel %vm717, %v1767, 0
    %1794 = vmatprep.subr.bf16.mxu0 0
    %1795 = vmatpush1.bf16.msra.mxu0 0
    %1796 = vmatprep.subr.bf16.mxu0 0
    %1797 = vmatpush1.bf16.msra.mxu0 0
    %1798 = vmatprep.subr.bf16.mxu0 0
    %1799 = vmatpush1.bf16.msra.mxu0 0
    %1800 = vmatprep.subr.bf16.mxu0 0
    %1801 = vmatpush1.bf16.msra.mxu0 0
    %1802 = vmatprep.subr.bf16.mxu0 0
    %1803 = vmatpush1.bf16.msra.mxu0 0
    %1804 = vmatprep.subr.bf16.mxu0 0
    %1805 = vmatpush1.bf16.msra.mxu0 0
    %1806 = vmatprep.subr.bf16.mxu0 0
    %1807 = vmatpush1.bf16.msra.mxu0 %v1788
    %1808 = vmatprep.subr.bf16.mxu0 0
    %1809 = vmatpush1.bf16.msra.mxu0 %v1787
    %1810 = vmatprep.subr.bf16.mxu0 0
    %1811 = vmatpush2.bf16.msra.mxu0 0
    %1812 = vmatprep.subr.bf16.mxu0 0
    %1813 = vmatpush2.bf16.msra.mxu0 0
    %1814 = vmatprep.subr.bf16.mxu0 0
    %1815 = vmatpush2.bf16.msra.mxu0 0
    %1816 = vmatprep.subr.bf16.mxu0 0
    %1817 = vmatpush2.bf16.msra.mxu0 0
    %1818 = vmatprep.subr.bf16.mxu0 0
    %1819 = vmatpush2.bf16.msra.mxu0 0
    %1820 = vmatprep.subr.bf16.mxu0 0
    %1821 = vmatpush2.bf16.msra.mxu0 0
    %1822 = vmatprep.subr.bf16.mxu0 0
    %1823 = vmatpush2.bf16.msra.mxu0 0
    %1824 = vmatprep.subr.bf16.mxu0 0
    %1825 = vmatpush2.bf16.msra.mxu0 0
    %1826 = vmatprep.mubr.bf16.mxu0 0
    %1827 = vmatmul.mubr.bf16.gmra.mxu0 %v1792
    %v1828 = vpop.f32.mrf.mxu0
    %v1829 = vadd.f32 %v1777, %v1828
    %v1830 = vpop.f32.mrf.mxu0
    %v1831 = vpop.f32.mrf.mxu0
    %v1832 = vadd.f32 %v1777, %v1831
    %v1833 = vpop.f32.mrf.mxu0
    %1834 = vdwg.mxu0
    %v1835 = vadd.f32 %v759, %v1829
    %v1836 = vadd.f32 %v760, %v1832
    %v1837 = vld [vmem:[#allocation13] sm:$0x1]
    %v1838 = vld [vmem:[#allocation14] sm:$0x1]
    %v1839 = vsel %vm717, %v1835, 0.0
    %1840 = vadd.xlane.f32.xlu0 %v1839
    %v1841 = vpop.xlane.xlu0 %1840
    %v1842 = vsel %vm717, %v1836, 0.0
    %1843 = vadd.xlane.f32.xlu0 %v1842
    %v1844 = vpop.xlane.xlu0 %1843
    %v1845 = vmul.f32 %v1841, %v724
    %v1846 = vmul.f32 %v1844, %v724
    %v1847 = vsub.f32 %v1835, %v1845
    %v1848 = vsub.f32 %v1836, %v1846
    %v1849 = vmul.f32 %v1847, %v1847
    %v1850 = vmul.f32 %v1848, %v1848
    %v1851 = vsel %vm717, %v1849, 0.0
    %1852 = vadd.xlane.f32.xlu0 %v1851
    %v1853 = vpop.xlane.xlu0 %1852
    %v1854 = vsel %vm717, %v1850, 0.0
    %1855 = vadd.xlane.f32.xlu0 %v1854
    %v1856 = vpop.xlane.xlu0 %1855
    %v1857 = vmul.f32 %v1853, %v724
    %v1858 = vmul.f32 %v1856, %v724
    %v1859 = vadd.f32 %v1857, 1e-05
    %v1860 = vadd.f32 %v1858, 1e-05
    %v1861 = vrsqrt.pop %v1859
    %v1862 = vrsqrt.pop %v1860
    %v1863 = vmul.f32 %v1847, %v1861
    %v1864 = vmul.f32 %v1848, %v1862
    %v1866 = vlaneseq
    %v1867 = vshrl.u32 %v1866, 7
    %v1868 = vsub.s32 0, %v1867
    %v1869 = vrot.slane %v1837, %v1868
    %v1871 = vmul.f32 %v1863, %v1869
    %v1872 = vmul.f32 %v1864, %v1869
    %v1874 = vlaneseq
    %v1875 = vshrl.u32 %v1874, 7
    %v1876 = vsub.s32 0, %v1875
    %v1877 = vrot.slane %v1838, %v1876
    %v1879 = vadd.f32 %v1871, %v1877
    %v1880 = vadd.f32 %v1872, %v1877
    %v1881 = vpack.c.bf16 %v1880, %v1879
    %v1882 = vld [vmem:[#allocation16] sm:$0xf]
    %v1883 = vld [vmem:[#allocation16 + $0x4] sm:$0xf]
    %v1884 = vld [vmem:[#allocation16 + $0x8] sm:$0xf]
    %v1885 = vld [vmem:[#allocation16 + $0xc] sm:$0xf]
    %v1886 = vld [vmem:[#allocation17] sm:$0x1]
    %v1888 = vlaneseq
    %v1889 = vshrl.u32 %v1888, 7
    %v1890 = vsub.s32 0, %v1889
    %v1891 = vrot.slane %v1886, %v1890
    %v1897 = vunpack.c.l.b16 %v1882
    %v1898 = vunpack.c.l.b16 %v1883
    %v1899 = vunpack.c.l.b16 %v1884
    %v1900 = vunpack.c.l.b16 %v1885
    %v1901 = vpack.c.b16 %v1898, %v1897
    %v1902 = vpack.c.b16 %v1900, %v1899
    %v1906 = vsel %vm717, %v1881, 0
    %1908 = vmatprep.subr.bf16.mxu0 0
    %1909 = vmatpush1.bf16.msra.mxu0 0
    %1910 = vmatprep.subr.bf16.mxu0 0
    %1911 = vmatpush1.bf16.msra.mxu0 0
    %1912 = vmatprep.subr.bf16.mxu0 0
    %1913 = vmatpush1.bf16.msra.mxu0 0
    %1914 = vmatprep.subr.bf16.mxu0 0
    %1915 = vmatpush1.bf16.msra.mxu0 0
    %1916 = vmatprep.subr.bf16.mxu0 0
    %1917 = vmatpush1.bf16.msra.mxu0 0
    %1918 = vmatprep.subr.bf16.mxu0 0
    %1919 = vmatpush1.bf16.msra.mxu0 0
    %1920 = vmatprep.subr.bf16.mxu0 0
    %1921 = vmatpush1.bf16.msra.mxu0 %v1902
    %1922 = vmatprep.subr.bf16.mxu0 0
    %1923 = vmatpush1.bf16.msra.mxu0 %v1901
    %1924 = vmatprep.subr.bf16.mxu0 0
    %1925 = vmatpush2.bf16.msra.mxu0 0
    %1926 = vmatprep.subr.bf16.mxu0 0
    %1927 = vmatpush2.bf16.msra.mxu0 0
    %1928 = vmatprep.subr.bf16.mxu0 0
    %1929 = vmatpush2.bf16.msra.mxu0 0
    %1930 = vmatprep.subr.bf16.mxu0 0
    %1931 = vmatpush2.bf16.msra.mxu0 0
    %1932 = vmatprep.subr.bf16.mxu0 0
    %1933 = vmatpush2.bf16.msra.mxu0 0
    %1934 = vmatprep.subr.bf16.mxu0 0
    %1935 = vmatpush2.bf16.msra.mxu0 0
    %1936 = vmatprep.subr.bf16.mxu0 0
    %1937 = vmatpush2.bf16.msra.mxu0 0
    %1938 = vmatprep.subr.bf16.mxu0 0
    %1939 = vmatpush2.bf16.msra.mxu0 0
    %1940 = vmatprep.mubr.bf16.mxu0 0
    %1941 = vmatmul.mubr.bf16.gmra.mxu0 %v1906
    %v1942 = vpop.f32.mrf.mxu0
    %v1943 = vadd.f32 %v1891, %v1942
    %v1944 = vpop.f32.mrf.mxu0
    %v1945 = vpop.f32.mrf.mxu0
    %v1946 = vadd.f32 %v1891, %v1945
    %v1947 = vpop.f32.mrf.mxu0
    %1948 = vdwg.mxu0
    %v1949 = vmul.f32 %v1943, %v1943
    %v1950 = vmul.f32 %v1946, %v1946
    %v1951 = vmul.f32 %v1943, %v1949
    %v1952 = vmul.f32 %v1946, %v1950
    %v1953 = vmul.f32 %v1951, 0.044715
    %v1954 = vmul.f32 %v1952, 0.044715
    %v1955 = vadd.f32 %v1943, %v1953
    %v1956 = vadd.f32 %v1946, %v1954
    %v1957 = vmul.f32 %v1955, 0.7978846
    %v1958 = vmul.f32 %v1956, 0.7978846
    %v1959 = vtanh.pop %v1957
    %v1960 = vtanh.pop %v1958
    %v1961 = vadd.f32 %v1959, 1.0
    %v1962 = vadd.f32 %v1960, 1.0
    %v1963 = vmul.f32 %v1961, 0.5
    %v1964 = vmul.f32 %v1962, 0.5
    %v1965 = vmul.f32 %v1943, %v1963
    %v1966 = vmul.f32 %v1946, %v1964
    %v1967 = vpack.c.bf16 %v1966, %v1965
    %v1968 = vld [vmem:[%s31] sm:$0xf]
    %v1969 = vld [vmem:[%s31 + $0x4] sm:$0xf]
    %v1970 = vld [vmem:[%s31 + $0x8] sm:$0xf]
    %v1971 = vld [vmem:[%s31 + $0xc] sm:$0xf]
    %v1972 = vld [vmem:[%s31 + $0x10] sm:$0xf]
    %v1973 = vld [vmem:[%s31 + $0x14] sm:$0xf]
    %v1974 = vld [vmem:[%s31 + $0x18] sm:$0xf]
    %v1975 = vld [vmem:[%s31 + $0x1c] sm:$0xf]
    %v1976 = vld [vmem:[#allocation19] sm:$0x1]
    %v1978 = vlaneseq
    %v1979 = vshrl.u32 %v1978, 7
    %v1980 = vsub.s32 0, %v1979
    %v1981 = vrot.slane %v1976, %v1980
    %v1991 = vunpack.c.l.b16 %v1968
    %v1992 = vunpack.c.l.b16 %v1969
    %v1993 = vunpack.c.l.b16 %v1970
    %v1994 = vunpack.c.l.b16 %v1971
    %v1995 = vunpack.c.l.b16 %v1972
    %v1996 = vunpack.c.l.b16 %v1973
    %v1997 = vunpack.c.l.b16 %v1974
    %v1998 = vunpack.c.l.b16 %v1975
    %v1999 = vpack.c.b16 %v1992, %v1991
    %v2000 = vpack.c.b16 %v1994, %v1993
    %v2001 = vpack.c.b16 %v1996, %v1995
    %v2002 = vpack.c.b16 %v1998, %v1997
    %vm2007 = vcmask 523264
    %v2009 = vsel %vm2007, %v1967, 0
    %2011 = vmatprep.subr.bf16.mxu0 0
    %2012 = vmatpush1.bf16.msra.mxu0 0
    %2013 = vmatprep.subr.bf16.mxu0 0
    %2014 = vmatpush1.bf16.msra.mxu0 0
    %2015 = vmatprep.subr.bf16.mxu0 0
    %2016 = vmatpush1.bf16.msra.mxu0 0
    %2017 = vmatprep.subr.bf16.mxu0 0
    %2018 = vmatpush1.bf16.msra.mxu0 0
    %2019 = vmatprep.subr.bf16.mxu0 0
    %2020 = vmatpush1.bf16.msra.mxu0 %v2002
    %2021 = vmatprep.subr.bf16.mxu0 0
    %2022 = vmatpush1.bf16.msra.mxu0 %v2001
    %2023 = vmatprep.subr.bf16.mxu0 0
    %2024 = vmatpush1.bf16.msra.mxu0 %v2000
    %2025 = vmatprep.subr.bf16.mxu0 0
    %2026 = vmatpush1.bf16.msra.mxu0 %v1999
    %2027 = vmatprep.subr.bf16.mxu0 0
    %2028 = vmatpush2.bf16.msra.mxu0 0
    %2029 = vmatprep.subr.bf16.mxu0 0
    %2030 = vmatpush2.bf16.msra.mxu0 0
    %2031 = vmatprep.subr.bf16.mxu0 0
    %2032 = vmatpush2.bf16.msra.mxu0 0
    %2033 = vmatprep.subr.bf16.mxu0 0
    %2034 = vmatpush2.bf16.msra.mxu0 0
    %2035 = vmatprep.subr.bf16.mxu0 0
    %2036 = vmatpush2.bf16.msra.mxu0 0
    %2037 = vmatprep.subr.bf16.mxu0 0
    %2038 = vmatpush2.bf16.msra.mxu0 0
    %2039 = vmatprep.subr.bf16.mxu0 0
    %2040 = vmatpush2.bf16.msra.mxu0 0
    %2041 = vmatprep.subr.bf16.mxu0 0
    %2042 = vmatpush2.bf16.msra.mxu0 0
    %2043 = vmatprep.mubr.bf16.mxu0 0
    %2044 = vmatmul.mubr.bf16.gmra.mxu0 %v2009
    %v2045 = vpop.f32.mrf.mxu0
    %v2046 = vadd.f32 %v1981, %v2045
    %v2047 = vpop.f32.mrf.mxu0
    %v2048 = vpop.f32.mrf.mxu0
    %v2049 = vadd.f32 %v1981, %v2048
    %v2050 = vpop.f32.mrf.mxu0
    %2051 = vdwg.mxu0
    %v2052 = vadd.f32 %v1879, %v2046
    %v2053 = vadd.f32 %v1880, %v2049
    %v2054 = vld [vmem:[#allocation20] sm:$0x1]
    %v2055 = vld [vmem:[#allocation22] sm:$0x1]
    %v2056 = vsel %vm717, %v2052, 0.0
    %2057 = vadd.xlane.f32.xlu0 %v2056
    %v2058 = vpop.xlane.xlu0 %2057
    %v2059 = vsel %vm717, %v2053, 0.0
    %2060 = vadd.xlane.f32.xlu0 %v2059
    %v2061 = vpop.xlane.xlu0 %2060
    %v2062 = vmul.f32 %v2058, %v724
    %v2063 = vmul.f32 %v2061, %v724
    %v2064 = vsub.f32 %v2052, %v2062
    %v2065 = vsub.f32 %v2053, %v2063
    %v2066 = vmul.f32 %v2064, %v2064
    %v2067 = vmul.f32 %v2065, %v2065
    %v2068 = vsel %vm717, %v2066, 0.0
    %2069 = vadd.xlane.f32.xlu0 %v2068
    %v2070 = vpop.xlane.xlu0 %2069
    %v2071 = vsel %vm717, %v2067, 0.0
    %2072 = vadd.xlane.f32.xlu0 %v2071
    %v2073 = vpop.xlane.xlu0 %2072
    %v2074 = vmul.f32 %v2070, %v724
    %v2075 = vmul.f32 %v2073, %v724
    %v2076 = vadd.f32 %v2074, 1e-05
    %v2077 = vadd.f32 %v2075, 1e-05
    %v2078 = vrsqrt.pop %v2076
    %v2079 = vrsqrt.pop %v2077
    %v2080 = vmul.f32 %v2064, %v2078
    %v2081 = vmul.f32 %v2065, %v2079
    %v2083 = vlaneseq
    %v2084 = vshrl.u32 %v2083, 7
    %v2085 = vsub.s32 0, %v2084
    %v2086 = vrot.slane %v2054, %v2085
    %v2088 = vmul.f32 %v2080, %v2086
    %v2089 = vmul.f32 %v2081, %v2086
    %v2091 = vlaneseq
    %v2092 = vshrl.u32 %v2091, 7
    %v2093 = vsub.s32 0, %v2092
    %v2094 = vrot.slane %v2055, %v2093
    %v2096 = vadd.f32 %v2088, %v2094
    %v2097 = vadd.f32 %v2089, %v2094
    %v2098 = vpack.c.bf16 %v2097, %v2096
    %v2099 = vld [vmem:[#allocation23] sm:$0xf]
    %v2100 = vld [vmem:[#allocation23 + $0x4] sm:$0xf]
    %v2101 = vld [vmem:[#allocation23 + $0x8] sm:$0xf]
    %v2102 = vld [vmem:[#allocation23 + $0xc] sm:$0xf]
    %v2103 = vld [vmem:[#allocation25] sm:$0x1]
    %v2105 = vlaneseq
    %v2106 = vshrl.u32 %v2105, 7
    %v2107 = vsub.s32 0, %v2106
    %v2108 = vrot.slane %v2103, %v2107
    %v2114 = vunpack.c.l.b16 %v2099
    %v2115 = vunpack.c.l.b16 %v2100
    %v2116 = vunpack.c.l.b16 %v2101
    %v2117 = vunpack.c.l.b16 %v2102
    %v2118 = vpack.c.b16 %v2115, %v2114
    %v2119 = vpack.c.b16 %v2117, %v2116
    %v2123 = vsel %vm717, %v2098, 0
    %2125 = vmatprep.subr.bf16.mxu0 0
    %2126 = vmatpush1.bf16.msra.mxu0 0
    %2127 = vmatprep.subr.bf16.mxu0 0
    %2128 = vmatpush1.bf16.msra.mxu0 0
    %2129 = vmatprep.subr.bf16.mxu0 0
    %2130 = vmatpush1.bf16.msra.mxu0 0
    %2131 = vmatprep.subr.bf16.mxu0 0
    %2132 = vmatpush1.bf16.msra.mxu0 0
    %2133 = vmatprep.subr.bf16.mxu0 0
    %2134 = vmatpush1.bf16.msra.mxu0 0
    %2135 = vmatprep.subr.bf16.mxu0 0
    %2136 = vmatpush1.bf16.msra.mxu0 0
    %2137 = vmatprep.subr.bf16.mxu0 0
    %2138 = vmatpush1.bf16.msra.mxu0 %v2119
    %2139 = vmatprep.subr.bf16.mxu0 0
    %2140 = vmatpush1.bf16.msra.mxu0 %v2118
    %2141 = vmatprep.subr.bf16.mxu0 0
    %2142 = vmatpush2.bf16.msra.mxu0 0
    %2143 = vmatprep.subr.bf16.mxu0 0
    %2144 = vmatpush2.bf16.msra.mxu0 0
    %2145 = vmatprep.subr.bf16.mxu0 0
    %2146 = vmatpush2.bf16.msra.mxu0 0
    %2147 = vmatprep.subr.bf16.mxu0 0
    %2148 = vmatpush2.bf16.msra.mxu0 0
    %2149 = vmatprep.subr.bf16.mxu0 0
    %2150 = vmatpush2.bf16.msra.mxu0 0
    %2151 = vmatprep.subr.bf16.mxu0 0
    %2152 = vmatpush2.bf16.msra.mxu0 0
    %2153 = vmatprep.subr.bf16.mxu0 0
    %2154 = vmatpush2.bf16.msra.mxu0 0
    %2155 = vmatprep.subr.bf16.mxu0 0
    %2156 = vmatpush2.bf16.msra.mxu0 0
    %2157 = vmatprep.mubr.bf16.mxu0 0
    %2158 = vmatmul.mubr.bf16.gmra.mxu0 %v2123
    %v2159 = vpop.f32.mrf.mxu0
    %v2160 = vadd.f32 %v2108, %v2159
    %v2161 = vpop.f32.mrf.mxu0
    %v2162 = vpop.f32.mrf.mxu0
    %v2163 = vadd.f32 %v2108, %v2162
    %v2164 = vpop.f32.mrf.mxu0
    %2165 = vdwg.mxu0
    %v2166 = vpack.c.bf16 %v2160, %v2160
    %2168 = vrot.lane.b32.xlu0 %v2166, 96
    %v2169 = vpop.permute.xlu0 %2168
    %v2171 = vsel %vm834, %v2166, 0
    %v2174 = vsel %vm834, %v2169, 0
    %2176 = vmatprep.subr.bf16.mxu0 0
    %2177 = vmatpush1.bf16.xpose.msra.mxu0 0
    %2178 = vmatprep.subr.bf16.mxu0 0
    %2179 = vmatpush1.bf16.xpose.msra.mxu0 0
    %2180 = vmatprep.subr.bf16.mxu0 0
    %2181 = vmatpush1.bf16.xpose.msra.mxu0 0
    %2182 = vmatprep.subr.bf16.mxu0 0
    %2183 = vmatpush1.bf16.xpose.msra.mxu0 0
    %2184 = vmatprep.subr.bf16.mxu0 0
    %2185 = vmatpush1.bf16.xpose.msra.mxu0 0
    %2186 = vmatprep.subr.bf16.mxu0 0
    %2187 = vmatpush1.bf16.xpose.msra.mxu0 0
    %2188 = vmatprep.subr.bf16.mxu0 0
    %2189 = vmatpush1.bf16.xpose.msra.mxu0 0
    %2190 = vmatprep.subr.bf16.mxu0 0
    %2191 = vmatpush1.bf16.xpose.msra.mxu0 %v2174
    %2192 = vmatprep.subr.bf16.mxu0 0
    %2193 = vmatpush2.bf16.xpose.msra.mxu0 0
    %2194 = vmatprep.subr.bf16.mxu0 0
    %2195 = vmatpush2.bf16.xpose.msra.mxu0 0
    %2196 = vmatprep.subr.bf16.mxu0 0
    %2197 = vmatpush2.bf16.xpose.msra.mxu0 0
    %2198 = vmatprep.subr.bf16.mxu0 0
    %2199 = vmatpush2.bf16.xpose.msra.mxu0 0
    %2200 = vmatprep.subr.bf16.mxu0 0
    %2201 = vmatpush2.bf16.xpose.msra.mxu0 0
    %2202 = vmatprep.subr.bf16.mxu0 0
    %2203 = vmatpush2.bf16.xpose.msra.mxu0 0
    %2204 = vmatprep.subr.bf16.mxu0 0
    %2205 = vmatpush2.bf16.xpose.msra.mxu0 0
    %2206 = vmatprep.subr.bf16.mxu0 0
    %2207 = vmatpush2.bf16.xpose.msra.mxu0 0
    %2208 = vmatprep.mubr.bf16.mxu0 0
    %2209 = vmatmul.mubr.bf16.gmra.mxu0 %v2171
    %v2210 = vpop.f32.mrf.mxu0
    %v2211 = vadd.f32 0.0, %v2210
    %v2212 = vpop.f32.mrf.mxu0
    %v2213 = vpop.f32.mrf.mxu0
    %v2214 = vpop.f32.mrf.mxu0
    %2215 = vdwg.mxu0
    %v2216 = vmul.f32 %v2211, 0.35355338
    %v2217 = vadd.f32 %v2216, %v885
    %v2218 = vsel %vm834, %v2217, -inf
    %2219 = vmax.xlane.f32.xlu0 %v2218
    %v2220 = vpop.xlane.xlu0 %2219
    %v2221 = vsub.f32 %v2217, %v2220
    %v2222 = vmul.f32 %v2221, 1.442695
    %v2223 = vpow.pop %v2222
    %v2224 = vsel %vm834, %v2223, 0.0
    %2225 = vadd.xlane.f32.xlu0 %v2224
    %v2226 = vpop.xlane.xlu0 %2225
    %v2227 = vrcp.pop %v2226
    %v2228 = vmul.f32 %v2223, %v2227
    %v2229 = vpack.c.bf16 %v2228, %v2228
    %2230 = vrot.lane.b32.xlu0 %v2166, 64
    %v2231 = vpop.permute.xlu0 %2230
    %v2233 = vsel %vm834, %v2229, 0
    %v2236 = vsel %vm627, %v2231, 0
    %2238 = vmatprep.subr.bf16.mxu0 0
    %2239 = vmatpush1.bf16.msra.mxu0 0
    %2240 = vmatprep.subr.bf16.mxu0 0
    %2241 = vmatpush1.bf16.msra.mxu0 0
    %2242 = vmatprep.subr.bf16.mxu0 0
    %2243 = vmatpush1.bf16.msra.mxu0 0
    %2244 = vmatprep.subr.bf16.mxu0 0
    %2245 = vmatpush1.bf16.msra.mxu0 0
    %2246 = vmatprep.subr.bf16.mxu0 0
    %2247 = vmatpush1.bf16.msra.mxu0 0
    %2248 = vmatprep.subr.bf16.mxu0 0
    %2249 = vmatpush1.bf16.msra.mxu0 0
    %2250 = vmatprep.subr.bf16.mxu0 0
    %2251 = vmatpush1.bf16.msra.mxu0 0
    %2252 = vmatprep.subr.bf16.mxu0 0
    %2253 = vmatpush1.bf16.msra.mxu0 %v2236
    %2254 = vmatprep.subr.bf16.mxu0 0
    %2255 = vmatpush2.bf16.msra.mxu0 0
    %2256 = vmatprep.subr.bf16.mxu0 0
    %2257 = vmatpush2.bf16.msra.mxu0 0
    %2258 = vmatprep.subr.bf16.mxu0 0
    %2259 = vmatpush2.bf16.msra.mxu0 0
    %2260 = vmatprep.subr.bf16.mxu0 0
    %2261 = vmatpush2.bf16.msra.mxu0 0
    %2262 = vmatprep.subr.bf16.mxu0 0
    %2263 = vmatpush2.bf16.msra.mxu0 0
    %2264 = vmatprep.subr.bf16.mxu0 0
    %2265 = vmatpush2.bf16.msra.mxu0 0
    %2266 = vmatprep.subr.bf16.mxu0 0
    %2267 = vmatpush2.bf16.msra.mxu0 0
    %2268 = vmatprep.subr.bf16.mxu0 0
    %2269 = vmatpush2.bf16.msra.mxu0 0
    %2270 = vmatprep.mubr.bf16.mxu0 0
    %2271 = vmatmul.mubr.bf16.gmra.mxu0 %v2233
    %v2272 = vpop.f32.mrf.mxu0
    %v2273 = vadd.f32 0.0, %v2272
    %v2274 = vpop.f32.mrf.mxu0
    %v2275 = vpop.f32.mrf.mxu0
    %v2276 = vpop.f32.mrf.mxu0
    %2277 = vdwg.mxu0
    %2278 = vrot.lane.b32.xlu0 %v2166, 120
    %v2279 = vpop.permute.xlu0 %2278
    %2280 = vrot.lane.b32.xlu0 %v2166, 88
    %v2281 = vpop.permute.xlu0 %2280
    %v2283 = vsel %vm834, %v2279, 0
    %v2286 = vsel %vm834, %v2281, 0
    %2288 = vmatprep.subr.bf16.mxu0 0
    %2289 = vmatpush1.bf16.xpose.msra.mxu0 0
    %2290 = vmatprep.subr.bf16.mxu0 0
    %2291 = vmatpush1.bf16.xpose.msra.mxu0 0
    %2292 = vmatprep.subr.bf16.mxu0 0
    %2293 = vmatpush1.bf16.xpose.msra.mxu0 0
    %2294 = vmatprep.subr.bf16.mxu0 0
    %2295 = vmatpush1.bf16.xpose.msra.mxu0 0
    %2296 = vmatprep.subr.bf16.mxu0 0
    %2297 = vmatpush1.bf16.xpose.msra.mxu0 0
    %2298 = vmatprep.subr.bf16.mxu0 0
    %2299 = vmatpush1.bf16.xpose.msra.mxu0 0
    %2300 = vmatprep.subr.bf16.mxu0 0
    %2301 = vmatpush1.bf16.xpose.msra.mxu0 0
    %2302 = vmatprep.subr.bf16.mxu0 0
    %2303 = vmatpush1.bf16.xpose.msra.mxu0 %v2286
    %2304 = vmatprep.subr.bf16.mxu0 0
    %2305 = vmatpush2.bf16.xpose.msra.mxu0 0
    %2306 = vmatprep.subr.bf16.mxu0 0
    %2307 = vmatpush2.bf16.xpose.msra.mxu0 0
    %2308 = vmatprep.subr.bf16.mxu0 0
    %2309 = vmatpush2.bf16.xpose.msra.mxu0 0
    %2310 = vmatprep.subr.bf16.mxu0 0
    %2311 = vmatpush2.bf16.xpose.msra.mxu0 0
    %2312 = vmatprep.subr.bf16.mxu0 0
    %2313 = vmatpush2.bf16.xpose.msra.mxu0 0
    %2314 = vmatprep.subr.bf16.mxu0 0
    %2315 = vmatpush2.bf16.xpose.msra.mxu0 0
    %2316 = vmatprep.subr.bf16.mxu0 0
    %2317 = vmatpush2.bf16.xpose.msra.mxu0 0
    %2318 = vmatprep.subr.bf16.mxu0 0
    %2319 = vmatpush2.bf16.xpose.msra.mxu0 0
    %2320 = vmatprep.mubr.bf16.mxu0 0
    %2321 = vmatmul.mubr.bf16.gmra.mxu0 %v2283
    %v2322 = vpop.f32.mrf.mxu0
    %v2323 = vadd.f32 0.0, %v2322
    %v2324 = vpop.f32.mrf.mxu0
    %v2325 = vpop.f32.mrf.mxu0
    %v2326 = vpop.f32.mrf.mxu0
    %2327 = vdwg.mxu0
    %v2328 = vmul.f32 %v2323, 0.35355338
    %v2329 = vadd.f32 %v2328, %v885
    %v2330 = vsel %vm834, %v2329, -inf
    %2331 = vmax.xlane.f32.xlu0 %v2330
    %v2332 = vpop.xlane.xlu0 %2331
    %v2333 = vsub.f32 %v2329, %v2332
    %v2334 = vmul.f32 %v2333, 1.442695
    %v2335 = vpow.pop %v2334
    %v2336 = vsel %vm834, %v2335, 0.0
    %2337 = vadd.xlane.f32.xlu0 %v2336
    %v2338 = vpop.xlane.xlu0 %2337
    %v2339 = vrcp.pop %v2338
    %v2340 = vmul.f32 %v2335, %v2339
    %v2341 = vpack.c.bf16 %v2340, %v2340
    %2342 = vrot.lane.b32.xlu0 %v2166, 56
    %v2343 = vpop.permute.xlu0 %2342
    %v2345 = vsel %vm834, %v2341, 0
    %v2348 = vsel %vm627, %v2343, 0
    %2350 = vmatprep.subr.bf16.mxu0 0
    %2351 = vmatpush1.bf16.msra.mxu0 0
    %2352 = vmatprep.subr.bf16.mxu0 0
    %2353 = vmatpush1.bf16.msra.mxu0 0
    %2354 = vmatprep.subr.bf16.mxu0 0
    %2355 = vmatpush1.bf16.msra.mxu0 0
    %2356 = vmatprep.subr.bf16.mxu0 0
    %2357 = vmatpush1.bf16.msra.mxu0 0
    %2358 = vmatprep.subr.bf16.mxu0 0
    %2359 = vmatpush1.bf16.msra.mxu0 0
    %2360 = vmatprep.subr.bf16.mxu0 0
    %2361 = vmatpush1.bf16.msra.mxu0 0
    %2362 = vmatprep.subr.bf16.mxu0 0
    %2363 = vmatpush1.bf16.msra.mxu0 0
    %2364 = vmatprep.subr.bf16.mxu0 0
    %2365 = vmatpush1.bf16.msra.mxu0 %v2348
    %2366 = vmatprep.subr.bf16.mxu0 0
    %2367 = vmatpush2.bf16.msra.mxu0 0
    %2368 = vmatprep.subr.bf16.mxu0 0
    %2369 = vmatpush2.bf16.msra.mxu0 0
    %2370 = vmatprep.subr.bf16.mxu0 0
    %2371 = vmatpush2.bf16.msra.mxu0 0
    %2372 = vmatprep.subr.bf16.mxu0 0
    %2373 = vmatpush2.bf16.msra.mxu0 0
    %2374 = vmatprep.subr.bf16.mxu0 0
    %2375 = vmatpush2.bf16.msra.mxu0 0
    %2376 = vmatprep.subr.bf16.mxu0 0
    %2377 = vmatpush2.bf16.msra.mxu0 0
    %2378 = vmatprep.subr.bf16.mxu0 0
    %2379 = vmatpush2.bf16.msra.mxu0 0
    %2380 = vmatprep.subr.bf16.mxu0 0
    %2381 = vmatpush2.bf16.msra.mxu0 0
    %2382 = vmatprep.mubr.bf16.mxu0 0
    %2383 = vmatmul.mubr.bf16.gmra.mxu0 %v2345
    %v2384 = vpop.f32.mrf.mxu0
    %v2385 = vadd.f32 0.0, %v2384
    %v2386 = vpop.f32.mrf.mxu0
    %v2387 = vpop.f32.mrf.mxu0
    %v2388 = vpop.f32.mrf.mxu0
    %2389 = vdwg.mxu0
    %2390 = vrot.lane.b32.xlu0 %v2166, 112
    %v2391 = vpop.permute.xlu0 %2390
    %2392 = vrot.lane.b32.xlu0 %v2166, 80
    %v2393 = vpop.permute.xlu0 %2392
    %v2395 = vsel %vm834, %v2391, 0
    %v2398 = vsel %vm834, %v2393, 0
    %2400 = vmatprep.subr.bf16.mxu0 0
    %2401 = vmatpush1.bf16.xpose.msra.mxu0 0
    %2402 = vmatprep.subr.bf16.mxu0 0
    %2403 = vmatpush1.bf16.xpose.msra.mxu0 0
    %2404 = vmatprep.subr.bf16.mxu0 0
    %2405 = vmatpush1.bf16.xpose.msra.mxu0 0
    %2406 = vmatprep.subr.bf16.mxu0 0
    %2407 = vmatpush1.bf16.xpose.msra.mxu0 0
    %2408 = vmatprep.subr.bf16.mxu0 0
    %2409 = vmatpush1.bf16.xpose.msra.mxu0 0
    %2410 = vmatprep.subr.bf16.mxu0 0
    %2411 = vmatpush1.bf16.xpose.msra.mxu0 0
    %2412 = vmatprep.subr.bf16.mxu0 0
    %2413 = vmatpush1.bf16.xpose.msra.mxu0 0
    %2414 = vmatprep.subr.bf16.mxu0 0
    %2415 = vmatpush1.bf16.xpose.msra.mxu0 %v2398
    %2416 = vmatprep.subr.bf16.mxu0 0
    %2417 = vmatpush2.bf16.xpose.msra.mxu0 0
    %2418 = vmatprep.subr.bf16.mxu0 0
    %2419 = vmatpush2.bf16.xpose.msra.mxu0 0
    %2420 = vmatprep.subr.bf16.mxu0 0
    %2421 = vmatpush2.bf16.xpose.msra.mxu0 0
    %2422 = vmatprep.subr.bf16.mxu0 0
    %2423 = vmatpush2.bf16.xpose.msra.mxu0 0
    %2424 = vmatprep.subr.bf16.mxu0 0
    %2425 = vmatpush2.bf16.xpose.msra.mxu0 0
    %2426 = vmatprep.subr.bf16.mxu0 0
    %2427 = vmatpush2.bf16.xpose.msra.mxu0 0
    %2428 = vmatprep.subr.bf16.mxu0 0
    %2429 = vmatpush2.bf16.xpose.msra.mxu0 0
    %2430 = vmatprep.subr.bf16.mxu0 0
    %2431 = vmatpush2.bf16.xpose.msra.mxu0 0
    %2432 = vmatprep.mubr.bf16.mxu0 0
    %2433 = vmatmul.mubr.bf16.gmra.mxu0 %v2395
    %v2434 = vpop.f32.mrf.mxu0
    %v2435 = vadd.f32 0.0, %v2434
    %v2436 = vpop.f32.mrf.mxu0
    %v2437 = vpop.f32.mrf.mxu0
    %v2438 = vpop.f32.mrf.mxu0
    %2439 = vdwg.mxu0
    %v2440 = vmul.f32 %v2435, 0.35355338
    %v2441 = vadd.f32 %v2440, %v885
    %v2442 = vsel %vm834, %v2441, -inf
    %2443 = vmax.xlane.f32.xlu0 %v2442
    %v2444 = vpop.xlane.xlu0 %2443
    %v2445 = vsub.f32 %v2441, %v2444
    %v2446 = vmul.f32 %v2445, 1.442695
    %v2447 = vpow.pop %v2446
    %v2448 = vsel %vm834, %v2447, 0.0
    %2449 = vadd.xlane.f32.xlu0 %v2448
    %v2450 = vpop.xlane.xlu0 %2449
    %v2451 = vrcp.pop %v2450
    %v2452 = vmul.f32 %v2447, %v2451
    %v2453 = vpack.c.bf16 %v2452, %v2452
    %2454 = vrot.lane.b32.xlu0 %v2166, 48
    %v2455 = vpop.permute.xlu0 %2454
    %v2457 = vsel %vm834, %v2453, 0
    %v2460 = vsel %vm627, %v2455, 0
    %2462 = vmatprep.subr.bf16.mxu0 0
    %2463 = vmatpush1.bf16.msra.mxu0 0
    %2464 = vmatprep.subr.bf16.mxu0 0
    %2465 = vmatpush1.bf16.msra.mxu0 0
    %2466 = vmatprep.subr.bf16.mxu0 0
    %2467 = vmatpush1.bf16.msra.mxu0 0
    %2468 = vmatprep.subr.bf16.mxu0 0
    %2469 = vmatpush1.bf16.msra.mxu0 0
    %2470 = vmatprep.subr.bf16.mxu0 0
    %2471 = vmatpush1.bf16.msra.mxu0 0
    %2472 = vmatprep.subr.bf16.mxu0 0
    %2473 = vmatpush1.bf16.msra.mxu0 0
    %2474 = vmatprep.subr.bf16.mxu0 0
    %2475 = vmatpush1.bf16.msra.mxu0 0
    %2476 = vmatprep.subr.bf16.mxu0 0
    %2477 = vmatpush1.bf16.msra.mxu0 %v2460
    %2478 = vmatprep.subr.bf16.mxu0 0
    %2479 = vmatpush2.bf16.msra.mxu0 0
    %2480 = vmatprep.subr.bf16.mxu0 0
    %2481 = vmatpush2.bf16.msra.mxu0 0
    %2482 = vmatprep.subr.bf16.mxu0 0
    %2483 = vmatpush2.bf16.msra.mxu0 0
    %2484 = vmatprep.subr.bf16.mxu0 0
    %2485 = vmatpush2.bf16.msra.mxu0 0
    %2486 = vmatprep.subr.bf16.mxu0 0
    %2487 = vmatpush2.bf16.msra.mxu0 0
    %2488 = vmatprep.subr.bf16.mxu0 0
    %2489 = vmatpush2.bf16.msra.mxu0 0
    %2490 = vmatprep.subr.bf16.mxu0 0
    %2491 = vmatpush2.bf16.msra.mxu0 0
    %2492 = vmatprep.subr.bf16.mxu0 0
    %2493 = vmatpush2.bf16.msra.mxu0 0
    %2494 = vmatprep.mubr.bf16.mxu0 0
    %2495 = vmatmul.mubr.bf16.gmra.mxu0 %v2457
    %v2496 = vpop.f32.mrf.mxu0
    %v2497 = vadd.f32 0.0, %v2496
    %v2498 = vpop.f32.mrf.mxu0
    %v2499 = vpop.f32.mrf.mxu0
    %v2500 = vpop.f32.mrf.mxu0
    %2501 = vdwg.mxu0
    %2502 = vrot.lane.b32.xlu0 %v2166, 104
    %v2503 = vpop.permute.xlu0 %2502
    %2504 = vrot.lane.b32.xlu0 %v2166, 72
    %v2505 = vpop.permute.xlu0 %2504
    %v2507 = vsel %vm834, %v2503, 0
    %v2510 = vsel %vm834, %v2505, 0
    %2512 = vmatprep.subr.bf16.mxu0 0
    %2513 = vmatpush1.bf16.xpose.msra.mxu0 0
    %2514 = vmatprep.subr.bf16.mxu0 0
    %2515 = vmatpush1.bf16.xpose.msra.mxu0 0
    %2516 = vmatprep.subr.bf16.mxu0 0
    %2517 = vmatpush1.bf16.xpose.msra.mxu0 0
    %2518 = vmatprep.subr.bf16.mxu0 0
    %2519 = vmatpush1.bf16.xpose.msra.mxu0 0
    %2520 = vmatprep.subr.bf16.mxu0 0
    %2521 = vmatpush1.bf16.xpose.msra.mxu0 0
    %2522 = vmatprep.subr.bf16.mxu0 0
    %2523 = vmatpush1.bf16.xpose.msra.mxu0 0
    %2524 = vmatprep.subr.bf16.mxu0 0
    %2525 = vmatpush1.bf16.xpose.msra.mxu0 0
    %2526 = vmatprep.subr.bf16.mxu0 0
    %2527 = vmatpush1.bf16.xpose.msra.mxu0 %v2510
    %2528 = vmatprep.subr.bf16.mxu0 0
    %2529 = vmatpush2.bf16.xpose.msra.mxu0 0
    %2530 = vmatprep.subr.bf16.mxu0 0
    %2531 = vmatpush2.bf16.xpose.msra.mxu0 0
    %2532 = vmatprep.subr.bf16.mxu0 0
    %2533 = vmatpush2.bf16.xpose.msra.mxu0 0
    %2534 = vmatprep.subr.bf16.mxu0 0
    %2535 = vmatpush2.bf16.xpose.msra.mxu0 0
    %2536 = vmatprep.subr.bf16.mxu0 0
    %2537 = vmatpush2.bf16.xpose.msra.mxu0 0
    %2538 = vmatprep.subr.bf16.mxu0 0
    %2539 = vmatpush2.bf16.xpose.msra.mxu0 0
    %2540 = vmatprep.subr.bf16.mxu0 0
    %2541 = vmatpush2.bf16.xpose.msra.mxu0 0
    %2542 = vmatprep.subr.bf16.mxu0 0
    %2543 = vmatpush2.bf16.xpose.msra.mxu0 0
    %2544 = vmatprep.mubr.bf16.mxu0 0
    %2545 = vmatmul.mubr.bf16.gmra.mxu0 %v2507
    %v2546 = vpop.f32.mrf.mxu0
    %v2547 = vadd.f32 0.0, %v2546
    %v2548 = vpop.f32.mrf.mxu0
    %v2549 = vpop.f32.mrf.mxu0
    %v2550 = vpop.f32.mrf.mxu0
    %2551 = vdwg.mxu0
    %v2552 = vmul.f32 %v2547, 0.35355338
    %v2553 = vadd.f32 %v2552, %v885
    %v2554 = vsel %vm834, %v2553, -inf
    %2555 = vmax.xlane.f32.xlu0 %v2554
    %v2556 = vpop.xlane.xlu0 %2555
    %v2557 = vsub.f32 %v2553, %v2556
    %v2558 = vmul.f32 %v2557, 1.442695
    %v2559 = vpow.pop %v2558
    %v2560 = vsel %vm834, %v2559, 0.0
    %2561 = vadd.xlane.f32.xlu0 %v2560
    %v2562 = vpop.xlane.xlu0 %2561
    %v2563 = vrcp.pop %v2562
    %v2564 = vmul.f32 %v2559, %v2563
    %v2565 = vpack.c.bf16 %v2564, %v2564
    %2566 = vrot.lane.b32.xlu0 %v2166, 40
    %v2567 = vpop.permute.xlu0 %2566
    %v2569 = vsel %vm834, %v2565, 0
    %v2572 = vsel %vm627, %v2567, 0
    %2574 = vmatprep.subr.bf16.mxu0 0
    %2575 = vmatpush1.bf16.msra.mxu0 0
    %2576 = vmatprep.subr.bf16.mxu0 0
    %2577 = vmatpush1.bf16.msra.mxu0 0
    %2578 = vmatprep.subr.bf16.mxu0 0
    %2579 = vmatpush1.bf16.msra.mxu0 0
    %2580 = vmatprep.subr.bf16.mxu0 0
    %2581 = vmatpush1.bf16.msra.mxu0 0
    %2582 = vmatprep.subr.bf16.mxu0 0
    %2583 = vmatpush1.bf16.msra.mxu0 0
    %2584 = vmatprep.subr.bf16.mxu0 0
    %2585 = vmatpush1.bf16.msra.mxu0 0
    %2586 = vmatprep.subr.bf16.mxu0 0
    %2587 = vmatpush1.bf16.msra.mxu0 0
    %2588 = vmatprep.subr.bf16.mxu0 0
    %2589 = vmatpush1.bf16.msra.mxu0 %v2572
    %2590 = vmatprep.subr.bf16.mxu0 0
    %2591 = vmatpush2.bf16.msra.mxu0 0
    %2592 = vmatprep.subr.bf16.mxu0 0
    %2593 = vmatpush2.bf16.msra.mxu0 0
    %2594 = vmatprep.subr.bf16.mxu0 0
    %2595 = vmatpush2.bf16.msra.mxu0 0
    %2596 = vmatprep.subr.bf16.mxu0 0
    %2597 = vmatpush2.bf16.msra.mxu0 0
    %2598 = vmatprep.subr.bf16.mxu0 0
    %2599 = vmatpush2.bf16.msra.mxu0 0
    %2600 = vmatprep.subr.bf16.mxu0 0
    %2601 = vmatpush2.bf16.msra.mxu0 0
    %2602 = vmatprep.subr.bf16.mxu0 0
    %2603 = vmatpush2.bf16.msra.mxu0 0
    %2604 = vmatprep.subr.bf16.mxu0 0
    %2605 = vmatpush2.bf16.msra.mxu0 0
    %2606 = vmatprep.mubr.bf16.mxu0 0
    %2607 = vmatmul.mubr.bf16.gmra.mxu0 %v2569
    %v2608 = vpop.f32.mrf.mxu0
    %v2609 = vadd.f32 0.0, %v2608
    %v2610 = vpop.f32.mrf.mxu0
    %v2611 = vpop.f32.mrf.mxu0
    %v2612 = vpop.f32.mrf.mxu0
    %2613 = vdwg.mxu0
    %2615 = vrot.lane.b32.xlu0 %v2385, 8
    %v2616 = vpop.permute.xlu0 %2615
    %2619 = vrot.lane.b32.xlu0 %v2497, 16
    %v2620 = vpop.permute.xlu0 %2619
    %2623 = vrot.lane.b32.xlu0 %v2609, 24
    %v2624 = vpop.permute.xlu0 %2623
    %v2626 = vsel %vm834, %v2273, %v2616
    %v2627 = vsel %vm1296, %v2626, %v2620
    %v2628 = vsel %vm1298, %v2627, %v2624
    %v2629 = vpack.c.bf16 %v2163, %v2163
    %2631 = vrot.lane.b32.xlu0 %v2629, 96
    %v2632 = vpop.permute.xlu0 %2631
    %v2634 = vsel %vm834, %v2629, 0
    %v2637 = vsel %vm834, %v2632, 0
    %2639 = vmatprep.subr.bf16.mxu0 0
    %2640 = vmatpush1.bf16.xpose.msra.mxu0 0
    %2641 = vmatprep.subr.bf16.mxu0 0
    %2642 = vmatpush1.bf16.xpose.msra.mxu0 0
    %2643 = vmatprep.subr.bf16.mxu0 0
    %2644 = vmatpush1.bf16.xpose.msra.mxu0 0
    %2645 = vmatprep.subr.bf16.mxu0 0
    %2646 = vmatpush1.bf16.xpose.msra.mxu0 0
    %2647 = vmatprep.subr.bf16.mxu0 0
    %2648 = vmatpush1.bf16.xpose.msra.mxu0 0
    %2649 = vmatprep.subr.bf16.mxu0 0
    %2650 = vmatpush1.bf16.xpose.msra.mxu0 0
    %2651 = vmatprep.subr.bf16.mxu0 0
    %2652 = vmatpush1.bf16.xpose.msra.mxu0 0
    %2653 = vmatprep.subr.bf16.mxu0 0
    %2654 = vmatpush1.bf16.xpose.msra.mxu0 %v2637
    %2655 = vmatprep.subr.bf16.mxu0 0
    %2656 = vmatpush2.bf16.xpose.msra.mxu0 0
    %2657 = vmatprep.subr.bf16.mxu0 0
    %2658 = vmatpush2.bf16.xpose.msra.mxu0 0
    %2659 = vmatprep.subr.bf16.mxu0 0
    %2660 = vmatpush2.bf16.xpose.msra.mxu0 0
    %2661 = vmatprep.subr.bf16.mxu0 0
    %2662 = vmatpush2.bf16.xpose.msra.mxu0 0
    %2663 = vmatprep.subr.bf16.mxu0 0
    %2664 = vmatpush2.bf16.xpose.msra.mxu0 0
    %2665 = vmatprep.subr.bf16.mxu0 0
    %2666 = vmatpush2.bf16.xpose.msra.mxu0 0
    %2667 = vmatprep.subr.bf16.mxu0 0
    %2668 = vmatpush2.bf16.xpose.msra.mxu0 0
    %2669 = vmatprep.subr.bf16.mxu0 0
    %2670 = vmatpush2.bf16.xpose.msra.mxu0 0
    %2671 = vmatprep.mubr.bf16.mxu0 0
    %2672 = vmatmul.mubr.bf16.gmra.mxu0 %v2634
    %v2673 = vpop.f32.mrf.mxu0
    %v2674 = vadd.f32 0.0, %v2673
    %v2675 = vpop.f32.mrf.mxu0
    %v2676 = vpop.f32.mrf.mxu0
    %v2677 = vpop.f32.mrf.mxu0
    %2678 = vdwg.mxu0
    %v2679 = vmul.f32 %v2674, 0.35355338
    %v2680 = vadd.f32 %v2679, %v1354
    %v2681 = vsel %vm834, %v2680, -inf
    %2682 = vmax.xlane.f32.xlu0 %v2681
    %v2683 = vpop.xlane.xlu0 %2682
    %v2684 = vsub.f32 %v2680, %v2683
    %v2685 = vmul.f32 %v2684, 1.442695
    %v2686 = vpow.pop %v2685
    %v2687 = vsel %vm834, %v2686, 0.0
    %2688 = vadd.xlane.f32.xlu0 %v2687
    %v2689 = vpop.xlane.xlu0 %2688
    %v2690 = vrcp.pop %v2689
    %v2691 = vmul.f32 %v2686, %v2690
    %v2692 = vpack.c.bf16 %v2691, %v2691
    %2693 = vrot.lane.b32.xlu0 %v2629, 64
    %v2694 = vpop.permute.xlu0 %2693
    %v2696 = vsel %vm834, %v2692, 0
    %v2699 = vsel %vm627, %v2694, 0
    %2701 = vmatprep.subr.bf16.mxu0 0
    %2702 = vmatpush1.bf16.msra.mxu0 0
    %2703 = vmatprep.subr.bf16.mxu0 0
    %2704 = vmatpush1.bf16.msra.mxu0 0
    %2705 = vmatprep.subr.bf16.mxu0 0
    %2706 = vmatpush1.bf16.msra.mxu0 0
    %2707 = vmatprep.subr.bf16.mxu0 0
    %2708 = vmatpush1.bf16.msra.mxu0 0
    %2709 = vmatprep.subr.bf16.mxu0 0
    %2710 = vmatpush1.bf16.msra.mxu0 0
    %2711 = vmatprep.subr.bf16.mxu0 0
    %2712 = vmatpush1.bf16.msra.mxu0 0
    %2713 = vmatprep.subr.bf16.mxu0 0
    %2714 = vmatpush1.bf16.msra.mxu0 0
    %2715 = vmatprep.subr.bf16.mxu0 0
    %2716 = vmatpush1.bf16.msra.mxu0 %v2699
    %2717 = vmatprep.subr.bf16.mxu0 0
    %2718 = vmatpush2.bf16.msra.mxu0 0
    %2719 = vmatprep.subr.bf16.mxu0 0
    %2720 = vmatpush2.bf16.msra.mxu0 0
    %2721 = vmatprep.subr.bf16.mxu0 0
    %2722 = vmatpush2.bf16.msra.mxu0 0
    %2723 = vmatprep.subr.bf16.mxu0 0
    %2724 = vmatpush2.bf16.msra.mxu0 0
    %2725 = vmatprep.subr.bf16.mxu0 0
    %2726 = vmatpush2.bf16.msra.mxu0 0
    %2727 = vmatprep.subr.bf16.mxu0 0
    %2728 = vmatpush2.bf16.msra.mxu0 0
    %2729 = vmatprep.subr.bf16.mxu0 0
    %2730 = vmatpush2.bf16.msra.mxu0 0
    %2731 = vmatprep.subr.bf16.mxu0 0
    %2732 = vmatpush2.bf16.msra.mxu0 0
    %2733 = vmatprep.mubr.bf16.mxu0 0
    %2734 = vmatmul.mubr.bf16.gmra.mxu0 %v2696
    %v2735 = vpop.f32.mrf.mxu0
    %v2736 = vadd.f32 0.0, %v2735
    %v2737 = vpop.f32.mrf.mxu0
    %v2738 = vpop.f32.mrf.mxu0
    %v2739 = vpop.f32.mrf.mxu0
    %2740 = vdwg.mxu0
    %2741 = vrot.lane.b32.xlu0 %v2629, 120
    %v2742 = vpop.permute.xlu0 %2741
    %2743 = vrot.lane.b32.xlu0 %v2629, 88
    %v2744 = vpop.permute.xlu0 %2743
    %v2746 = vsel %vm834, %v2742, 0
    %v2749 = vsel %vm834, %v2744, 0
    %2751 = vmatprep.subr.bf16.mxu0 0
    %2752 = vmatpush1.bf16.xpose.msra.mxu0 0
    %2753 = vmatprep.subr.bf16.mxu0 0
    %2754 = vmatpush1.bf16.xpose.msra.mxu0 0
    %2755 = vmatprep.subr.bf16.mxu0 0
    %2756 = vmatpush1.bf16.xpose.msra.mxu0 0
    %2757 = vmatprep.subr.bf16.mxu0 0
    %2758 = vmatpush1.bf16.xpose.msra.mxu0 0
    %2759 = vmatprep.subr.bf16.mxu0 0
    %2760 = vmatpush1.bf16.xpose.msra.mxu0 0
    %2761 = vmatprep.subr.bf16.mxu0 0
    %2762 = vmatpush1.bf16.xpose.msra.mxu0 0
    %2763 = vmatprep.subr.bf16.mxu0 0
    %2764 = vmatpush1.bf16.xpose.msra.mxu0 0
    %2765 = vmatprep.subr.bf16.mxu0 0
    %2766 = vmatpush1.bf16.xpose.msra.mxu0 %v2749
    %2767 = vmatprep.subr.bf16.mxu0 0
    %2768 = vmatpush2.bf16.xpose.msra.mxu0 0
    %2769 = vmatprep.subr.bf16.mxu0 0
    %2770 = vmatpush2.bf16.xpose.msra.mxu0 0
    %2771 = vmatprep.subr.bf16.mxu0 0
    %2772 = vmatpush2.bf16.xpose.msra.mxu0 0
    %2773 = vmatprep.subr.bf16.mxu0 0
    %2774 = vmatpush2.bf16.xpose.msra.mxu0 0
    %2775 = vmatprep.subr.bf16.mxu0 0
    %2776 = vmatpush2.bf16.xpose.msra.mxu0 0
    %2777 = vmatprep.subr.bf16.mxu0 0
    %2778 = vmatpush2.bf16.xpose.msra.mxu0 0
    %2779 = vmatprep.subr.bf16.mxu0 0
    %2780 = vmatpush2.bf16.xpose.msra.mxu0 0
    %2781 = vmatprep.subr.bf16.mxu0 0
    %2782 = vmatpush2.bf16.xpose.msra.mxu0 0
    %2783 = vmatprep.mubr.bf16.mxu0 0
    %2784 = vmatmul.mubr.bf16.gmra.mxu0 %v2746
    %v2785 = vpop.f32.mrf.mxu0
    %v2786 = vadd.f32 0.0, %v2785
    %v2787 = vpop.f32.mrf.mxu0
    %v2788 = vpop.f32.mrf.mxu0
    %v2789 = vpop.f32.mrf.mxu0
    %2790 = vdwg.mxu0
    %v2791 = vmul.f32 %v2786, 0.35355338
    %v2792 = vadd.f32 %v2791, %v1354
    %v2793 = vsel %vm834, %v2792, -inf
    %2794 = vmax.xlane.f32.xlu0 %v2793
    %v2795 = vpop.xlane.xlu0 %2794
    %v2796 = vsub.f32 %v2792, %v2795
    %v2797 = vmul.f32 %v2796, 1.442695
    %v2798 = vpow.pop %v2797
    %v2799 = vsel %vm834, %v2798, 0.0
    %2800 = vadd.xlane.f32.xlu0 %v2799
    %v2801 = vpop.xlane.xlu0 %2800
    %v2802 = vrcp.pop %v2801
    %v2803 = vmul.f32 %v2798, %v2802
    %v2804 = vpack.c.bf16 %v2803, %v2803
    %2805 = vrot.lane.b32.xlu0 %v2629, 56
    %v2806 = vpop.permute.xlu0 %2805
    %v2808 = vsel %vm834, %v2804, 0
    %v2811 = vsel %vm627, %v2806, 0
    %2813 = vmatprep.subr.bf16.mxu0 0
    %2814 = vmatpush1.bf16.msra.mxu0 0
    %2815 = vmatprep.subr.bf16.mxu0 0
    %2816 = vmatpush1.bf16.msra.mxu0 0
    %2817 = vmatprep.subr.bf16.mxu0 0
    %2818 = vmatpush1.bf16.msra.mxu0 0
    %2819 = vmatprep.subr.bf16.mxu0 0
    %2820 = vmatpush1.bf16.msra.mxu0 0
    %2821 = vmatprep.subr.bf16.mxu0 0
    %2822 = vmatpush1.bf16.msra.mxu0 0
    %2823 = vmatprep.subr.bf16.mxu0 0
    %2824 = vmatpush1.bf16.msra.mxu0 0
    %2825 = vmatprep.subr.bf16.mxu0 0
    %2826 = vmatpush1.bf16.msra.mxu0 0
    %2827 = vmatprep.subr.bf16.mxu0 0
    %2828 = vmatpush1.bf16.msra.mxu0 %v2811
    %2829 = vmatprep.subr.bf16.mxu0 0
    %2830 = vmatpush2.bf16.msra.mxu0 0
    %2831 = vmatprep.subr.bf16.mxu0 0
    %2832 = vmatpush2.bf16.msra.mxu0 0
    %2833 = vmatprep.subr.bf16.mxu0 0
    %2834 = vmatpush2.bf16.msra.mxu0 0
    %2835 = vmatprep.subr.bf16.mxu0 0
    %2836 = vmatpush2.bf16.msra.mxu0 0
    %2837 = vmatprep.subr.bf16.mxu0 0
    %2838 = vmatpush2.bf16.msra.mxu0 0
    %2839 = vmatprep.subr.bf16.mxu0 0
    %2840 = vmatpush2.bf16.msra.mxu0 0
    %2841 = vmatprep.subr.bf16.mxu0 0
    %2842 = vmatpush2.bf16.msra.mxu0 0
    %2843 = vmatprep.subr.bf16.mxu0 0
    %2844 = vmatpush2.bf16.msra.mxu0 0
    %2845 = vmatprep.mubr.bf16.mxu0 0
    %2846 = vmatmul.mubr.bf16.gmra.mxu0 %v2808
    %v2847 = vpop.f32.mrf.mxu0
    %v2848 = vadd.f32 0.0, %v2847
    %v2849 = vpop.f32.mrf.mxu0
    %v2850 = vpop.f32.mrf.mxu0
    %v2851 = vpop.f32.mrf.mxu0
    %2852 = vdwg.mxu0
    %2853 = vrot.lane.b32.xlu0 %v2629, 112
    %v2854 = vpop.permute.xlu0 %2853
    %2855 = vrot.lane.b32.xlu0 %v2629, 80
    %v2856 = vpop.permute.xlu0 %2855
    %v2858 = vsel %vm834, %v2854, 0
    %v2861 = vsel %vm834, %v2856, 0
    %2863 = vmatprep.subr.bf16.mxu0 0
    %2864 = vmatpush1.bf16.xpose.msra.mxu0 0
    %2865 = vmatprep.subr.bf16.mxu0 0
    %2866 = vmatpush1.bf16.xpose.msra.mxu0 0
    %2867 = vmatprep.subr.bf16.mxu0 0
    %2868 = vmatpush1.bf16.xpose.msra.mxu0 0
    %2869 = vmatprep.subr.bf16.mxu0 0
    %2870 = vmatpush1.bf16.xpose.msra.mxu0 0
    %2871 = vmatprep.subr.bf16.mxu0 0
    %2872 = vmatpush1.bf16.xpose.msra.mxu0 0
    %2873 = vmatprep.subr.bf16.mxu0 0
    %2874 = vmatpush1.bf16.xpose.msra.mxu0 0
    %2875 = vmatprep.subr.bf16.mxu0 0
    %2876 = vmatpush1.bf16.xpose.msra.mxu0 0
    %2877 = vmatprep.subr.bf16.mxu0 0
    %2878 = vmatpush1.bf16.xpose.msra.mxu0 %v2861
    %2879 = vmatprep.subr.bf16.mxu0 0
    %2880 = vmatpush2.bf16.xpose.msra.mxu0 0
    %2881 = vmatprep.subr.bf16.mxu0 0
    %2882 = vmatpush2.bf16.xpose.msra.mxu0 0
    %2883 = vmatprep.subr.bf16.mxu0 0
    %2884 = vmatpush2.bf16.xpose.msra.mxu0 0
    %2885 = vmatprep.subr.bf16.mxu0 0
    %2886 = vmatpush2.bf16.xpose.msra.mxu0 0
    %2887 = vmatprep.subr.bf16.mxu0 0
    %2888 = vmatpush2.bf16.xpose.msra.mxu0 0
    %2889 = vmatprep.subr.bf16.mxu0 0
    %2890 = vmatpush2.bf16.xpose.msra.mxu0 0
    %2891 = vmatprep.subr.bf16.mxu0 0
    %2892 = vmatpush2.bf16.xpose.msra.mxu0 0
    %2893 = vmatprep.subr.bf16.mxu0 0
    %2894 = vmatpush2.bf16.xpose.msra.mxu0 0
    %2895 = vmatprep.mubr.bf16.mxu0 0
    %2896 = vmatmul.mubr.bf16.gmra.mxu0 %v2858
    %v2897 = vpop.f32.mrf.mxu0
    %v2898 = vadd.f32 0.0, %v2897
    %v2899 = vpop.f32.mrf.mxu0
    %v2900 = vpop.f32.mrf.mxu0
    %v2901 = vpop.f32.mrf.mxu0
    %2902 = vdwg.mxu0
    %v2903 = vmul.f32 %v2898, 0.35355338
    %v2904 = vadd.f32 %v2903, %v1354
    %v2905 = vsel %vm834, %v2904, -inf
    %2906 = vmax.xlane.f32.xlu0 %v2905
    %v2907 = vpop.xlane.xlu0 %2906
    %v2908 = vsub.f32 %v2904, %v2907
    %v2909 = vmul.f32 %v2908, 1.442695
    %v2910 = vpow.pop %v2909
    %v2911 = vsel %vm834, %v2910, 0.0
    %2912 = vadd.xlane.f32.xlu0 %v2911
    %v2913 = vpop.xlane.xlu0 %2912
    %v2914 = vrcp.pop %v2913
    %v2915 = vmul.f32 %v2910, %v2914
    %v2916 = vpack.c.bf16 %v2915, %v2915
    %2917 = vrot.lane.b32.xlu0 %v2629, 48
    %v2918 = vpop.permute.xlu0 %2917
    %v2920 = vsel %vm834, %v2916, 0
    %v2923 = vsel %vm627, %v2918, 0
    %2925 = vmatprep.subr.bf16.mxu0 0
    %2926 = vmatpush1.bf16.msra.mxu0 0
    %2927 = vmatprep.subr.bf16.mxu0 0
    %2928 = vmatpush1.bf16.msra.mxu0 0
    %2929 = vmatprep.subr.bf16.mxu0 0
    %2930 = vmatpush1.bf16.msra.mxu0 0
    %2931 = vmatprep.subr.bf16.mxu0 0
    %2932 = vmatpush1.bf16.msra.mxu0 0
    %2933 = vmatprep.subr.bf16.mxu0 0
    %2934 = vmatpush1.bf16.msra.mxu0 0
    %2935 = vmatprep.subr.bf16.mxu0 0
    %2936 = vmatpush1.bf16.msra.mxu0 0
    %2937 = vmatprep.subr.bf16.mxu0 0
    %2938 = vmatpush1.bf16.msra.mxu0 0
    %2939 = vmatprep.subr.bf16.mxu0 0
    %2940 = vmatpush1.bf16.msra.mxu0 %v2923
    %2941 = vmatprep.subr.bf16.mxu0 0
    %2942 = vmatpush2.bf16.msra.mxu0 0
    %2943 = vmatprep.subr.bf16.mxu0 0
    %2944 = vmatpush2.bf16.msra.mxu0 0
    %2945 = vmatprep.subr.bf16.mxu0 0
    %2946 = vmatpush2.bf16.msra.mxu0 0
    %2947 = vmatprep.subr.bf16.mxu0 0
    %2948 = vmatpush2.bf16.msra.mxu0 0
    %2949 = vmatprep.subr.bf16.mxu0 0
    %2950 = vmatpush2.bf16.msra.mxu0 0
    %2951 = vmatprep.subr.bf16.mxu0 0
    %2952 = vmatpush2.bf16.msra.mxu0 0
    %2953 = vmatprep.subr.bf16.mxu0 0
    %2954 = vmatpush2.bf16.msra.mxu0 0
    %2955 = vmatprep.subr.bf16.mxu0 0
    %2956 = vmatpush2.bf16.msra.mxu0 0
    %2957 = vmatprep.mubr.bf16.mxu0 0
    %2958 = vmatmul.mubr.bf16.gmra.mxu0 %v2920
    %v2959 = vpop.f32.mrf.mxu0
    %v2960 = vadd.f32 0.0, %v2959
    %v2961 = vpop.f32.mrf.mxu0
    %v2962 = vpop.f32.mrf.mxu0
    %v2963 = vpop.f32.mrf.mxu0
    %2964 = vdwg.mxu0
    %2965 = vrot.lane.b32.xlu0 %v2629, 104
    %v2966 = vpop.permute.xlu0 %2965
    %2967 = vrot.lane.b32.xlu0 %v2629, 72
    %v2968 = vpop.permute.xlu0 %2967
    %v2970 = vsel %vm834, %v2966, 0
    %v2973 = vsel %vm834, %v2968, 0
    %2975 = vmatprep.subr.bf16.mxu0 0
    %2976 = vmatpush1.bf16.xpose.msra.mxu0 0
    %2977 = vmatprep.subr.bf16.mxu0 0
    %2978 = vmatpush1.bf16.xpose.msra.mxu0 0
    %2979 = vmatprep.subr.bf16.mxu0 0
    %2980 = vmatpush1.bf16.xpose.msra.mxu0 0
    %2981 = vmatprep.subr.bf16.mxu0 0
    %2982 = vmatpush1.bf16.xpose.msra.mxu0 0
    %2983 = vmatprep.subr.bf16.mxu0 0
    %2984 = vmatpush1.bf16.xpose.msra.mxu0 0
    %2985 = vmatprep.subr.bf16.mxu0 0
    %2986 = vmatpush1.bf16.xpose.msra.mxu0 0
    %2987 = vmatprep.subr.bf16.mxu0 0
    %2988 = vmatpush1.bf16.xpose.msra.mxu0 0
    %2989 = vmatprep.subr.bf16.mxu0 0
    %2990 = vmatpush1.bf16.xpose.msra.mxu0 %v2973
    %2991 = vmatprep.subr.bf16.mxu0 0
    %2992 = vmatpush2.bf16.xpose.msra.mxu0 0
    %2993 = vmatprep.subr.bf16.mxu0 0
    %2994 = vmatpush2.bf16.xpose.msra.mxu0 0
    %2995 = vmatprep.subr.bf16.mxu0 0
    %2996 = vmatpush2.bf16.xpose.msra.mxu0 0
    %2997 = vmatprep.subr.bf16.mxu0 0
    %2998 = vmatpush2.bf16.xpose.msra.mxu0 0
    %2999 = vmatprep.subr.bf16.mxu0 0
    %3000 = vmatpush2.bf16.xpose.msra.mxu0 0
    %3001 = vmatprep.subr.bf16.mxu0 0
    %3002 = vmatpush2.bf16.xpose.msra.mxu0 0
    %3003 = vmatprep.subr.bf16.mxu0 0
    %3004 = vmatpush2.bf16.xpose.msra.mxu0 0
    %3005 = vmatprep.subr.bf16.mxu0 0
    %3006 = vmatpush2.bf16.xpose.msra.mxu0 0
    %3007 = vmatprep.mubr.bf16.mxu0 0
    %3008 = vmatmul.mubr.bf16.gmra.mxu0 %v2970
    %v3009 = vpop.f32.mrf.mxu0
    %v3010 = vadd.f32 0.0, %v3009
    %v3011 = vpop.f32.mrf.mxu0
    %v3012 = vpop.f32.mrf.mxu0
    %v3013 = vpop.f32.mrf.mxu0
    %3014 = vdwg.mxu0
    %v3015 = vmul.f32 %v3010, 0.35355338
    %v3016 = vadd.f32 %v3015, %v1354
    %v3017 = vsel %vm834, %v3016, -inf
    %3018 = vmax.xlane.f32.xlu0 %v3017
    %v3019 = vpop.xlane.xlu0 %3018
    %v3020 = vsub.f32 %v3016, %v3019
    %v3021 = vmul.f32 %v3020, 1.442695
    %v3022 = vpow.pop %v3021
    %v3023 = vsel %vm834, %v3022, 0.0
    %3024 = vadd.xlane.f32.xlu0 %v3023
    %v3025 = vpop.xlane.xlu0 %3024
    %v3026 = vrcp.pop %v3025
    %v3027 = vmul.f32 %v3022, %v3026
    %v3028 = vpack.c.bf16 %v3027, %v3027
    %3029 = vrot.lane.b32.xlu0 %v2629, 40
    %v3030 = vpop.permute.xlu0 %3029
    %v3032 = vsel %vm834, %v3028, 0
    %v3035 = vsel %vm627, %v3030, 0
    %3037 = vmatprep.subr.bf16.mxu0 0
    %3038 = vmatpush1.bf16.msra.mxu0 0
    %3039 = vmatprep.subr.bf16.mxu0 0
    %3040 = vmatpush1.bf16.msra.mxu0 0
    %3041 = vmatprep.subr.bf16.mxu0 0
    %3042 = vmatpush1.bf16.msra.mxu0 0
    %3043 = vmatprep.subr.bf16.mxu0 0
    %3044 = vmatpush1.bf16.msra.mxu0 0
    %3045 = vmatprep.subr.bf16.mxu0 0
    %3046 = vmatpush1.bf16.msra.mxu0 0
    %3047 = vmatprep.subr.bf16.mxu0 0
    %3048 = vmatpush1.bf16.msra.mxu0 0
    %3049 = vmatprep.subr.bf16.mxu0 0
    %3050 = vmatpush1.bf16.msra.mxu0 0
    %3051 = vmatprep.subr.bf16.mxu0 0
    %3052 = vmatpush1.bf16.msra.mxu0 %v3035
    %3053 = vmatprep.subr.bf16.mxu0 0
    %3054 = vmatpush2.bf16.msra.mxu0 0
    %3055 = vmatprep.subr.bf16.mxu0 0
    %3056 = vmatpush2.bf16.msra.mxu0 0
    %3057 = vmatprep.subr.bf16.mxu0 0
    %3058 = vmatpush2.bf16.msra.mxu0 0
    %3059 = vmatprep.subr.bf16.mxu0 0
    %3060 = vmatpush2.bf16.msra.mxu0 0
    %3061 = vmatprep.subr.bf16.mxu0 0
    %3062 = vmatpush2.bf16.msra.mxu0 0
    %3063 = vmatprep.subr.bf16.mxu0 0
    %3064 = vmatpush2.bf16.msra.mxu0 0
    %3065 = vmatprep.subr.bf16.mxu0 0
    %3066 = vmatpush2.bf16.msra.mxu0 0
    %3067 = vmatprep.subr.bf16.mxu0 0
    %3068 = vmatpush2.bf16.msra.mxu0 0
    %3069 = vmatprep.mubr.bf16.mxu0 0
    %3070 = vmatmul.mubr.bf16.gmra.mxu0 %v3032
    %v3071 = vpop.f32.mrf.mxu0
    %v3072 = vadd.f32 0.0, %v3071
    %v3073 = vpop.f32.mrf.mxu0
    %v3074 = vpop.f32.mrf.mxu0
    %v3075 = vpop.f32.mrf.mxu0
    %3076 = vdwg.mxu0
    %3078 = vrot.lane.b32.xlu0 %v2848, 8
    %v3079 = vpop.permute.xlu0 %3078
    %3082 = vrot.lane.b32.xlu0 %v2960, 16
    %v3083 = vpop.permute.xlu0 %3082
    %3086 = vrot.lane.b32.xlu0 %v3072, 24
    %v3087 = vpop.permute.xlu0 %3086
    %v3089 = vsel %vm834, %v2736, %v3079
    %v3090 = vsel %vm1296, %v3089, %v3083
    %v3091 = vsel %vm1298, %v3090, %v3087
    %v3092 = vpack.c.bf16 %v3091, %v2628
    %v3093 = vld [vmem:[#allocation26] sm:$0xf]
    %v3094 = vld [vmem:[#allocation26 + $0x4] sm:$0xf]
    %v3095 = vld [vmem:[#allocation26 + $0x8] sm:$0xf]
    %v3096 = vld [vmem:[#allocation26 + $0xc] sm:$0xf]
    %v3097 = vld [vmem:[#allocation28] sm:$0x1]
    %v3099 = vlaneseq
    %v3100 = vshrl.u32 %v3099, 7
    %v3101 = vsub.s32 0, %v3100
    %v3102 = vrot.slane %v3097, %v3101
    %v3108 = vunpack.c.l.b16 %v3093
    %v3109 = vunpack.c.l.b16 %v3094
    %v3110 = vunpack.c.l.b16 %v3095
    %v3111 = vunpack.c.l.b16 %v3096
    %v3112 = vpack.c.b16 %v3109, %v3108
    %v3113 = vpack.c.b16 %v3111, %v3110
    %v3117 = vsel %vm717, %v3092, 0
    %3119 = vmatprep.subr.bf16.mxu0 0
    %3120 = vmatpush1.bf16.msra.mxu0 0
    %3121 = vmatprep.subr.bf16.mxu0 0
    %3122 = vmatpush1.bf16.msra.mxu0 0
    %3123 = vmatprep.subr.bf16.mxu0 0
    %3124 = vmatpush1.bf16.msra.mxu0 0
    %3125 = vmatprep.subr.bf16.mxu0 0
    %3126 = vmatpush1.bf16.msra.mxu0 0
    %3127 = vmatprep.subr.bf16.mxu0 0
    %3128 = vmatpush1.bf16.msra.mxu0 0
    %3129 = vmatprep.subr.bf16.mxu0 0
    %3130 = vmatpush1.bf16.msra.mxu0 0
    %3131 = vmatprep.subr.bf16.mxu0 0
    %3132 = vmatpush1.bf16.msra.mxu0 %v3113
    %3133 = vmatprep.subr.bf16.mxu0 0
    %3134 = vmatpush1.bf16.msra.mxu0 %v3112
    %3135 = vmatprep.subr.bf16.mxu0 0
    %3136 = vmatpush2.bf16.msra.mxu0 0
    %3137 = vmatprep.subr.bf16.mxu0 0
    %3138 = vmatpush2.bf16.msra.mxu0 0
    %3139 = vmatprep.subr.bf16.mxu0 0
    %3140 = vmatpush2.bf16.msra.mxu0 0
    %3141 = vmatprep.subr.bf16.mxu0 0
    %3142 = vmatpush2.bf16.msra.mxu0 0
    %3143 = vmatprep.subr.bf16.mxu0 0
    %3144 = vmatpush2.bf16.msra.mxu0 0
    %3145 = vmatprep.subr.bf16.mxu0 0
    %3146 = vmatpush2.bf16.msra.mxu0 0
    %3147 = vmatprep.subr.bf16.mxu0 0
    %3148 = vmatpush2.bf16.msra.mxu0 0
    %3149 = vmatprep.subr.bf16.mxu0 0
    %3150 = vmatpush2.bf16.msra.mxu0 0
    %3151 = vmatprep.mubr.bf16.mxu0 0
    %3152 = vmatmul.mubr.bf16.gmra.mxu0 %v3117
    %v3153 = vpop.f32.mrf.mxu0
    %v3154 = vadd.f32 %v3102, %v3153
    %v3155 = vpop.f32.mrf.mxu0
    %v3156 = vpop.f32.mrf.mxu0
    %v3157 = vadd.f32 %v3102, %v3156
    %v3158 = vpop.f32.mrf.mxu0
    %3159 = vdwg.mxu0
    %v3160 = vadd.f32 %v2096, %v3154
    %v3161 = vadd.f32 %v2097, %v3157
    %v3162 = vld [vmem:[#allocation29] sm:$0x1]
    %v3163 = vld [vmem:[#allocation31] sm:$0x1]
    %v3164 = vsel %vm717, %v3160, 0.0
    %3165 = vadd.xlane.f32.xlu0 %v3164
    %v3166 = vpop.xlane.xlu0 %3165
    %v3167 = vsel %vm717, %v3161, 0.0
    %3168 = vadd.xlane.f32.xlu0 %v3167
    %v3169 = vpop.xlane.xlu0 %3168
    %v3170 = vmul.f32 %v3166, %v724
    %v3171 = vmul.f32 %v3169, %v724
    %v3172 = vsub.f32 %v3160, %v3170
    %v3173 = vsub.f32 %v3161, %v3171
    %v3174 = vmul.f32 %v3172, %v3172
    %v3175 = vmul.f32 %v3173, %v3173
    %v3176 = vsel %vm717, %v3174, 0.0
    %3177 = vadd.xlane.f32.xlu0 %v3176
    %v3178 = vpop.xlane.xlu0 %3177
    %v3179 = vsel %vm717, %v3175, 0.0
    %3180 = vadd.xlane.f32.xlu0 %v3179
    %v3181 = vpop.xlane.xlu0 %3180
    %v3182 = vmul.f32 %v3178, %v724
    %v3183 = vmul.f32 %v3181, %v724
    %v3184 = vadd.f32 %v3182, 1e-05
    %v3185 = vadd.f32 %v3183, 1e-05
    %v3186 = vrsqrt.pop %v3184
    %v3187 = vrsqrt.pop %v3185
    %v3188 = vmul.f32 %v3172, %v3186
    %v3189 = vmul.f32 %v3173, %v3187
    %v3191 = vlaneseq
    %v3192 = vshrl.u32 %v3191, 7
    %v3193 = vsub.s32 0, %v3192
    %v3194 = vrot.slane %v3162, %v3193
    %v3196 = vmul.f32 %v3188, %v3194
    %v3197 = vmul.f32 %v3189, %v3194
    %v3199 = vlaneseq
    %v3200 = vshrl.u32 %v3199, 7
    %v3201 = vsub.s32 0, %v3200
    %v3202 = vrot.slane %v3163, %v3201
    %v3204 = vadd.f32 %v3196, %v3202
    %v3205 = vadd.f32 %v3197, %v3202
    %v3206 = vpack.c.bf16 %v3205, %v3204
    %v3207 = vld [vmem:[#allocation32] sm:$0xf]
    %v3208 = vld [vmem:[#allocation32 + $0x4] sm:$0xf]
    %v3209 = vld [vmem:[#allocation32 + $0x8] sm:$0xf]
    %v3210 = vld [vmem:[#allocation32 + $0xc] sm:$0xf]
    %v3211 = vld [vmem:[#allocation34] sm:$0x1]
    %v3213 = vlaneseq
    %v3214 = vshrl.u32 %v3213, 7
    %v3215 = vsub.s32 0, %v3214
    %v3216 = vrot.slane %v3211, %v3215
    %v3222 = vunpack.c.l.b16 %v3207
    %v3223 = vunpack.c.l.b16 %v3208
    %v3224 = vunpack.c.l.b16 %v3209
    %v3225 = vunpack.c.l.b16 %v3210
    %v3226 = vpack.c.b16 %v3223, %v3222
    %v3227 = vpack.c.b16 %v3225, %v3224
    %v3231 = vsel %vm717, %v3206, 0
    %3233 = vmatprep.subr.bf16.mxu0 0
    %3234 = vmatpush1.bf16.msra.mxu0 0
    %3235 = vmatprep.subr.bf16.mxu0 0
    %3236 = vmatpush1.bf16.msra.mxu0 0
    %3237 = vmatprep.subr.bf16.mxu0 0
    %3238 = vmatpush1.bf16.msra.mxu0 0
    %3239 = vmatprep.subr.bf16.mxu0 0
    %3240 = vmatpush1.bf16.msra.mxu0 0
    %3241 = vmatprep.subr.bf16.mxu0 0
    %3242 = vmatpush1.bf16.msra.mxu0 0
    %3243 = vmatprep.subr.bf16.mxu0 0
    %3244 = vmatpush1.bf16.msra.mxu0 0
    %3245 = vmatprep.subr.bf16.mxu0 0
    %3246 = vmatpush1.bf16.msra.mxu0 %v3227
    %3247 = vmatprep.subr.bf16.mxu0 0
    %3248 = vmatpush1.bf16.msra.mxu0 %v3226
    %3249 = vmatprep.subr.bf16.mxu0 0
    %3250 = vmatpush2.bf16.msra.mxu0 0
    %3251 = vmatprep.subr.bf16.mxu0 0
    %3252 = vmatpush2.bf16.msra.mxu0 0
    %3253 = vmatprep.subr.bf16.mxu0 0
    %3254 = vmatpush2.bf16.msra.mxu0 0
    %3255 = vmatprep.subr.bf16.mxu0 0
    %3256 = vmatpush2.bf16.msra.mxu0 0
    %3257 = vmatprep.subr.bf16.mxu0 0
    %3258 = vmatpush2.bf16.msra.mxu0 0
    %3259 = vmatprep.subr.bf16.mxu0 0
    %3260 = vmatpush2.bf16.msra.mxu0 0
    %3261 = vmatprep.subr.bf16.mxu0 0
    %3262 = vmatpush2.bf16.msra.mxu0 0
    %3263 = vmatprep.subr.bf16.mxu0 0
    %3264 = vmatpush2.bf16.msra.mxu0 0
    %3265 = vmatprep.mubr.bf16.mxu0 0
    %3266 = vmatmul.mubr.bf16.gmra.mxu0 %v3231
    %v3267 = vpop.f32.mrf.mxu0
    %v3268 = vadd.f32 %v3216, %v3267
    %v3269 = vpop.f32.mrf.mxu0
    %v3270 = vpop.f32.mrf.mxu0
    %v3271 = vadd.f32 %v3216, %v3270
    %v3272 = vpop.f32.mrf.mxu0
    %3273 = vdwg.mxu0
    %v3274 = vmul.f32 %v3268, %v3268
    %v3275 = vmul.f32 %v3271, %v3271
    %v3276 = vmul.f32 %v3268, %v3274
    %v3277 = vmul.f32 %v3271, %v3275
    %v3278 = vmul.f32 %v3276, 0.044715
    %v3279 = vmul.f32 %v3277, 0.044715
    %v3280 = vadd.f32 %v3268, %v3278
    %v3281 = vadd.f32 %v3271, %v3279
    %v3282 = vmul.f32 %v3280, 0.7978846
    %v3283 = vmul.f32 %v3281, 0.7978846
    %v3284 = vtanh.pop %v3282
    %v3285 = vtanh.pop %v3283
    %v3286 = vadd.f32 %v3284, 1.0
    %v3287 = vadd.f32 %v3285, 1.0
    %v3288 = vmul.f32 %v3286, 0.5
    %v3289 = vmul.f32 %v3287, 0.5
    %v3290 = vmul.f32 %v3268, %v3288
    %v3291 = vmul.f32 %v3271, %v3289
    %v3292 = vpack.c.bf16 %v3291, %v3290
    %v3293 = vld [vmem:[%s55] sm:$0xf]
    %v3294 = vld [vmem:[%s55 + $0x4] sm:$0xf]
    %v3295 = vld [vmem:[%s55 + $0x8] sm:$0xf]
    %v3296 = vld [vmem:[%s55 + $0xc] sm:$0xf]
    %v3297 = vld [vmem:[%s55 + $0x10] sm:$0xf]
    %v3298 = vld [vmem:[%s55 + $0x14] sm:$0xf]
    %v3299 = vld [vmem:[%s55 + $0x18] sm:$0xf]
    %v3300 = vld [vmem:[%s55 + $0x1c] sm:$0xf]
    %v3301 = vld [vmem:[#allocation35] sm:$0x1]
    %v3303 = vlaneseq
    %v3304 = vshrl.u32 %v3303, 7
    %v3305 = vsub.s32 0, %v3304
    %v3306 = vrot.slane %v3301, %v3305
    %v3316 = vunpack.c.l.b16 %v3293
    %v3317 = vunpack.c.l.b16 %v3294
    %v3318 = vunpack.c.l.b16 %v3295
    %v3319 = vunpack.c.l.b16 %v3296
    %v3320 = vunpack.c.l.b16 %v3297
    %v3321 = vunpack.c.l.b16 %v3298
    %v3322 = vunpack.c.l.b16 %v3299
    %v3323 = vunpack.c.l.b16 %v3300
    %v3324 = vpack.c.b16 %v3317, %v3316
    %v3325 = vpack.c.b16 %v3319, %v3318
    %v3326 = vpack.c.b16 %v3321, %v3320
    %v3327 = vpack.c.b16 %v3323, %v3322
    %v3333 = vsel %vm2007, %v3292, 0
    %3335 = vmatprep.subr.bf16.mxu0 0
    %3336 = vmatpush1.bf16.msra.mxu0 0
    %3337 = vmatprep.subr.bf16.mxu0 0
    %3338 = vmatpush1.bf16.msra.mxu0 0
    %3339 = vmatprep.subr.bf16.mxu0 0
    %3340 = vmatpush1.bf16.msra.mxu0 0
    %3341 = vmatprep.subr.bf16.mxu0 0
    %3342 = vmatpush1.bf16.msra.mxu0 0
    %3343 = vmatprep.subr.bf16.mxu0 0
    %3344 = vmatpush1.bf16.msra.mxu0 %v3327
    %3345 = vmatprep.subr.bf16.mxu0 0
    %3346 = vmatpush1.bf16.msra.mxu0 %v3326
    %3347 = vmatprep.subr.bf16.mxu0 0
    %3348 = vmatpush1.bf16.msra.mxu0 %v3325
    %3349 = vmatprep.subr.bf16.mxu0 0
    %3350 = vmatpush1.bf16.msra.mxu0 %v3324
    %3351 = vmatprep.subr.bf16.mxu0 0
    %3352 = vmatpush2.bf16.msra.mxu0 0
    %3353 = vmatprep.subr.bf16.mxu0 0
    %3354 = vmatpush2.bf16.msra.mxu0 0
    %3355 = vmatprep.subr.bf16.mxu0 0
    %3356 = vmatpush2.bf16.msra.mxu0 0
    %3357 = vmatprep.subr.bf16.mxu0 0
    %3358 = vmatpush2.bf16.msra.mxu0 0
    %3359 = vmatprep.subr.bf16.mxu0 0
    %3360 = vmatpush2.bf16.msra.mxu0 0
    %3361 = vmatprep.subr.bf16.mxu0 0
    %3362 = vmatpush2.bf16.msra.mxu0 0
    %3363 = vmatprep.subr.bf16.mxu0 0
    %3364 = vmatpush2.bf16.msra.mxu0 0
    %3365 = vmatprep.subr.bf16.mxu0 0
    %3366 = vmatpush2.bf16.msra.mxu0 0
    %3367 = vmatprep.mubr.bf16.mxu0 0
    %3368 = vmatmul.mubr.bf16.gmra.mxu0 %v3333
    %v3369 = vpop.f32.mrf.mxu0
    %v3370 = vadd.f32 %v3306, %v3369
    %v3371 = vpop.f32.mrf.mxu0
    %v3372 = vpop.f32.mrf.mxu0
    %v3373 = vadd.f32 %v3306, %v3372
    %v3374 = vpop.f32.mrf.mxu0
    %3375 = vdwg.mxu0
    %v3376 = vadd.f32 %v3204, %v3370
    %v3377 = vadd.f32 %v3205, %v3373
    %v3378 = vld [vmem:[#allocation37] sm:$0x1]
    %v3379 = vld [vmem:[#allocation38] sm:$0x1]
    %v3380 = vsel %vm717, %v3376, 0.0
    %3381 = vadd.xlane.f32.xlu0 %v3380
    %v3382 = vpop.xlane.xlu0 %3381
    %v3383 = vsel %vm717, %v3377, 0.0
    %3384 = vadd.xlane.f32.xlu0 %v3383
    %v3385 = vpop.xlane.xlu0 %3384
    %v3386 = vmul.f32 %v3382, %v724
    %v3387 = vmul.f32 %v3385, %v724
    %v3388 = vsub.f32 %v3376, %v3386
    %v3389 = vsub.f32 %v3377, %v3387
    %v3390 = vmul.f32 %v3388, %v3388
    %v3391 = vmul.f32 %v3389, %v3389
    %v3392 = vsel %vm717, %v3390, 0.0
    %3393 = vadd.xlane.f32.xlu0 %v3392
    %v3394 = vpop.xlane.xlu0 %3393
    %v3395 = vsel %vm717, %v3391, 0.0
    %3396 = vadd.xlane.f32.xlu0 %v3395
    %v3397 = vpop.xlane.xlu0 %3396
    %v3398 = vmul.f32 %v3394, %v724
    %v3399 = vmul.f32 %v3397, %v724
    %v3400 = vadd.f32 %v3398, 1e-05
    %v3401 = vadd.f32 %v3399, 1e-05
    %v3402 = vrsqrt.pop %v3400
    %v3403 = vrsqrt.pop %v3401
    %v3404 = vmul.f32 %v3388, %v3402
    %v3405 = vmul.f32 %v3389, %v3403
    %v3407 = vlaneseq
    %v3408 = vshrl.u32 %v3407, 7
    %v3409 = vsub.s32 0, %v3408
    %v3410 = vrot.slane %v3378, %v3409
    %v3412 = vmul.f32 %v3404, %v3410
    %v3413 = vmul.f32 %v3405, %v3410
    %v3415 = vlaneseq
    %v3416 = vshrl.u32 %v3415, 7
    %v3417 = vsub.s32 0, %v3416
    %v3418 = vrot.slane %v3379, %v3417
    %v3420 = vadd.f32 %v3412, %v3418
    %v3421 = vadd.f32 %v3413, %v3418
    %v3423 = vrot.slane %v3421, 7
    %vm3425 = vcmask 1040384
    %v3426 = vsel %vm3425, %v3420, %v3423
    %v3427 = vpack.c.bf16 %v3426, %v3426
    %v3428 = vld [vmem:[#allocation40] sm:$0xf]
    %v3429 = vld [vmem:[#allocation40 + $0x4] sm:$0xf]
    %v3430 = vld [vmem:[#allocation40 + $0x8] sm:$0xf]
    %v3431 = vld [vmem:[#allocation40 + $0xc] sm:$0xf]
    %v3432 = vld [vmem:[%s65] sm:$0x1]
    %v3434 = vlaneseq
    %v3435 = vshrl.u32 %v3434, 7
    %v3436 = vsub.s32 0, %v3435
    %v3437 = vrot.slane %v3432, %v3436
    %v3443 = vunpack.c.l.b16 %v3428
    %v3444 = vunpack.c.l.b16 %v3429
    %v3445 = vunpack.c.l.b16 %v3430
    %v3446 = vunpack.c.l.b16 %v3431
    %v3447 = vpack.c.b16 %v3444, %v3443
    %v3448 = vpack.c.b16 %v3446, %v3445
    %v3452 = vsel %vm717, %v3427, 0
    %3454 = vmatprep.subr.bf16.mxu0 0
    %3455 = vmatpush1.bf16.msra.mxu0 0
    %3456 = vmatprep.subr.bf16.mxu0 0
    %3457 = vmatpush1.bf16.msra.mxu0 0
    %3458 = vmatprep.subr.bf16.mxu0 0
    %3459 = vmatpush1.bf16.msra.mxu0 0
    %3460 = vmatprep.subr.bf16.mxu0 0
    %3461 = vmatpush1.bf16.msra.mxu0 0
    %3462 = vmatprep.subr.bf16.mxu0 0
    %3463 = vmatpush1.bf16.msra.mxu0 0
    %3464 = vmatprep.subr.bf16.mxu0 0
    %3465 = vmatpush1.bf16.msra.mxu0 0
    %3466 = vmatprep.subr.bf16.mxu0 0
    %3467 = vmatpush1.bf16.msra.mxu0 %v3448
    %3468 = vmatprep.subr.bf16.mxu0 0
    %3469 = vmatpush1.bf16.msra.mxu0 %v3447
    %3470 = vmatprep.subr.bf16.mxu0 0
    %3471 = vmatpush2.bf16.msra.mxu0 0
    %3472 = vmatprep.subr.bf16.mxu0 0
    %3473 = vmatpush2.bf16.msra.mxu0 0
    %3474 = vmatprep.subr.bf16.mxu0 0
    %3475 = vmatpush2.bf16.msra.mxu0 0
    %3476 = vmatprep.subr.bf16.mxu0 0
    %3477 = vmatpush2.bf16.msra.mxu0 0
    %3478 = vmatprep.subr.bf16.mxu0 0
    %3479 = vmatpush2.bf16.msra.mxu0 0
    %3480 = vmatprep.subr.bf16.mxu0 0
    %3481 = vmatpush2.bf16.msra.mxu0 0
    %3482 = vmatprep.subr.bf16.mxu0 0
    %3483 = vmatpush2.bf16.msra.mxu0 0
    %3484 = vmatprep.subr.bf16.mxu0 0
    %3485 = vmatpush2.bf16.msra.mxu0 0
    %3486 = vmatprep.mubr.bf16.mxu0 0
    %3487 = vmatmul.mubr.bf16.gmra.mxu0 %v3452
    %v3488 = vpop.f32.mrf.mxu0
    %v3489 = vadd.f32 %v3437, %v3488
    %v3490 = vpop.f32.mrf.mxu0
    %v3491 = vpop.f32.mrf.mxu0
    %v3492 = vpop.f32.mrf.mxu0
    %3493 = vdwg.mxu0
    %v3494 = vtanh.pop %v3489
    %v3495 = vpack.c.bf16 %v3494, %v3494
    %v3496 = vld [vmem:[#allocation41] sm:$0xff]
    %v3497 = vld [vmem:[#allocation41 + $0x8] sm:$0xff]
    %v3498 = vld [vmem:[#allocation41 + $0x10] sm:$0xff]
    %v3499 = vld [vmem:[#allocation41 + $0x18] sm:$0xff]
    %v3500 = vld [vmem:[#allocation41 + $0x20] sm:$0xff]
    %v3501 = vld [vmem:[#allocation41 + $0x28] sm:$0xff]
    %v3502 = vld [vmem:[#allocation41 + $0x30] sm:$0xff]
    %v3503 = vld [vmem:[#allocation41 + $0x38] sm:$0xff]
    %v3504 = vld [vmem:[#allocation43] sm:$0xf]
    %v3506 = vlaneseq
    %v3507 = vshrl.u32 %v3506, 7
    %v3508 = vsub.s32 0, %v3507
    %v3509 = vrot.slane %v3504, %v3508
    %v3510 = vlaneseq
    %v3511 = vshrl.u32 %v3510, 7
    %v3512 = vsub.s32 1, %v3511
    %v3513 = vrot.slane %v3504, %v3512
    %v3514 = vlaneseq
    %v3515 = vshrl.u32 %v3514, 7
    %v3516 = vsub.s32 2, %v3515
    %v3517 = vrot.slane %v3504, %v3516
    %v3518 = vlaneseq
    %v3519 = vshrl.u32 %v3518, 7
    %v3520 = vsub.s32 3, %v3519
    %v3521 = vrot.slane %v3504, %v3520
    %v3534 = vunpack.c.l.b16 %v3496
    %v3535 = vunpack.c.h.b16 %v3496
    %v3536 = vunpack.c.l.b16 %v3497
    %v3537 = vunpack.c.h.b16 %v3497
    %v3538 = vunpack.c.l.b16 %v3498
    %v3539 = vunpack.c.h.b16 %v3498
    %v3540 = vunpack.c.l.b16 %v3499
    %v3541 = vunpack.c.h.b16 %v3499
    %v3542 = vunpack.c.l.b16 %v3500
    %v3543 = vunpack.c.h.b16 %v3500
    %v3544 = vunpack.c.l.b16 %v3501
    %v3545 = vunpack.c.h.b16 %v3501
    %v3546 = vunpack.c.l.b16 %v3502
    %v3547 = vunpack.c.h.b16 %v3502
    %v3548 = vunpack.c.l.b16 %v3503
    %v3549 = vunpack.c.h.b16 %v3503
    %v3550 = vpack.c.b16 %v3538, %v3534
    %v3551 = vpack.c.b16 %v3539, %v3535
    %v3552 = vpack.c.b16 %v3540, %v3536
    %v3553 = vpack.c.b16 %v3541, %v3537
    %v3554 = vpack.c.b16 %v3546, %v3542
    %v3555 = vpack.c.b16 %v3547, %v3543
    %v3556 = vpack.c.b16 %v3548, %v3544
    %v3557 = vpack.c.b16 %v3549, %v3545
    %v3567 = vsel %vm717, %v3495, 0
    %3569 = vmatprep.subr.bf16.mxu0 0
    %3570 = vmatpush1.bf16.msra.mxu0 0
    %3571 = vmatprep.subr.bf16.mxu0 0
    %3572 = vmatpush1.bf16.msra.mxu0 0
    %3573 = vmatprep.subr.bf16.mxu0 0
    %3574 = vmatpush1.bf16.msra.mxu0 0
    %3575 = vmatprep.subr.bf16.mxu0 0
    %3576 = vmatpush1.bf16.msra.mxu0 0
    %3577 = vmatprep.subr.bf16.mxu0 0
    %3578 = vmatpush1.bf16.msra.mxu0 0
    %3579 = vmatprep.subr.bf16.mxu0 0
    %3580 = vmatpush1.bf16.msra.mxu0 0
    %3581 = vmatprep.subr.bf16.mxu0 %v3555
    %3582 = vmatpush1.bf16.msra.mxu0 %v3554
    %3583 = vmatprep.subr.bf16.mxu0 %v3551
    %3584 = vmatpush1.bf16.msra.mxu0 %v3550
    %3585 = vmatprep.subr.bf16.mxu0 0
    %3586 = vmatpush2.bf16.msra.mxu0 0
    %3587 = vmatprep.subr.bf16.mxu0 0
    %3588 = vmatpush2.bf16.msra.mxu0 0
    %3589 = vmatprep.subr.bf16.mxu0 0
    %3590 = vmatpush2.bf16.msra.mxu0 0
    %3591 = vmatprep.subr.bf16.mxu0 0
    %3592 = vmatpush2.bf16.msra.mxu0 0
    %3593 = vmatprep.subr.bf16.mxu0 0
    %3594 = vmatpush2.bf16.msra.mxu0 0
    %3595 = vmatprep.subr.bf16.mxu0 0
    %3596 = vmatpush2.bf16.msra.mxu0 0
    %3597 = vmatprep.subr.bf16.mxu0 0
    %3598 = vmatpush2.bf16.msra.mxu0 0
    %3599 = vmatprep.subr.bf16.mxu0 0
    %3600 = vmatpush2.bf16.msra.mxu0 0
    %3601 = vmatprep.mubr.bf16.mxu0 0
    %3602 = vmatmul.mubr.bf16.gmra.mxu0 %v3567
    %v3603 = vpop.f32.mrf.mxu0
    %v3604 = vadd.f32 %v3509, %v3603
    %v3605 = vpop.f32.mrf.mxu0
    %v3606 = vadd.f32 %v3513, %v3605
    %v3607 = vpop.f32.mrf.mxu0
    %v3608 = vpop.f32.mrf.mxu0
    %3609 = vdwg.mxu0
    %3610 = vmatprep.subr.bf16.mxu0 0
    %3611 = vmatpush1.bf16.msra.mxu0 0
    %3612 = vmatprep.subr.bf16.mxu0 0
    %3613 = vmatpush1.bf16.msra.mxu0 0
    %3614 = vmatprep.subr.bf16.mxu0 0
    %3615 = vmatpush1.bf16.msra.mxu0 0
    %3616 = vmatprep.subr.bf16.mxu0 0
    %3617 = vmatpush1.bf16.msra.mxu0 0
    %3618 = vmatprep.subr.bf16.mxu0 0
    %3619 = vmatpush1.bf16.msra.mxu0 0
    %3620 = vmatprep.subr.bf16.mxu0 0
    %3621 = vmatpush1.bf16.msra.mxu0 0
    %3622 = vmatprep.subr.bf16.mxu0 %v3557
    %3623 = vmatpush1.bf16.msra.mxu0 %v3556
    %3624 = vmatprep.subr.bf16.mxu0 %v3553
    %3625 = vmatpush1.bf16.msra.mxu0 %v3552
    %3626 = vmatprep.subr.bf16.mxu0 0
    %3627 = vmatpush2.bf16.msra.mxu0 0
    %3628 = vmatprep.subr.bf16.mxu0 0
    %3629 = vmatpush2.bf16.msra.mxu0 0
    %3630 = vmatprep.subr.bf16.mxu0 0
    %3631 = vmatpush2.bf16.msra.mxu0 0
    %3632 = vmatprep.subr.bf16.mxu0 0
    %3633 = vmatpush2.bf16.msra.mxu0 0
    %3634 = vmatprep.subr.bf16.mxu0 0
    %3635 = vmatpush2.bf16.msra.mxu0 0
    %3636 = vmatprep.subr.bf16.mxu0 0
    %3637 = vmatpush2.bf16.msra.mxu0 0
    %3638 = vmatprep.subr.bf16.mxu0 0
    %3639 = vmatpush2.bf16.msra.mxu0 0
    %3640 = vmatprep.subr.bf16.mxu0 0
    %3641 = vmatpush2.bf16.msra.mxu0 0
    %3642 = vmatprep.mubr.bf16.mxu0 0
    %3643 = vmatmul.mubr.bf16.gmra.mxu0 %v3567
    %v3644 = vpop.f32.mrf.mxu0
    %v3645 = vadd.f32 %v3517, %v3644
    %v3646 = vpop.f32.mrf.mxu0
    %v3647 = vadd.f32 %v3521, %v3646
    %v3648 = vpop.f32.mrf.mxu0
    %v3649 = vpop.f32.mrf.mxu0
    %3650 = vdwg.mxu0
    %v3651 = vmax.f32 %v3604, 0.0
    %v3652 = vmax.f32 %v3606, 0.0
    %v3653 = vmax.f32 %v3645, 0.0
    %v3654 = vmax.f32 %v3647, 0.0
    %v3655 = vld [vmem:[#allocation44] sm:$0xf]
    %v3656 = vld [vmem:[#allocation46] sm:$0xf]
    %vm3657 = vcmask 1041408
    %v3658 = vsel %vm3657, %v3651, 0.0
    %v3659 = vsel %vm3657, %v3652, 0.0
    %v3660 = vadd.f32 %v3658, %v3659
    %v3661 = vsel %vm3657, %v3653, 0.0
    %v3662 = vadd.f32 %v3660, %v3661
    %v3663 = vsel %vm3657, %v3654, 0.0
    %v3664 = vadd.f32 %v3662, %v3663
    %3665 = vadd.xlane.f32.xlu0 %v3664
    %v3666 = vpop.xlane.xlu0 %3665
    %v3667 = vrcp.pop 512.0
    %v3668 = vmul.f32 %v3666, %v3667
    %v3669 = vsub.f32 %v3651, %v3668
    %v3670 = vsub.f32 %v3652, %v3668
    %v3671 = vsub.f32 %v3653, %v3668
    %v3672 = vsub.f32 %v3654, %v3668
    %v3673 = vmul.f32 %v3669, %v3669
    %v3674 = vmul.f32 %v3670, %v3670
    %v3675 = vmul.f32 %v3671, %v3671
    %v3676 = vmul.f32 %v3672, %v3672
    %v3677 = vsel %vm3657, %v3673, 0.0
    %v3678 = vsel %vm3657, %v3674, 0.0
    %v3679 = vadd.f32 %v3677, %v3678
    %v3680 = vsel %vm3657, %v3675, 0.0
    %v3681 = vadd.f32 %v3679, %v3680
    %v3682 = vsel %vm3657, %v3676, 0.0
    %v3683 = vadd.f32 %v3681, %v3682
    %3684 = vadd.xlane.f32.xlu0 %v3683
    %v3685 = vpop.xlane.xlu0 %3684
    %v3686 = vmul.f32 %v3685, %v3667
    %v3687 = vadd.f32 %v3686, 1e-05
    %v3688 = vrsqrt.pop %v3687
    %v3689 = vmul.f32 %v3669, %v3688
    %v3690 = vmul.f32 %v3670, %v3688
    %v3691 = vmul.f32 %v3671, %v3688
    %v3692 = vmul.f32 %v3672, %v3688
    %v3694 = vlaneseq
    %v3695 = vshrl.u32 %v3694, 7
    %v3696 = vsub.s32 0, %v3695
    %v3697 = vrot.slane %v3655, %v3696
    %v3698 = vlaneseq
    %v3699 = vshrl.u32 %v3698, 7
    %v3700 = vsub.s32 1, %v3699
    %v3701 = vrot.slane %v3655, %v3700
    %v3702 = vlaneseq
    %v3703 = vshrl.u32 %v3702, 7
    %v3704 = vsub.s32 2, %v3703
    %v3705 = vrot.slane %v3655, %v3704
    %v3706 = vlaneseq
    %v3707 = vshrl.u32 %v3706, 7
    %v3708 = vsub.s32 3, %v3707
    %v3709 = vrot.slane %v3655, %v3708
    %v3714 = vmul.f32 %v3689, %v3697
    %v3715 = vmul.f32 %v3690, %v3701
    %v3716 = vmul.f32 %v3691, %v3705
    %v3717 = vmul.f32 %v3692, %v3709
    %v3719 = vlaneseq
    %v3720 = vshrl.u32 %v3719, 7
    %v3721 = vsub.s32 0, %v3720
    %v3722 = vrot.slane %v3656, %v3721
    %v3723 = vlaneseq
    %v3724 = vshrl.u32 %v3723, 7
    %v3725 = vsub.s32 1, %v3724
    %v3726 = vrot.slane %v3656, %v3725
    %v3727 = vlaneseq
    %v3728 = vshrl.u32 %v3727, 7
    %v3729 = vsub.s32 2, %v3728
    %v3730 = vrot.slane %v3656, %v3729
    %v3731 = vlaneseq
    %v3732 = vshrl.u32 %v3731, 7
    %v3733 = vsub.s32 3, %v3732
    %v3734 = vrot.slane %v3656, %v3733
    %v3739 = vadd.f32 %v3714, %v3722
    %v3740 = vadd.f32 %v3715, %v3726
    %v3741 = vadd.f32 %v3716, %v3730
    %v3742 = vadd.f32 %v3717, %v3734
    %v3743 = vpack.c.bf16 %v3739, %v3739
    %v3744 = vpack.c.bf16 %v3740, %v3740
    %v3745 = vpack.c.bf16 %v3741, %v3741
    %v3746 = vpack.c.bf16 %v3742, %v3742
    %v3747 = vld [vmem:[%s75] sm:$0xf]
    %v3748 = vld [vmem:[%s75 + $0x4] sm:$0xf]
    %v3749 = vld [vmem:[%s75 + $0x8] sm:$0xf]
    %v3750 = vld [vmem:[%s75 + $0xc] sm:$0xf]
    %v3751 = vld [vmem:[%s75 + $0x10] sm:$0xf]
    %v3752 = vld [vmem:[%s75 + $0x14] sm:$0xf]
    %v3753 = vld [vmem:[%s75 + $0x18] sm:$0xf]
    %v3754 = vld [vmem:[%s75 + $0x1c] sm:$0xf]
    %v3755 = vld [vmem:[%s75 + $0x20] sm:$0xf]
    %v3756 = vld [vmem:[%s75 + $0x24] sm:$0xf]
    %v3757 = vld [vmem:[%s75 + $0x28] sm:$0xf]
    %v3758 = vld [vmem:[%s75 + $0x2c] sm:$0xf]
    %v3759 = vld [vmem:[%s75 + $0x30] sm:$0xf]
    %v3760 = vld [vmem:[%s75 + $0x34] sm:$0xf]
    %v3761 = vld [vmem:[%s75 + $0x38] sm:$0xf]
    %v3762 = vld [vmem:[%s75 + $0x3c] sm:$0xf]
    %v3763 = vld [vmem:[%s75 + $0x40] sm:$0xf]
    %v3764 = vld [vmem:[%s75 + $0x44] sm:$0xf]
    %v3765 = vld [vmem:[%s75 + $0x48] sm:$0xf]
    %v3766 = vld [vmem:[%s75 + $0x4c] sm:$0xf]
    %v3767 = vld [vmem:[%s75 + $0x50] sm:$0xf]
    %v3768 = vld [vmem:[%s75 + $0x54] sm:$0xf]
    %v3769 = vld [vmem:[%s75 + $0x58] sm:$0xf]
    %v3770 = vld [vmem:[%s75 + $0x5c] sm:$0xf]
    %v3771 = vld [vmem:[%s75 + $0x60] sm:$0xf]
    %v3772 = vld [vmem:[%s75 + $0x64] sm:$0xf]
    %v3773 = vld [vmem:[%s75 + $0x68] sm:$0xf]
    %v3774 = vld [vmem:[%s75 + $0x6c] sm:$0xf]
    %v3775 = vld [vmem:[%s75 + $0x70] sm:$0xf]
    %v3776 = vld [vmem:[%s75 + $0x74] sm:$0xf]
    %v3777 = vld [vmem:[%s75 + $0x78] sm:$0xf]
    %v3778 = vld [vmem:[%s75 + $0x7c] sm:$0xf]
    %v3779 = vld [vmem:[%s75 + $0x80] sm:$0xf]
    %v3780 = vld [vmem:[%s75 + $0x84] sm:$0xf]
    %v3781 = vld [vmem:[%s75 + $0x88] sm:$0xf]
    %v3782 = vld [vmem:[%s75 + $0x8c] sm:$0xf]
    %v3783 = vld [vmem:[%s75 + $0x90] sm:$0xf]
    %v3784 = vld [vmem:[%s75 + $0x94] sm:$0xf]
    %v3785 = vld [vmem:[%s75 + $0x98] sm:$0xf]
    %v3786 = vld [vmem:[%s75 + $0x9c] sm:$0xf]
    %v3787 = vld [vmem:[%s75 + $0xa0] sm:$0xf]
    %v3788 = vld [vmem:[%s75 + $0xa4] sm:$0xf]
    %v3789 = vld [vmem:[%s75 + $0xa8] sm:$0xf]
    %v3790 = vld [vmem:[%s75 + $0xac] sm:$0xf]
    %v3791 = vld [vmem:[%s75 + $0xb0] sm:$0xf]
    %v3792 = vld [vmem:[%s75 + $0xb4] sm:$0xf]
    %v3793 = vld [vmem:[%s75 + $0xb8] sm:$0xf]
    %v3794 = vld [vmem:[%s75 + $0xbc] sm:$0xf]
    %v3795 = vld [vmem:[%s75 + $0xc0] sm:$0xf]
    %v3796 = vld [vmem:[%s75 + $0xc4] sm:$0xf]
    %v3797 = vld [vmem:[%s75 + $0xc8] sm:$0xf]
    %v3798 = vld [vmem:[%s75 + $0xcc] sm:$0xf]
    %v3799 = vld [vmem:[%s75 + $0xd0] sm:$0xf]
    %v3800 = vld [vmem:[%s75 + $0xd4] sm:$0xf]
    %v3801 = vld [vmem:[%s75 + $0xd8] sm:$0xf]
    %v3802 = vld [vmem:[%s75 + $0xdc] sm:$0xf]
    %v3803 = vld [vmem:[%s75 + $0xe0] sm:$0xf]
    %v3804 = vld [vmem:[%s75 + $0xe4] sm:$0xf]
    %v3805 = vld [vmem:[%s75 + $0xe8] sm:$0xf]
    %v3806 = vld [vmem:[%s75 + $0xec] sm:$0xf]
    %v3807 = vld [vmem:[%s75 + $0xf0] sm:$0xf]
    %v3808 = vld [vmem:[%s75 + $0xf4] sm:$0xf]
    %v3809 = vld [vmem:[%s75 + $0xf8] sm:$0xf]
    %v3810 = vld [vmem:[%s75 + $0xfc] sm:$0xf]
    %v3811 = vld [vmem:[#allocation47] sm:$0x1]
    %v3813 = vlaneseq
    %v3814 = vshrl.u32 %v3813, 7
    %v3815 = vsub.s32 0, %v3814
    %v3816 = vrot.slane %v3811, %v3815
    %v3882 = vunpack.c.l.b16 %v3747
    %v3883 = vunpack.c.l.b16 %v3748
    %v3884 = vunpack.c.l.b16 %v3749
    %v3885 = vunpack.c.l.b16 %v3750
    %v3886 = vunpack.c.l.b16 %v3751
    %v3887 = vunpack.c.l.b16 %v3752
    %v3888 = vunpack.c.l.b16 %v3753
    %v3889 = vunpack.c.l.b16 %v3754
    %v3890 = vunpack.c.l.b16 %v3755
    %v3891 = vunpack.c.l.b16 %v3756
    %v3892 = vunpack.c.l.b16 %v3757
    %v3893 = vunpack.c.l.b16 %v3758
    %v3894 = vunpack.c.l.b16 %v3759
    %v3895 = vunpack.c.l.b16 %v3760
    %v3896 = vunpack.c.l.b16 %v3761
    %v3897 = vunpack.c.l.b16 %v3762
    %v3898 = vunpack.c.l.b16 %v3763
    %v3899 = vunpack.c.l.b16 %v3764
    %v3900 = vunpack.c.l.b16 %v3765
    %v3901 = vunpack.c.l.b16 %v3766
    %v3902 = vunpack.c.l.b16 %v3767
    %v3903 = vunpack.c.l.b16 %v3768
    %v3904 = vunpack.c.l.b16 %v3769
    %v3905 = vunpack.c.l.b16 %v3770
    %v3906 = vunpack.c.l.b16 %v3771
    %v3907 = vunpack.c.l.b16 %v3772
    %v3908 = vunpack.c.l.b16 %v3773
    %v3909 = vunpack.c.l.b16 %v3774
    %v3910 = vunpack.c.l.b16 %v3775
    %v3911 = vunpack.c.l.b16 %v3776
    %v3912 = vunpack.c.l.b16 %v3777
    %v3913 = vunpack.c.l.b16 %v3778
    %v3914 = vunpack.c.l.b16 %v3779
    %v3915 = vunpack.c.l.b16 %v3780
    %v3916 = vunpack.c.l.b16 %v3781
    %v3917 = vunpack.c.l.b16 %v3782
    %v3918 = vunpack.c.l.b16 %v3783
    %v3919 = vunpack.c.l.b16 %v3784
    %v3920 = vunpack.c.l.b16 %v3785
    %v3921 = vunpack.c.l.b16 %v3786
    %v3922 = vunpack.c.l.b16 %v3787
    %v3923 = vunpack.c.l.b16 %v3788
    %v3924 = vunpack.c.l.b16 %v3789
    %v3925 = vunpack.c.l.b16 %v3790
    %v3926 = vunpack.c.l.b16 %v3791
    %v3927 = vunpack.c.l.b16 %v3792
    %v3928 = vunpack.c.l.b16 %v3793
    %v3929 = vunpack.c.l.b16 %v3794
    %v3930 = vunpack.c.l.b16 %v3795
    %v3931 = vunpack.c.l.b16 %v3796
    %v3932 = vunpack.c.l.b16 %v3797
    %v3933 = vunpack.c.l.b16 %v3798
    %v3934 = vunpack.c.l.b16 %v3799
    %v3935 = vunpack.c.l.b16 %v3800
    %v3936 = vunpack.c.l.b16 %v3801
    %v3937 = vunpack.c.l.b16 %v3802
    %v3938 = vunpack.c.l.b16 %v3803
    %v3939 = vunpack.c.l.b16 %v3804
    %v3940 = vunpack.c.l.b16 %v3805
    %v3941 = vunpack.c.l.b16 %v3806
    %v3942 = vunpack.c.l.b16 %v3807
    %v3943 = vunpack.c.l.b16 %v3808
    %v3944 = vunpack.c.l.b16 %v3809
    %v3945 = vunpack.c.l.b16 %v3810
    %v3946 = vpack.c.b16 %v3883, %v3882
    %v3947 = vpack.c.b16 %v3885, %v3884
    %v3948 = vpack.c.b16 %v3887, %v3886
    %v3949 = vpack.c.b16 %v3889, %v3888
    %v3950 = vpack.c.b16 %v3891, %v3890
    %v3951 = vpack.c.b16 %v3893, %v3892
    %v3952 = vpack.c.b16 %v3895, %v3894
    %v3953 = vpack.c.b16 %v3897, %v3896
    %v3954 = vpack.c.b16 %v3899, %v3898
    %v3955 = vpack.c.b16 %v3901, %v3900
    %v3956 = vpack.c.b16 %v3903, %v3902
    %v3957 = vpack.c.b16 %v3905, %v3904
    %v3958 = vpack.c.b16 %v3907, %v3906
    %v3959 = vpack.c.b16 %v3909, %v3908
    %v3960 = vpack.c.b16 %v3911, %v3910
    %v3961 = vpack.c.b16 %v3913, %v3912
    %v3962 = vpack.c.b16 %v3915, %v3914
    %v3963 = vpack.c.b16 %v3917, %v3916
    %v3964 = vpack.c.b16 %v3919, %v3918
    %v3965 = vpack.c.b16 %v3921, %v3920
    %v3966 = vpack.c.b16 %v3923, %v3922
    %v3967 = vpack.c.b16 %v3925, %v3924
    %v3968 = vpack.c.b16 %v3927, %v3926
    %v3969 = vpack.c.b16 %v3929, %v3928
    %v3970 = vpack.c.b16 %v3931, %v3930
    %v3971 = vpack.c.b16 %v3933, %v3932
    %v3972 = vpack.c.b16 %v3935, %v3934
    %v3973 = vpack.c.b16 %v3937, %v3936
    %v3974 = vpack.c.b16 %v3939, %v3938
    %v3975 = vpack.c.b16 %v3941, %v3940
    %v3976 = vpack.c.b16 %v3943, %v3942
    %v3977 = vpack.c.b16 %v3945, %v3944
    %4010 = vmatprep.subr.bf16.mxu0 0
    %4011 = vmatpush1.bf16.msra.mxu0 %v3953
    %4012 = vmatprep.subr.bf16.mxu0 0
    %4013 = vmatpush1.bf16.msra.mxu0 %v3952
    %4014 = vmatprep.subr.bf16.mxu0 0
    %4015 = vmatpush1.bf16.msra.mxu0 %v3951
    %4016 = vmatprep.subr.bf16.mxu0 0
    %4017 = vmatpush1.bf16.msra.mxu0 %v3950
    %4018 = vmatprep.subr.bf16.mxu0 0
    %4019 = vmatpush1.bf16.msra.mxu0 %v3949
    %4020 = vmatprep.subr.bf16.mxu0 0
    %4021 = vmatpush1.bf16.msra.mxu0 %v3948
    %4022 = vmatprep.subr.bf16.mxu0 0
    %4023 = vmatpush1.bf16.msra.mxu0 %v3947
    %4024 = vmatprep.subr.bf16.mxu0 0
    %4025 = vmatpush1.bf16.msra.mxu0 %v3946
    %4026 = vmatprep.subr.bf16.mxu0 0
    %4027 = vmatpush2.bf16.msra.mxu0 %v3961
    %4028 = vmatprep.subr.bf16.mxu0 0
    %4029 = vmatpush2.bf16.msra.mxu0 %v3960
    %4030 = vmatprep.subr.bf16.mxu0 0
    %4031 = vmatpush2.bf16.msra.mxu0 %v3959
    %4032 = vmatprep.subr.bf16.mxu0 0
    %4033 = vmatpush2.bf16.msra.mxu0 %v3958
    %4034 = vmatprep.subr.bf16.mxu0 0
    %4035 = vmatpush2.bf16.msra.mxu0 %v3957
    %4036 = vmatprep.subr.bf16.mxu0 0
    %4037 = vmatpush2.bf16.msra.mxu0 %v3956
    %4038 = vmatprep.subr.bf16.mxu0 0
    %4039 = vmatpush2.bf16.msra.mxu0 %v3955
    %4040 = vmatprep.subr.bf16.mxu0 0
    %4041 = vmatpush2.bf16.msra.mxu0 %v3954
    %4042 = vmatprep.mubr.bf16.mxu0 %v3744
    %4043 = vmatmul.mubr.bf16.gmra.mxu0 %v3743
    %v4044 = vpop.f32.mrf.mxu0
    %v4045 = vadd.f32 %v3816, %v4044
    %v4046 = vpop.f32.mrf.mxu0
    %v4047 = vpop.f32.mrf.mxu0
    %v4048 = vpop.f32.mrf.mxu0
    %4049 = vdwg.mxu0
    %4050 = vmatprep.subr.bf16.mxu0 0
    %4051 = vmatpush1.bf16.msra.mxu0 %v3969
    %4052 = vmatprep.subr.bf16.mxu0 0
    %4053 = vmatpush1.bf16.msra.mxu0 %v3968
    %4054 = vmatprep.subr.bf16.mxu0 0
    %4055 = vmatpush1.bf16.msra.mxu0 %v3967
    %4056 = vmatprep.subr.bf16.mxu0 0
    %4057 = vmatpush1.bf16.msra.mxu0 %v3966
    %4058 = vmatprep.subr.bf16.mxu0 0
    %4059 = vmatpush1.bf16.msra.mxu0 %v3965
    %4060 = vmatprep.subr.bf16.mxu0 0
    %4061 = vmatpush1.bf16.msra.mxu0 %v3964
    %4062 = vmatprep.subr.bf16.mxu0 0
    %4063 = vmatpush1.bf16.msra.mxu0 %v3963
    %4064 = vmatprep.subr.bf16.mxu0 0
    %4065 = vmatpush1.bf16.msra.mxu0 %v3962
    %4066 = vmatprep.subr.bf16.mxu0 0
    %4067 = vmatpush2.bf16.msra.mxu0 %v3977
    %4068 = vmatprep.subr.bf16.mxu0 0
    %4069 = vmatpush2.bf16.msra.mxu0 %v3976
    %4070 = vmatprep.subr.bf16.mxu0 0
    %4071 = vmatpush2.bf16.msra.mxu0 %v3975
    %4072 = vmatprep.subr.bf16.mxu0 0
    %4073 = vmatpush2.bf16.msra.mxu0 %v3974
    %4074 = vmatprep.subr.bf16.mxu0 0
    %4075 = vmatpush2.bf16.msra.mxu0 %v3973
    %4076 = vmatprep.subr.bf16.mxu0 0
    %4077 = vmatpush2.bf16.msra.mxu0 %v3972
    %4078 = vmatprep.subr.bf16.mxu0 0
    %4079 = vmatpush2.bf16.msra.mxu0 %v3971
    %4080 = vmatprep.subr.bf16.mxu0 0
    %4081 = vmatpush2.bf16.msra.mxu0 %v3970
    %4082 = vmatprep.mubr.bf16.mxu0 %v3746
    %4083 = vmatmul.mubr.bf16.gmra.mxu0 %v3745
    %v4084 = vpop.f32.mrf.mxu0
    %v4085 = vadd.f32 %v4045, %v4084
    %v4086 = vpop.f32.mrf.mxu0
    %v4087 = vpop.f32.mrf.mxu0
    %v4088 = vpop.f32.mrf.mxu0
    %4089 = vdwg.mxu0
    %v4090 = vmax.f32 %v4085, 0.0
    %v4091 = vld [vmem:[#allocation49] sm:$0x1]
    %v4092 = vld [vmem:[#allocation50] sm:$0x1]
    %v4093 = vsel %vm3657, %v4090, 0.0
    %4094 = vadd.xlane.f32.xlu0 %v4093
    %v4095 = vpop.xlane.xlu0 %4094
    %v4096 = vrcp.pop 128.0
    %v4097 = vmul.f32 %v4095, %v4096
    %v4098 = vsub.f32 %v4090, %v4097
    %v4099 = vmul.f32 %v4098, %v4098
    %v4100 = vsel %vm3657, %v4099, 0.0
    %4101 = vadd.xlane.f32.xlu0 %v4100
    %v4102 = vpop.xlane.xlu0 %4101
    %v4103 = vmul.f32 %v4102, %v4096
    %v4104 = vadd.f32 %v4103, 1e-05
    %v4105 = vrsqrt.pop %v4104
    %v4106 = vmul.f32 %v4098, %v4105
    %v4108 = vlaneseq
    %v4109 = vshrl.u32 %v4108, 7
    %v4110 = vsub.s32 0, %v4109
    %v4111 = vrot.slane %v4091, %v4110
    %v4113 = vmul.f32 %v4106, %v4111
    %v4115 = vlaneseq
    %v4116 = vshrl.u32 %v4115, 7
    %v4117 = vsub.s32 0, %v4116
    %v4118 = vrot.slane %v4092, %v4117
    %v4120 = vadd.f32 %v4113, %v4118
    %v4121 = vpack.c.bf16 %v4120, %v4120
    %v4122 = vld [vmem:[#allocation52] sm:$0xf]
    %v4123 = vld [vmem:[#allocation52 + $0x4] sm:$0xf]
    %v4124 = vld [vmem:[#allocation52 + $0x8] sm:$0xf]
    %v4125 = vld [vmem:[#allocation52 + $0xc] sm:$0xf]
    %v4126 = vld [vmem:[#allocation52 + $0x10] sm:$0xf]
    %v4127 = vld [vmem:[#allocation52 + $0x14] sm:$0xf]
    %v4128 = vld [vmem:[#allocation52 + $0x18] sm:$0xf]
    %v4129 = vld [vmem:[#allocation52 + $0x1c] sm:$0xf]
    %v4130 = vld [vmem:[#allocation52 + $0x20] sm:$0xf]
    %v4131 = vld [vmem:[#allocation52 + $0x24] sm:$0xf]
    %v4132 = vld [vmem:[#allocation52 + $0x28] sm:$0xf]
    %v4133 = vld [vmem:[#allocation52 + $0x2c] sm:$0xf]
    %v4134 = vld [vmem:[#allocation52 + $0x30] sm:$0xf]
    %v4135 = vld [vmem:[#allocation52 + $0x34] sm:$0xf]
    %v4136 = vld [vmem:[#allocation52 + $0x38] sm:$0xf]
    %v4137 = vld [vmem:[#allocation52 + $0x3c] sm:$0xf]
    %v4138 = vld [vmem:[#allocation53] sm:$0x1]
    %v4140 = vlaneseq
    %v4141 = vshrl.u32 %v4140, 7
    %v4142 = vsub.s32 0, %v4141
    %v4143 = vrot.slane %v4138, %v4142
    %v4161 = vunpack.c.l.b16 %v4122
    %v4162 = vunpack.c.l.b16 %v4123
    %v4163 = vunpack.c.l.b16 %v4124
    %v4164 = vunpack.c.l.b16 %v4125
    %v4165 = vunpack.c.l.b16 %v4126
    %v4166 = vunpack.c.l.b16 %v4127
    %v4167 = vunpack.c.l.b16 %v4128
    %v4168 = vunpack.c.l.b16 %v4129
    %v4169 = vunpack.c.l.b16 %v4130
    %v4170 = vunpack.c.l.b16 %v4131
    %v4171 = vunpack.c.l.b16 %v4132
    %v4172 = vunpack.c.l.b16 %v4133
    %v4173 = vunpack.c.l.b16 %v4134
    %v4174 = vunpack.c.l.b16 %v4135
    %v4175 = vunpack.c.l.b16 %v4136
    %v4176 = vunpack.c.l.b16 %v4137
    %v4177 = vpack.c.b16 %v4162, %v4161
    %v4178 = vpack.c.b16 %v4164, %v4163
    %v4179 = vpack.c.b16 %v4166, %v4165
    %v4180 = vpack.c.b16 %v4168, %v4167
    %v4181 = vpack.c.b16 %v4170, %v4169
    %v4182 = vpack.c.b16 %v4172, %v4171
    %v4183 = vpack.c.b16 %v4174, %v4173
    %v4184 = vpack.c.b16 %v4176, %v4175
    %4193 = vmatprep.subr.bf16.mxu0 0
    %4194 = vmatpush1.bf16.msra.mxu0 %v4184
    %4195 = vmatprep.subr.bf16.mxu0 0
    %4196 = vmatpush1.bf16.msra.mxu0 %v4183
    %4197 = vmatprep.subr.bf16.mxu0 0
    %4198 = vmatpush1.bf16.msra.mxu0 %v4182
    %4199 = vmatprep.subr.bf16.mxu0 0
    %4200 = vmatpush1.bf16.msra.mxu0 %v4181
    %4201 = vmatprep.subr.bf16.mxu0 0
    %4202 = vmatpush1.bf16.msra.mxu0 %v4180
    %4203 = vmatprep.subr.bf16.mxu0 0
    %4204 = vmatpush1.bf16.msra.mxu0 %v4179
    %4205 = vmatprep.subr.bf16.mxu0 0
    %4206 = vmatpush1.bf16.msra.mxu0 %v4178
    %4207 = vmatprep.subr.bf16.mxu0 0
    %4208 = vmatpush1.bf16.msra.mxu0 %v4177
    %4209 = vmatprep.subr.bf16.mxu0 0
    %4210 = vmatpush2.bf16.msra.mxu0 0
    %4211 = vmatprep.subr.bf16.mxu0 0
    %4212 = vmatpush2.bf16.msra.mxu0 0
    %4213 = vmatprep.subr.bf16.mxu0 0
    %4214 = vmatpush2.bf16.msra.mxu0 0
    %4215 = vmatprep.subr.bf16.mxu0 0
    %4216 = vmatpush2.bf16.msra.mxu0 0
    %4217 = vmatprep.subr.bf16.mxu0 0
    %4218 = vmatpush2.bf16.msra.mxu0 0
    %4219 = vmatprep.subr.bf16.mxu0 0
    %4220 = vmatpush2.bf16.msra.mxu0 0
    %4221 = vmatprep.subr.bf16.mxu0 0
    %4222 = vmatpush2.bf16.msra.mxu0 0
    %4223 = vmatprep.subr.bf16.mxu0 0
    %4224 = vmatpush2.bf16.msra.mxu0 0
    %4225 = vmatprep.mubr.bf16.mxu0 0
    %4226 = vmatmul.mubr.bf16.gmra.mxu0 %v4121
    %v4227 = vpop.f32.mrf.mxu0
    %v4228 = vadd.f32 %v4143, %v4227
    %v4229 = vpop.f32.mrf.mxu0
    %v4230 = vpop.f32.mrf.mxu0
    %v4231 = vpop.f32.mrf.mxu0
    %4232 = vdwg.mxu0
    %v4233 = vsel %vm3657, %v4228, -inf
    %4234 = vmax.xlane.f32.xlu0 %v4233
    %v4235 = vpop.xlane.xlu0 %4234
    %v4236 = vsub.f32 %v4228, %v4235
    %v4237 = vmul.f32 %v4236, 1.442695
    %v4238 = vpow.pop %v4237
    %v4239 = vsel %vm3657, %v4238, 0.0
    %4240 = vadd.xlane.f32.xlu0 %v4239
    %v4241 = vpop.xlane.xlu0 %4240
    %v4242 = vrcp.pop %v4241
    %v4243 = vmul.f32 %v4238, %v4242
    %4244 = vst [vmem:[#allocation55] sm:$0x3] %v4243
    // Predicated region
    $region310: #{bert_classifier_forward.1} parent=1 // pred_check
      _
    $region311: #{bert_classifier_forward.1} parent=1 // pred_check_branch
      %4246 = sbr.rel (0) target = $region313
    $region312: #{bert_classifier_forward.1} parent=1 // pred_region
      %s4248 = ssub.s32 32, 32
      %4249 = vsyncadd [#allocation4], %s4248
      %s4251 = sshll.u32 [#allocation55], 4
      %s4252 = int_to_ptr.vmem [resolvable:$true] %s4251
      %4254 = dma.vmem_to_hbm [thread:$0]  %s4252, 32, %s87, [#allocation4]
    $region313: #{bert_classifier_forward.1} parent=1 // pred_fallthru
      _
    // Predicated region
    $region314: #{bert_classifier_forward.1} parent=1 // pred_check
      _
    $region315: #{bert_classifier_forward.1} parent=1 // pred_check_branch
      %4256 = sbr.rel (0) target = $region317
    $region316: #{bert_classifier_forward.1} parent=1 // pred_region
      %4257 = dma.done [#allocation4], 32
    $region317: #{bert_classifier_forward.1} parent=1 // pred_fallthru
      _
    %4258 = vsyncpa [#allocation3], 1
    %4259 = vsyncpa [#allocation6], 1
    %4260 = vsyncpa [#allocation9], 1
    %4261 = vsyncpa [#allocation12], 1
    %4262 = vsyncpa [#allocation15], 1
    %4263 = vsyncpa [#allocation18], 1
    %4264 = vsyncpa [#allocation21], 1
    %4265 = vsyncpa [#allocation24], 1
    %4266 = vsyncpa [#allocation27], 1
    %4267 = vsyncpa [#allocation30], 1
    %4268 = vsyncpa [#allocation33], 1
    %4269 = vsyncpa [#allocation36], 1
    %4270 = vsyncpa [#allocation39], 1
    %4271 = vsyncpa [#allocation42], 1
    %4272 = vsyncpa [#allocation45], 1
    %4273 = vsyncpa [#allocation48], 1
    %4274 = vsyncpa [#allocation51], 1
    %4275 = vsyncpa [#allocation54], 1
    %4276 = vsyncpa [#allocation4], 1

</llo_original>
